<compile_context>
chip_gen: v6e
topology: v6e:2x2x1
jax: 0.10.0
libtpu: 0.0.40
codegen_flags: <defaults>
</compile_context>

<pallas_src>
import jax
import jax.numpy as jnp
from jax import lax
from jax.experimental import pallas as pl
from jax.experimental.pallas import tpu as pltpu

# ---------------- config (small test shapes consistent with the module) ----------------
B = 2
C = 32                  # n_feats
H = W = 16
P = 4                   # patch size
HP, WP = H // P, W // P
N = HP * WP             # tokens after the patch conv (16)
PP = P * P              # taps per patch (16)
R = max(4, C // 16)     # reduced_channels (only used by the reference / param shapes)
HW = H * W              # 256


# ---------------- the single fused kernel (one grid step, whole arrays in VMEM) ----------------
def fused_attention_kernel(x4_ref, xres_ref, w4_ref, b4_ref, m4_ref, v4_ref,
                           gam_ref, wf2_ref, bf2_ref, st_ref, o_ref):
    f32 = jnp.float32

    # ---- depthwise patch conv: both branches x both batches lane-concatenated (N, 4C) ----
    # lane layout: [sp_b0 | sp_b1 | ch_b0 | ch_b1]
    acc = jnp.zeros((N, 4 * C), f32)
    for t in range(PP):                                   # static, fully unrolled (16 taps)
        acc = acc + x4_ref[t] * w4_ref[t:t + 1, :]        # (16,128) FMA, full lane width
    xp4 = acc + b4_ref[...]                               # (N, 4C)

    # ---- fused q/k projection for all 4 (branch, batch) blocks: ONE MXU push ----
    # m4 = blockdiag(M_sp, M_sp, M_ch, M_ch), v4 = [v_sp | v_sp | 0 | 0]
    t4 = jnp.dot(xp4, m4_ref[...], preferred_element_type=f32) + v4_ref[...]   # (N, 4C)

    g_sp = gam_ref[0]                                     # scalars from SMEM
    g_ch = gam_ref[1]

    def attend(t_blk, xp_blk, spatial):
        # energy[n,m] = sum_c t[n,c] * xp[m,c]   (no transpose materialized)
        e = lax.dot_general(t_blk, xp_blk, (((1,), (1,)), ((), ())),
                            preferred_element_type=f32)                        # (N, N)
        e = e - jnp.max(e, axis=-1, keepdims=True)
        pe = jnp.exp(e)
        attn = pe / jnp.sum(pe, axis=-1, keepdims=True)
        if spatial:
            # out[n,c] = sum_m attn[m,n] * xp[m,c]
            return lax.dot_general(attn, xp_blk, (((0,), (0,)), ((), ())),
                                   preferred_element_type=f32)                 # (N, C)
        # channel: out[n,c] = sum_m attn[n,m] * xp[m,c]
        return jnp.dot(attn, xp_blk, preferred_element_type=f32)               # (N, C)

    ys = []
    for b in range(B):                                    # static unroll over the 2 batches
        sp0, sp1 = b * C, (b + 1) * C
        ch0, ch1 = (B + b) * C, (B + b + 1) * C
        out_sp = attend(t4[:, sp0:sp1], xp4[:, sp0:sp1], spatial=True)
        out_ch = attend(t4[:, ch0:ch1], xp4[:, ch0:ch1], spatial=False)
        # gamma-scaled sum at token resolution (upsample is linear, so scaling commutes)
        ys.append(g_sp * out_sp + g_ch * out_ch)                               # (N, C)
    ycat = jnp.concatenate(ys, axis=1)                    # (N, 2C) = [y_b0 | y_b1]

    # ---- fused nearest-upsample + pad + 3x3 conv, channels-major, no scratch ----
    # ZT block k (2C, N):  ZT_k[b*C+o, t] = sum_i WfT_k[o,i] * y_b[t,i]
    zt = jnp.concatenate(
        [lax.dot_general(wf2_ref[k], ycat, (((1,), (1,)), ((), ())),
                         preferred_element_type=f32) for k in range(9)],
        axis=1)                                           # (2C, 9N) = (64, 144), stays in vregs
    conv = jnp.dot(zt, st_ref[...], preferred_element_type=f32)                # (2C, HW) lane-dense
    o_ref[...] = jnp.maximum(conv + bf2_ref[...], 0.0) + xres_ref[...]


def fused_forward_call(x4, xres, w4, b4, m4, v4, gammas, wf2, bf2, st):
    in_specs = (
        [pl.BlockSpec(memory_space=pltpu.MemorySpace.VMEM) for _ in range(6)]   # x4..v4
        + [pl.BlockSpec(memory_space=pltpu.MemorySpace.SMEM)]                   # gammas
        + [pl.BlockSpec(memory_space=pltpu.MemorySpace.VMEM) for _ in range(3)] # wf2, bf2, st
    )
    return pl.pallas_call(
        fused_attention_kernel,
        out_shape=jax.ShapeDtypeStruct((B * C, HW), jnp.float32),
        in_specs=in_specs,
        out_specs=pl.BlockSpec(memory_space=pltpu.MemorySpace.VMEM),
    )(x4, xres, w4, b4, m4, v4, gammas, wf2, bf2, st)


# ---------------- full forward (Pallas) ----------------
def forward_pallas(x_nchw, p):
    # channels-major residual: rows b*C+c, cols h*W+w  (free reshape of NCHW)
    xres = x_nchw.reshape(B * C, HW)

    # patch taps: xr[t=(pi*P+pj), n=(i*WP+j), b*C+c] = x[b, c, i*P+pi, j*P+pj]
    xr = (x_nchw.reshape(B, C, HP, P, WP, P)
          .transpose(3, 5, 2, 4, 0, 1)
          .reshape(PP, N, B * C))
    x4 = jnp.concatenate([xr, xr], axis=-1)                        # (PP, N, 4C): taps for both branches

    # depthwise patch-conv weights, lane layout [sp_b0 | sp_b1 | ch_b0 | ch_b1]
    w_sp_t = p["w_patch_sp"].transpose(1, 2, 0).reshape(PP, C)     # (C,P,P) -> (PP,C)
    w_ch_t = p["w_patch_ch"].transpose(1, 2, 0).reshape(PP, C)
    w4 = jnp.concatenate([jnp.tile(w_sp_t, (1, B)), jnp.tile(w_ch_t, (1, B))], axis=1)   # (PP, 4C)
    b4 = jnp.concatenate([jnp.tile(p["b_patch_sp"], B),
                          jnp.tile(p["b_patch_ch"], B)]).reshape(1, 4 * C)

    # algebraically folded attention projections (removes the R=4 contractions; exact up
    # to softmax invariance to per-row constants), block-diag over (branch, batch)
    m_sp = p["wq_sp"].T @ p["wk_sp"]                               # (C, C)
    m_ch = p["wq_ch"].T @ p["wk_ch"]
    z = jnp.zeros((C, C), jnp.float32)
    m4 = jnp.block([[m_sp, z, z, z],
                    [z, m_sp, z, z],
                    [z, z, m_ch, z],
                    [z, z, z, m_ch]])                              # (4C, 4C)
    v_sp = p["wk_sp"].T @ p["bq_sp"]                               # column-bias term (C,)
    v4 = jnp.concatenate([v_sp, v_sp,
                          jnp.zeros((2 * C,), jnp.float32)]).reshape(1, 4 * C)

    gammas = jnp.stack([p["gamma_sp"], p["gamma_ch"]]).astype(jnp.float32)     # (2,) -> SMEM

    # 3x3 fusion conv taps, transposed (o, i) and block-diagonal over the 2 batches
    wfT9 = p["w_fuse"].transpose(2, 3, 0, 1).reshape(9, C, C)      # [k, o, i]
    zk = jnp.zeros((9, C, C), jnp.float32)
    wf2 = jnp.concatenate([jnp.concatenate([wfT9, zk], axis=2),
                           jnp.concatenate([zk, wfT9], axis=2)], axis=1)       # (9, 2C, 2C)
    bf2 = jnp.tile(p["b_fuse"], B).reshape(B * C, 1)               # (2C, 1) column bias

    # S^T (9N, HW): fused nearest-upsample(x4) + zero-pad(1) + 3x3 im2col selection.
    # S^T[k*N+t, h*W+w] = 1 iff tap k=(dh,dw) at output pixel (h,w) reads token t (0 for pad).
    hh = jnp.arange(H)[:, None]
    ww = jnp.arange(W)[None, :]
    rows = []
    for dh in range(3):
        for dw in range(3):
            h2 = hh + dh - 1
            w2 = ww + dw - 1
            valid = ((h2 >= 0) & (h2 < H) & (w2 >= 0) & (w2 < W)).reshape(1, HW)
            tok = ((jnp.clip(h2, 0, H - 1) // P) * WP
                   + (jnp.clip(w2, 0, W - 1) // P)).reshape(1, HW)
            rows.append((jnp.arange(N)[:, None] == tok) & valid)   # (N, HW)
    st = jnp.concatenate(rows, axis=0).astype(jnp.float32)         # (144, 256) lane-dense

    out = fused_forward_call(x4, xres, w4, b4, m4, v4, gammas, wf2, bf2, st)   # (B*C, HW)
    return out.reshape(B, C, H, W)                                 # already NCHW (free reshape)


# ---------------- pure-JAX reference (mirrors the PyTorch NCHW code path) ----------------
def forward_ref(x, p):
    def patch(xx, w, b):
        y = lax.conv_general_dilated(
            xx, w[:, None, :, :], (P, P), "VALID",
            dimension_numbers=("NCHW", "OIHW", "NCHW"), feature_group_count=C)
        return y + b[None, :, None, None]

    # channel attention (its own patch conv, as in the PyTorch module)
    xpc = patch(x, p["w_patch_ch"], p["b_patch_ch"]).reshape(B, C, -1)   # (B, C, N)
    xpct = jnp.transpose(xpc, (0, 2, 1))                                 # (B, N, C)
    q = jnp.einsum("bnc,rc->bnr", xpct, p["wq_ch"])
    k = jnp.einsum("bnc,rc->bnr", xpct, p["wk_ch"])
    a = jax.nn.softmax(jnp.einsum("bnr,bmr->bnm", q, k), axis=-1)
    out_ch = jnp.einsum("bnm,bmc->bnc", a, xpct)
    out_ch = jnp.transpose(out_ch, (0, 2, 1)).reshape(B, C, HP, WP)
    out_ch = jnp.repeat(jnp.repeat(out_ch, P, axis=2), P, axis=3)
    ch_att = p["gamma_ch"] * out_ch

    # spatial attention (its own patch conv)
    xps = patch(x, p["w_patch_sp"], p["b_patch_sp"]).reshape(B, C, -1)   # (B, C, N)
    qs = jnp.einsum("bcn,rc->brn", xps, p["wq_sp"]) + p["bq_sp"][None, :, None]
    ks = jnp.einsum("bcn,rc->brn", xps, p["wk_sp"]) + p["bk_sp"][None, :, None]
    a_s = jax.nn.softmax(jnp.einsum("brn,brm->bnm", qs, ks), axis=-1)
    out_sp = jnp.einsum("bcm,bmn->bcn", xps, a_s).reshape(B, C, HP, WP)
    out_sp = jnp.repeat(jnp.repeat(out_sp, P, axis=2), P, axis=3)
    sp_att = p["gamma_sp"] * out_sp

    y = sp_att + ch_att
    conv = lax.conv_general_dilated(
        y, p["w_fuse"], (1, 1), "SAME",
        dimension_numbers=("NCHW", "OIHW", "NCHW")) + p["b_fuse"][None, :, None, None]
    return jnp.maximum(conv, 0.0) + x


# ---------------- params (deterministic, synthetic) ----------------
def init_params(key):
    ks = jax.random.split(key, 12)
    s = 0.1
    return {
        "w_patch_sp": s * jax.random.normal(ks[0], (C, P, P), jnp.float32),
        "b_patch_sp": s * jax.random.normal(ks[1], (C,), jnp.float32),
        "w_patch_ch": s * jax.random.normal(ks[2], (C, P, P), jnp.float32),
        "b_patch_ch": s * jax.random.normal(ks[3], (C,), jnp.float32),
        "wq_ch": s * jax.random.normal(ks[4], (R, C), jnp.float32),
        "wk_ch": s * jax.random.normal(ks[5], (R, C), jnp.float32),
        "wq_sp": s * jax.random.normal(ks[6], (R, C), jnp.float32),
        "wk_sp": s * jax.random.normal(ks[7], (R, C), jnp.float32),
        "bq_sp": s * jax.random.normal(ks[8], (R,), jnp.float32),
        "bk_sp": s * jax.random.normal(ks[9], (R,), jnp.float32),
        # NOTE: torch default gamma_init=0.0 would zero both attention branches;
        # use nonzero deterministic values so the attention compute is exercised.
        "gamma_sp": jnp.float32(0.7),
        "gamma_ch": jnp.float32(0.5),
        "w_fuse": s * jax.random.normal(ks[10], (C, C, 3, 3), jnp.float32),
        "b_fuse": s * jax.random.normal(ks[11], (C,), jnp.float32),
    }


if __name__ == "__main__":
    key = jax.random.PRNGKey(0)
    kx, kp = jax.random.split(key)
    x = jax.random.normal(kx, (B, C, H, W), jnp.float32)   # PyTorch NCHW input
    params = init_params(kp)

    out = jax.jit(forward_pallas)(x, params)
    out = jax.block_until_ready(out)

    ref = forward_ref(x, params)
    assert out.shape == (B, C, H, W)
    err = float(jnp.max(jnp.abs(out - ref)))
    assert jnp.allclose(out, ref, atol=1e-4, rtol=1e-4), err

    print("KERNEL_OK")
</pallas_src>

<mosaic_0001>
module attributes {stable_mosaic.version = 11 : i64} {
  func.func @fused_attention_kernel(%arg0: memref<16x16x128xf32, #tpu.memory_space<vmem>>, %arg1: memref<64x256xf32, #tpu.memory_space<vmem>>, %arg2: memref<16x128xf32, #tpu.memory_space<vmem>>, %arg3: memref<1x128xf32, #tpu.memory_space<vmem>>, %arg4: memref<128x128xf32, #tpu.memory_space<vmem>>, %arg5: memref<1x128xf32, #tpu.memory_space<vmem>>, %arg6: memref<2xf32, #tpu.memory_space<smem>>, %arg7: memref<9x64x64xf32, #tpu.memory_space<vmem>>, %arg8: memref<64x1xf32, #tpu.memory_space<vmem>>, %arg9: memref<144x256xf32, #tpu.memory_space<vmem>>, %arg10: memref<64x256xf32, #tpu.memory_space<vmem>>) attributes {dimension_semantics = [], scalar_prefetch = 0 : i64, scratch_operands = 0 : i64, tpu.core_type = #tpu.core_type<tc>} {
    %cst = arith.constant 0.000000e+00 : f32
    %0 = vector.broadcast %cst : f32 to vector<16x128xf32>
    %c0 = arith.constant 0 : index
    %c0_0 = arith.constant 0 : index
    %c0_1 = arith.constant 0 : index
    %1 = vector.load %arg0[%c0, %c0_0, %c0_1] : memref<16x16x128xf32, #tpu.memory_space<vmem>>, vector<1x16x128xf32>
    %2 = vector.shape_cast %1 : vector<1x16x128xf32> to vector<16x128xf32>
    %c0_2 = arith.constant 0 : index
    %c0_3 = arith.constant 0 : index
    %3 = vector.load %arg2[%c0_2, %c0_3] : memref<16x128xf32, #tpu.memory_space<vmem>>, vector<1x128xf32>
    %4 = vector.broadcast %3 : vector<1x128xf32> to vector<16x128xf32>
    %5 = arith.mulf %2, %4 : vector<16x128xf32>
    %6 = arith.addf %0, %5 : vector<16x128xf32>
    %c1 = arith.constant 1 : index
    %c0_4 = arith.constant 0 : index
    %c0_5 = arith.constant 0 : index
    %7 = vector.load %arg0[%c1, %c0_4, %c0_5] : memref<16x16x128xf32, #tpu.memory_space<vmem>>, vector<1x16x128xf32>
    %8 = vector.shape_cast %7 : vector<1x16x128xf32> to vector<16x128xf32>
    %c1_6 = arith.constant 1 : index
    %c0_7 = arith.constant 0 : index
    %9 = vector.load %arg2[%c1_6, %c0_7] : memref<16x128xf32, #tpu.memory_space<vmem>>, vector<1x128xf32>
    %10 = vector.broadcast %9 : vector<1x128xf32> to vector<16x128xf32>
    %11 = arith.mulf %8, %10 : vector<16x128xf32>
    %12 = arith.addf %6, %11 : vector<16x128xf32>
    %c2 = arith.constant 2 : index
    %c0_8 = arith.constant 0 : index
    %c0_9 = arith.constant 0 : index
    %13 = vector.load %arg0[%c2, %c0_8, %c0_9] : memref<16x16x128xf32, #tpu.memory_space<vmem>>, vector<1x16x128xf32>
    %14 = vector.shape_cast %13 : vector<1x16x128xf32> to vector<16x128xf32>
    %c2_10 = arith.constant 2 : index
    %c0_11 = arith.constant 0 : index
    %15 = vector.load %arg2[%c2_10, %c0_11] : memref<16x128xf32, #tpu.memory_space<vmem>>, vector<1x128xf32>
    %16 = vector.broadcast %15 : vector<1x128xf32> to vector<16x128xf32>
    %17 = arith.mulf %14, %16 : vector<16x128xf32>
    %18 = arith.addf %12, %17 : vector<16x128xf32>
    %c3 = arith.constant 3 : index
    %c0_12 = arith.constant 0 : index
    %c0_13 = arith.constant 0 : index
    %19 = vector.load %arg0[%c3, %c0_12, %c0_13] : memref<16x16x128xf32, #tpu.memory_space<vmem>>, vector<1x16x128xf32>
    %20 = vector.shape_cast %19 : vector<1x16x128xf32> to vector<16x128xf32>
    %c3_14 = arith.constant 3 : index
    %c0_15 = arith.constant 0 : index
    %21 = vector.load %arg2[%c3_14, %c0_15] : memref<16x128xf32, #tpu.memory_space<vmem>>, vector<1x128xf32>
    %22 = vector.broadcast %21 : vector<1x128xf32> to vector<16x128xf32>
    %23 = arith.mulf %20, %22 : vector<16x128xf32>
    %24 = arith.addf %18, %23 : vector<16x128xf32>
    %c4 = arith.constant 4 : index
    %c0_16 = arith.constant 0 : index
    %c0_17 = arith.constant 0 : index
    %25 = vector.load %arg0[%c4, %c0_16, %c0_17] : memref<16x16x128xf32, #tpu.memory_space<vmem>>, vector<1x16x128xf32>
    %26 = vector.shape_cast %25 : vector<1x16x128xf32> to vector<16x128xf32>
    %c4_18 = arith.constant 4 : index
    %c0_19 = arith.constant 0 : index
    %27 = vector.load %arg2[%c4_18, %c0_19] : memref<16x128xf32, #tpu.memory_space<vmem>>, vector<1x128xf32>
    %28 = vector.broadcast %27 : vector<1x128xf32> to vector<16x128xf32>
    %29 = arith.mulf %26, %28 : vector<16x128xf32>
    %30 = arith.addf %24, %29 : vector<16x128xf32>
    %c5 = arith.constant 5 : index
    %c0_20 = arith.constant 0 : index
    %c0_21 = arith.constant 0 : index
    %31 = vector.load %arg0[%c5, %c0_20, %c0_21] : memref<16x16x128xf32, #tpu.memory_space<vmem>>, vector<1x16x128xf32>
    %32 = vector.shape_cast %31 : vector<1x16x128xf32> to vector<16x128xf32>
    %c5_22 = arith.constant 5 : index
    %c0_23 = arith.constant 0 : index
    %33 = vector.load %arg2[%c5_22, %c0_23] : memref<16x128xf32, #tpu.memory_space<vmem>>, vector<1x128xf32>
    %34 = vector.broadcast %33 : vector<1x128xf32> to vector<16x128xf32>
    %35 = arith.mulf %32, %34 : vector<16x128xf32>
    %36 = arith.addf %30, %35 : vector<16x128xf32>
    %c6 = arith.constant 6 : index
    %c0_24 = arith.constant 0 : index
    %c0_25 = arith.constant 0 : index
    %37 = vector.load %arg0[%c6, %c0_24, %c0_25] : memref<16x16x128xf32, #tpu.memory_space<vmem>>, vector<1x16x128xf32>
    %38 = vector.shape_cast %37 : vector<1x16x128xf32> to vector<16x128xf32>
    %c6_26 = arith.constant 6 : index
    %c0_27 = arith.constant 0 : index
    %39 = vector.load %arg2[%c6_26, %c0_27] : memref<16x128xf32, #tpu.memory_space<vmem>>, vector<1x128xf32>
    %40 = vector.broadcast %39 : vector<1x128xf32> to vector<16x128xf32>
    %41 = arith.mulf %38, %40 : vector<16x128xf32>
    %42 = arith.addf %36, %41 : vector<16x128xf32>
    %c7 = arith.constant 7 : index
    %c0_28 = arith.constant 0 : index
    %c0_29 = arith.constant 0 : index
    %43 = vector.load %arg0[%c7, %c0_28, %c0_29] : memref<16x16x128xf32, #tpu.memory_space<vmem>>, vector<1x16x128xf32>
    %44 = vector.shape_cast %43 : vector<1x16x128xf32> to vector<16x128xf32>
    %c7_30 = arith.constant 7 : index
    %c0_31 = arith.constant 0 : index
    %45 = vector.load %arg2[%c7_30, %c0_31] : memref<16x128xf32, #tpu.memory_space<vmem>>, vector<1x128xf32>
    %46 = vector.broadcast %45 : vector<1x128xf32> to vector<16x128xf32>
    %47 = arith.mulf %44, %46 : vector<16x128xf32>
    %48 = arith.addf %42, %47 : vector<16x128xf32>
    %c8 = arith.constant 8 : index
    %c0_32 = arith.constant 0 : index
    %c0_33 = arith.constant 0 : index
    %49 = vector.load %arg0[%c8, %c0_32, %c0_33] : memref<16x16x128xf32, #tpu.memory_space<vmem>>, vector<1x16x128xf32>
    %50 = vector.shape_cast %49 : vector<1x16x128xf32> to vector<16x128xf32>
    %c8_34 = arith.constant 8 : index
    %c0_35 = arith.constant 0 : index
    %51 = vector.load %arg2[%c8_34, %c0_35] : memref<16x128xf32, #tpu.memory_space<vmem>>, vector<1x128xf32>
    %52 = vector.broadcast %51 : vector<1x128xf32> to vector<16x128xf32>
    %53 = arith.mulf %50, %52 : vector<16x128xf32>
    %54 = arith.addf %48, %53 : vector<16x128xf32>
    %c9 = arith.constant 9 : index
    %c0_36 = arith.constant 0 : index
    %c0_37 = arith.constant 0 : index
    %55 = vector.load %arg0[%c9, %c0_36, %c0_37] : memref<16x16x128xf32, #tpu.memory_space<vmem>>, vector<1x16x128xf32>
    %56 = vector.shape_cast %55 : vector<1x16x128xf32> to vector<16x128xf32>
    %c9_38 = arith.constant 9 : index
    %c0_39 = arith.constant 0 : index
    %57 = vector.load %arg2[%c9_38, %c0_39] : memref<16x128xf32, #tpu.memory_space<vmem>>, vector<1x128xf32>
    %58 = vector.broadcast %57 : vector<1x128xf32> to vector<16x128xf32>
    %59 = arith.mulf %56, %58 : vector<16x128xf32>
    %60 = arith.addf %54, %59 : vector<16x128xf32>
    %c10 = arith.constant 10 : index
    %c0_40 = arith.constant 0 : index
    %c0_41 = arith.constant 0 : index
    %61 = vector.load %arg0[%c10, %c0_40, %c0_41] : memref<16x16x128xf32, #tpu.memory_space<vmem>>, vector<1x16x128xf32>
    %62 = vector.shape_cast %61 : vector<1x16x128xf32> to vector<16x128xf32>
    %c10_42 = arith.constant 10 : index
    %c0_43 = arith.constant 0 : index
    %63 = vector.load %arg2[%c10_42, %c0_43] : memref<16x128xf32, #tpu.memory_space<vmem>>, vector<1x128xf32>
    %64 = vector.broadcast %63 : vector<1x128xf32> to vector<16x128xf32>
    %65 = arith.mulf %62, %64 : vector<16x128xf32>
    %66 = arith.addf %60, %65 : vector<16x128xf32>
    %c11 = arith.constant 11 : index
    %c0_44 = arith.constant 0 : index
    %c0_45 = arith.constant 0 : index
    %67 = vector.load %arg0[%c11, %c0_44, %c0_45] : memref<16x16x128xf32, #tpu.memory_space<vmem>>, vector<1x16x128xf32>
    %68 = vector.shape_cast %67 : vector<1x16x128xf32> to vector<16x128xf32>
    %c11_46 = arith.constant 11 : index
    %c0_47 = arith.constant 0 : index
    %69 = vector.load %arg2[%c11_46, %c0_47] : memref<16x128xf32, #tpu.memory_space<vmem>>, vector<1x128xf32>
    %70 = vector.broadcast %69 : vector<1x128xf32> to vector<16x128xf32>
    %71 = arith.mulf %68, %70 : vector<16x128xf32>
    %72 = arith.addf %66, %71 : vector<16x128xf32>
    %c12 = arith.constant 12 : index
    %c0_48 = arith.constant 0 : index
    %c0_49 = arith.constant 0 : index
    %73 = vector.load %arg0[%c12, %c0_48, %c0_49] : memref<16x16x128xf32, #tpu.memory_space<vmem>>, vector<1x16x128xf32>
    %74 = vector.shape_cast %73 : vector<1x16x128xf32> to vector<16x128xf32>
    %c12_50 = arith.constant 12 : index
    %c0_51 = arith.constant 0 : index
    %75 = vector.load %arg2[%c12_50, %c0_51] : memref<16x128xf32, #tpu.memory_space<vmem>>, vector<1x128xf32>
    %76 = vector.broadcast %75 : vector<1x128xf32> to vector<16x128xf32>
    %77 = arith.mulf %74, %76 : vector<16x128xf32>
    %78 = arith.addf %72, %77 : vector<16x128xf32>
    %c13 = arith.constant 13 : index
    %c0_52 = arith.constant 0 : index
    %c0_53 = arith.constant 0 : index
    %79 = vector.load %arg0[%c13, %c0_52, %c0_53] : memref<16x16x128xf32, #tpu.memory_space<vmem>>, vector<1x16x128xf32>
    %80 = vector.shape_cast %79 : vector<1x16x128xf32> to vector<16x128xf32>
    %c13_54 = arith.constant 13 : index
    %c0_55 = arith.constant 0 : index
    %81 = vector.load %arg2[%c13_54, %c0_55] : memref<16x128xf32, #tpu.memory_space<vmem>>, vector<1x128xf32>
    %82 = vector.broadcast %81 : vector<1x128xf32> to vector<16x128xf32>
    %83 = arith.mulf %80, %82 : vector<16x128xf32>
    %84 = arith.addf %78, %83 : vector<16x128xf32>
    %c14 = arith.constant 14 : index
    %c0_56 = arith.constant 0 : index
    %c0_57 = arith.constant 0 : index
    %85 = vector.load %arg0[%c14, %c0_56, %c0_57] : memref<16x16x128xf32, #tpu.memory_space<vmem>>, vector<1x16x128xf32>
    %86 = vector.shape_cast %85 : vector<1x16x128xf32> to vector<16x128xf32>
    %c14_58 = arith.constant 14 : index
    %c0_59 = arith.constant 0 : index
    %87 = vector.load %arg2[%c14_58, %c0_59] : memref<16x128xf32, #tpu.memory_space<vmem>>, vector<1x128xf32>
    %88 = vector.broadcast %87 : vector<1x128xf32> to vector<16x128xf32>
    %89 = arith.mulf %86, %88 : vector<16x128xf32>
    %90 = arith.addf %84, %89 : vector<16x128xf32>
    %c15 = arith.constant 15 : index
    %c0_60 = arith.constant 0 : index
    %c0_61 = arith.constant 0 : index
    %91 = vector.load %arg0[%c15, %c0_60, %c0_61] : memref<16x16x128xf32, #tpu.memory_space<vmem>>, vector<1x16x128xf32>
    %92 = vector.shape_cast %91 : vector<1x16x128xf32> to vector<16x128xf32>
    %c15_62 = arith.constant 15 : index
    %c0_63 = arith.constant 0 : index
    %93 = vector.load %arg2[%c15_62, %c0_63] : memref<16x128xf32, #tpu.memory_space<vmem>>, vector<1x128xf32>
    %94 = vector.broadcast %93 : vector<1x128xf32> to vector<16x128xf32>
    %95 = arith.mulf %92, %94 : vector<16x128xf32>
    %96 = arith.addf %90, %95 : vector<16x128xf32>
    %c0_64 = arith.constant 0 : index
    %c0_65 = arith.constant 0 : index
    %97 = vector.load %arg3[%c0_64, %c0_65] : memref<1x128xf32, #tpu.memory_space<vmem>>, vector<1x128xf32>
    %98 = vector.broadcast %97 : vector<1x128xf32> to vector<16x128xf32>
    %99 = arith.addf %96, %98 : vector<16x128xf32>
    %c0_66 = arith.constant 0 : index
    %c0_67 = arith.constant 0 : index
    %100 = vector.load %arg4[%c0_66, %c0_67] : memref<128x128xf32, #tpu.memory_space<vmem>>, vector<128x128xf32>
    %cst_68 = arith.constant dense<0.000000e+00> : vector<16x128xf32>
    %101 = tpu.matmul %99, %100, %cst_68 {dimension_numbers = #tpu.dot_dimension_numbers<[1], [0], [0], [1], [0, 0, 1, 1], [], []>} : vector<16x128xf32>, vector<128x128xf32>, vector<16x128xf32> -> vector<16x128xf32>
    %c0_69 = arith.constant 0 : index
    %c0_70 = arith.constant 0 : index
    %102 = vector.load %arg5[%c0_69, %c0_70] : memref<1x128xf32, #tpu.memory_space<vmem>>, vector<1x128xf32>
    %103 = vector.broadcast %102 : vector<1x128xf32> to vector<16x128xf32>
    %104 = arith.addf %101, %103 : vector<16x128xf32>
    %c0_71 = arith.constant 0 : index
    %105 = memref.load %arg6[%c0_71] : memref<2xf32, #tpu.memory_space<smem>>
    %c1_72 = arith.constant 1 : index
    %106 = memref.load %arg6[%c1_72] : memref<2xf32, #tpu.memory_space<smem>>
    %107 = vector.extract_strided_slice %104 {offsets = [0, 0], sizes = [16, 32], strides = [1, 1]} : vector<16x128xf32> to vector<16x32xf32>
    %108 = vector.extract_strided_slice %99 {offsets = [0, 0], sizes = [16, 32], strides = [1, 1]} : vector<16x128xf32> to vector<16x32xf32>
    %cst_73 = arith.constant dense<0.000000e+00> : vector<16x16xf32>
    %109 = tpu.matmul %107, %108, %cst_73 {dimension_numbers = #tpu.dot_dimension_numbers<[1], [1], [0], [0], [0, 0, 1, 0], [], []>} : vector<16x32xf32>, vector<16x32xf32>, vector<16x16xf32> -> vector<16x16xf32>
    %cst_74 = arith.constant dense<0xFF800000> : vector<16xf32>
    %110 = vector.multi_reduction <maximumf>, %109, %cst_74 [1] : vector<16x16xf32> to vector<16xf32>
    %111 = vector.shape_cast %110 : vector<16xf32> to vector<16x1xf32>
    %112 = vector.broadcast %111 : vector<16x1xf32> to vector<16x16xf32>
    %113 = arith.subf %109, %112 : vector<16x16xf32>
    %114 = math.exp %113 : vector<16x16xf32>
    %cst_75 = arith.constant dense<0.000000e+00> : vector<16xf32>
    %115 = vector.multi_reduction <add>, %114, %cst_75 [1] : vector<16x16xf32> to vector<16xf32>
    %116 = vector.shape_cast %115 : vector<16xf32> to vector<16x1xf32>
    %117 = vector.broadcast %116 : vector<16x1xf32> to vector<16x16xf32>
    %118 = arith.divf %114, %117 : vector<16x16xf32>
    %cst_76 = arith.constant dense<0.000000e+00> : vector<16x32xf32>
    %119 = tpu.matmul %118, %108, %cst_76 {dimension_numbers = #tpu.dot_dimension_numbers<[0], [0], [1], [1], [0, 1, 1, 1], [], []>} : vector<16x16xf32>, vector<16x32xf32>, vector<16x32xf32> -> vector<16x32xf32>
    %120 = vector.extract_strided_slice %104 {offsets = [0, 64], sizes = [16, 32], strides = [1, 1]} : vector<16x128xf32> to vector<16x32xf32>
    %121 = vector.extract_strided_slice %99 {offsets = [0, 64], sizes = [16, 32], strides = [1, 1]} : vector<16x128xf32> to vector<16x32xf32>
    %cst_77 = arith.constant dense<0.000000e+00> : vector<16x16xf32>
    %122 = tpu.matmul %120, %121, %cst_77 {dimension_numbers = #tpu.dot_dimension_numbers<[1], [1], [0], [0], [0, 0, 1, 0], [], []>} : vector<16x32xf32>, vector<16x32xf32>, vector<16x16xf32> -> vector<16x16xf32>
    %cst_78 = arith.constant dense<0xFF800000> : vector<16xf32>
    %123 = vector.multi_reduction <maximumf>, %122, %cst_78 [1] : vector<16x16xf32> to vector<16xf32>
    %124 = vector.shape_cast %123 : vector<16xf32> to vector<16x1xf32>
    %125 = vector.broadcast %124 : vector<16x1xf32> to vector<16x16xf32>
    %126 = arith.subf %122, %125 : vector<16x16xf32>
    %127 = math.exp %126 : vector<16x16xf32>
    %cst_79 = arith.constant dense<0.000000e+00> : vector<16xf32>
    %128 = vector.multi_reduction <add>, %127, %cst_79 [1] : vector<16x16xf32> to vector<16xf32>
    %129 = vector.shape_cast %128 : vector<16xf32> to vector<16x1xf32>
    %130 = vector.broadcast %129 : vector<16x1xf32> to vector<16x16xf32>
    %131 = arith.divf %127, %130 : vector<16x16xf32>
    %cst_80 = arith.constant dense<0.000000e+00> : vector<16x32xf32>
    %132 = tpu.matmul %131, %121, %cst_80 {dimension_numbers = #tpu.dot_dimension_numbers<[1], [0], [0], [1], [0, 0, 1, 1], [], []>} : vector<16x16xf32>, vector<16x32xf32>, vector<16x32xf32> -> vector<16x32xf32>
    %133 = vector.broadcast %105 : f32 to vector<16x32xf32>
    %134 = arith.mulf %133, %119 : vector<16x32xf32>
    %135 = vector.broadcast %106 : f32 to vector<16x32xf32>
    %136 = arith.mulf %135, %132 : vector<16x32xf32>
    %137 = arith.addf %134, %136 : vector<16x32xf32>
    %138 = vector.extract_strided_slice %104 {offsets = [0, 32], sizes = [16, 32], strides = [1, 1]} : vector<16x128xf32> to vector<16x32xf32>
    %139 = vector.extract_strided_slice %99 {offsets = [0, 32], sizes = [16, 32], strides = [1, 1]} : vector<16x128xf32> to vector<16x32xf32>
    %cst_81 = arith.constant dense<0.000000e+00> : vector<16x16xf32>
    %140 = tpu.matmul %138, %139, %cst_81 {dimension_numbers = #tpu.dot_dimension_numbers<[1], [1], [0], [0], [0, 0, 1, 0], [], []>} : vector<16x32xf32>, vector<16x32xf32>, vector<16x16xf32> -> vector<16x16xf32>
    %cst_82 = arith.constant dense<0xFF800000> : vector<16xf32>
    %141 = vector.multi_reduction <maximumf>, %140, %cst_82 [1] : vector<16x16xf32> to vector<16xf32>
    %142 = vector.shape_cast %141 : vector<16xf32> to vector<16x1xf32>
    %143 = vector.broadcast %142 : vector<16x1xf32> to vector<16x16xf32>
    %144 = arith.subf %140, %143 : vector<16x16xf32>
    %145 = math.exp %144 : vector<16x16xf32>
    %cst_83 = arith.constant dense<0.000000e+00> : vector<16xf32>
    %146 = vector.multi_reduction <add>, %145, %cst_83 [1] : vector<16x16xf32> to vector<16xf32>
    %147 = vector.shape_cast %146 : vector<16xf32> to vector<16x1xf32>
    %148 = vector.broadcast %147 : vector<16x1xf32> to vector<16x16xf32>
    %149 = arith.divf %145, %148 : vector<16x16xf32>
    %cst_84 = arith.constant dense<0.000000e+00> : vector<16x32xf32>
    %150 = tpu.matmul %149, %139, %cst_84 {dimension_numbers = #tpu.dot_dimension_numbers<[0], [0], [1], [1], [0, 1, 1, 1], [], []>} : vector<16x16xf32>, vector<16x32xf32>, vector<16x32xf32> -> vector<16x32xf32>
    %151 = vector.extract_strided_slice %104 {offsets = [0, 96], sizes = [16, 32], strides = [1, 1]} : vector<16x128xf32> to vector<16x32xf32>
    %152 = vector.extract_strided_slice %99 {offsets = [0, 96], sizes = [16, 32], strides = [1, 1]} : vector<16x128xf32> to vector<16x32xf32>
    %cst_85 = arith.constant dense<0.000000e+00> : vector<16x16xf32>
    %153 = tpu.matmul %151, %152, %cst_85 {dimension_numbers = #tpu.dot_dimension_numbers<[1], [1], [0], [0], [0, 0, 1, 0], [], []>} : vector<16x32xf32>, vector<16x32xf32>, vector<16x16xf32> -> vector<16x16xf32>
    %cst_86 = arith.constant dense<0xFF800000> : vector<16xf32>
    %154 = vector.multi_reduction <maximumf>, %153, %cst_86 [1] : vector<16x16xf32> to vector<16xf32>
    %155 = vector.shape_cast %154 : vector<16xf32> to vector<16x1xf32>
    %156 = vector.broadcast %155 : vector<16x1xf32> to vector<16x16xf32>
    %157 = arith.subf %153, %156 : vector<16x16xf32>
    %158 = math.exp %157 : vector<16x16xf32>
    %cst_87 = arith.constant dense<0.000000e+00> : vector<16xf32>
    %159 = vector.multi_reduction <add>, %158, %cst_87 [1] : vector<16x16xf32> to vector<16xf32>
    %160 = vector.shape_cast %159 : vector<16xf32> to vector<16x1xf32>
    %161 = vector.broadcast %160 : vector<16x1xf32> to vector<16x16xf32>
    %162 = arith.divf %158, %161 : vector<16x16xf32>
    %cst_88 = arith.constant dense<0.000000e+00> : vector<16x32xf32>
    %163 = tpu.matmul %162, %152, %cst_88 {dimension_numbers = #tpu.dot_dimension_numbers<[1], [0], [0], [1], [0, 0, 1, 1], [], []>} : vector<16x16xf32>, vector<16x32xf32>, vector<16x32xf32> -> vector<16x32xf32>
    %164 = vector.broadcast %105 : f32 to vector<16x32xf32>
    %165 = arith.mulf %164, %150 : vector<16x32xf32>
    %166 = vector.broadcast %106 : f32 to vector<16x32xf32>
    %167 = arith.mulf %166, %163 : vector<16x32xf32>
    %168 = arith.addf %165, %167 : vector<16x32xf32>
    %169 = tpu.concatenate %137, %168 in 1 : vector<16x32xf32>, vector<16x32xf32> -> vector<16x64xf32>
    %c0_89 = arith.constant 0 : index
    %c0_90 = arith.constant 0 : index
    %c0_91 = arith.constant 0 : index
    %170 = vector.load %arg7[%c0_89, %c0_90, %c0_91] : memref<9x64x64xf32, #tpu.memory_space<vmem>>, vector<1x64x64xf32>
    %171 = vector.shape_cast %170 : vector<1x64x64xf32> to vector<64x64xf32>
    %cst_92 = arith.constant dense<0.000000e+00> : vector<64x16xf32>
    %172 = tpu.matmul %171, %169, %cst_92 {dimension_numbers = #tpu.dot_dimension_numbers<[1], [1], [0], [0], [0, 0, 1, 0], [], []>} : vector<64x64xf32>, vector<16x64xf32>, vector<64x16xf32> -> vector<64x16xf32>
    %c1_93 = arith.constant 1 : index
    %c0_94 = arith.constant 0 : index
    %c0_95 = arith.constant 0 : index
    %173 = vector.load %arg7[%c1_93, %c0_94, %c0_95] : memref<9x64x64xf32, #tpu.memory_space<vmem>>, vector<1x64x64xf32>
    %174 = vector.shape_cast %173 : vector<1x64x64xf32> to vector<64x64xf32>
    %cst_96 = arith.constant dense<0.000000e+00> : vector<64x16xf32>
    %175 = tpu.matmul %174, %169, %cst_96 {dimension_numbers = #tpu.dot_dimension_numbers<[1], [1], [0], [0], [0, 0, 1, 0], [], []>} : vector<64x64xf32>, vector<16x64xf32>, vector<64x16xf32> -> vector<64x16xf32>
    %c2_97 = arith.constant 2 : index
    %c0_98 = arith.constant 0 : index
    %c0_99 = arith.constant 0 : index
    %176 = vector.load %arg7[%c2_97, %c0_98, %c0_99] : memref<9x64x64xf32, #tpu.memory_space<vmem>>, vector<1x64x64xf32>
    %177 = vector.shape_cast %176 : vector<1x64x64xf32> to vector<64x64xf32>
    %cst_100 = arith.constant dense<0.000000e+00> : vector<64x16xf32>
    %178 = tpu.matmul %177, %169, %cst_100 {dimension_numbers = #tpu.dot_dimension_numbers<[1], [1], [0], [0], [0, 0, 1, 0], [], []>} : vector<64x64xf32>, vector<16x64xf32>, vector<64x16xf32> -> vector<64x16xf32>
    %c3_101 = arith.constant 3 : index
    %c0_102 = arith.constant 0 : index
    %c0_103 = arith.constant 0 : index
    %179 = vector.load %arg7[%c3_101, %c0_102, %c0_103] : memref<9x64x64xf32, #tpu.memory_space<vmem>>, vector<1x64x64xf32>
    %180 = vector.shape_cast %179 : vector<1x64x64xf32> to vector<64x64xf32>
    %cst_104 = arith.constant dense<0.000000e+00> : vector<64x16xf32>
    %181 = tpu.matmul %180, %169, %cst_104 {dimension_numbers = #tpu.dot_dimension_numbers<[1], [1], [0], [0], [0, 0, 1, 0], [], []>} : vector<64x64xf32>, vector<16x64xf32>, vector<64x16xf32> -> vector<64x16xf32>
    %c4_105 = arith.constant 4 : index
    %c0_106 = arith.constant 0 : index
    %c0_107 = arith.constant 0 : index
    %182 = vector.load %arg7[%c4_105, %c0_106, %c0_107] : memref<9x64x64xf32, #tpu.memory_space<vmem>>, vector<1x64x64xf32>
    %183 = vector.shape_cast %182 : vector<1x64x64xf32> to vector<64x64xf32>
    %cst_108 = arith.constant dense<0.000000e+00> : vector<64x16xf32>
    %184 = tpu.matmul %183, %169, %cst_108 {dimension_numbers = #tpu.dot_dimension_numbers<[1], [1], [0], [0], [0, 0, 1, 0], [], []>} : vector<64x64xf32>, vector<16x64xf32>, vector<64x16xf32> -> vector<64x16xf32>
    %c5_109 = arith.constant 5 : index
    %c0_110 = arith.constant 0 : index
    %c0_111 = arith.constant 0 : index
    %185 = vector.load %arg7[%c5_109, %c0_110, %c0_111] : memref<9x64x64xf32, #tpu.memory_space<vmem>>, vector<1x64x64xf32>
    %186 = vector.shape_cast %185 : vector<1x64x64xf32> to vector<64x64xf32>
    %cst_112 = arith.constant dense<0.000000e+00> : vector<64x16xf32>
    %187 = tpu.matmul %186, %169, %cst_112 {dimension_numbers = #tpu.dot_dimension_numbers<[1], [1], [0], [0], [0, 0, 1, 0], [], []>} : vector<64x64xf32>, vector<16x64xf32>, vector<64x16xf32> -> vector<64x16xf32>
    %c6_113 = arith.constant 6 : index
    %c0_114 = arith.constant 0 : index
    %c0_115 = arith.constant 0 : index
    %188 = vector.load %arg7[%c6_113, %c0_114, %c0_115] : memref<9x64x64xf32, #tpu.memory_space<vmem>>, vector<1x64x64xf32>
    %189 = vector.shape_cast %188 : vector<1x64x64xf32> to vector<64x64xf32>
    %cst_116 = arith.constant dense<0.000000e+00> : vector<64x16xf32>
    %190 = tpu.matmul %189, %169, %cst_116 {dimension_numbers = #tpu.dot_dimension_numbers<[1], [1], [0], [0], [0, 0, 1, 0], [], []>} : vector<64x64xf32>, vector<16x64xf32>, vector<64x16xf32> -> vector<64x16xf32>
    %c7_117 = arith.constant 7 : index
    %c0_118 = arith.constant 0 : index
    %c0_119 = arith.constant 0 : index
    %191 = vector.load %arg7[%c7_117, %c0_118, %c0_119] : memref<9x64x64xf32, #tpu.memory_space<vmem>>, vector<1x64x64xf32>
    %192 = vector.shape_cast %191 : vector<1x64x64xf32> to vector<64x64xf32>
    %cst_120 = arith.constant dense<0.000000e+00> : vector<64x16xf32>
    %193 = tpu.matmul %192, %169, %cst_120 {dimension_numbers = #tpu.dot_dimension_numbers<[1], [1], [0], [0], [0, 0, 1, 0], [], []>} : vector<64x64xf32>, vector<16x64xf32>, vector<64x16xf32> -> vector<64x16xf32>
    %c8_121 = arith.constant 8 : index
    %c0_122 = arith.constant 0 : index
    %c0_123 = arith.constant 0 : index
    %194 = vector.load %arg7[%c8_121, %c0_122, %c0_123] : memref<9x64x64xf32, #tpu.memory_space<vmem>>, vector<1x64x64xf32>
    %195 = vector.shape_cast %194 : vector<1x64x64xf32> to vector<64x64xf32>
    %cst_124 = arith.constant dense<0.000000e+00> : vector<64x16xf32>
    %196 = tpu.matmul %195, %169, %cst_124 {dimension_numbers = #tpu.dot_dimension_numbers<[1], [1], [0], [0], [0, 0, 1, 0], [], []>} : vector<64x64xf32>, vector<16x64xf32>, vector<64x16xf32> -> vector<64x16xf32>
    %197 = tpu.concatenate %172, %175, %178, %181, %184, %187, %190, %193, %196 in 1 : vector<64x16xf32>, vector<64x16xf32>, vector<64x16xf32>, vector<64x16xf32>, vector<64x16xf32>, vector<64x16xf32>, vector<64x16xf32>, vector<64x16xf32>, vector<64x16xf32> -> vector<64x144xf32>
    %c0_125 = arith.constant 0 : index
    %c0_126 = arith.constant 0 : index
    %198 = vector.load %arg9[%c0_125, %c0_126] : memref<144x256xf32, #tpu.memory_space<vmem>>, vector<144x256xf32>
    %cst_127 = arith.constant dense<0.000000e+00> : vector<64x256xf32>
    %199 = tpu.matmul %197, %198, %cst_127 {dimension_numbers = #tpu.dot_dimension_numbers<[1], [0], [0], [1], [0, 0, 1, 1], [], []>} : vector<64x144xf32>, vector<144x256xf32>, vector<64x256xf32> -> vector<64x256xf32>
    %c0_128 = arith.constant 0 : index
    %c0_129 = arith.constant 0 : index
    %200 = vector.load %arg8[%c0_128, %c0_129] : memref<64x1xf32, #tpu.memory_space<vmem>>, vector<64x1xf32>
    %201 = vector.broadcast %200 : vector<64x1xf32> to vector<64x256xf32>
    %202 = arith.addf %199, %201 : vector<64x256xf32>
    %cst_130 = arith.constant 0.000000e+00 : f32
    %203 = vector.broadcast %cst_130 : f32 to vector<64x256xf32>
    %204 = arith.maximumf %202, %203 : vector<64x256xf32>
    %c0_131 = arith.constant 0 : index
    %c0_132 = arith.constant 0 : index
    %205 = vector.load %arg1[%c0_131, %c0_132] : memref<64x256xf32, #tpu.memory_space<vmem>>, vector<64x256xf32>
    %206 = arith.addf %204, %205 : vector<64x256xf32>
    %c0_133 = arith.constant 0 : index
    %c0_134 = arith.constant 0 : index
    %207 = vector.load %arg10[%c0_133, %c0_134] : memref<64x256xf32, #tpu.memory_space<vmem>>, vector<64x256xf32>
    tpu.vector_store %arg10[%c0_133, %c0_134], %206 {strides = array<i32>} : memref<64x256xf32, #tpu.memory_space<vmem>>, vector<64x256xf32>,
    return
  }
}

</mosaic_0001>

<llo_original>
// kernel: tile.44
$region0: #{tile.44}
  #allocation0 [shape = 's32[1]{0}', space=sflag, size = 0x4, scoped, tag = 'scoped memory for tile.44']
  %s0 = inlined_call_operand.vmem [shape: f32[32], index: 0, kind: input, shape index: {}]
  %s1 = inlined_call_operand.vmem [shape: f32[2,32], index: 1, kind: output, shape index: {}]
  // Predicated region
  $region2: #{tile.44} parent=0 // pred_check
    _
  $region3: #{tile.44} parent=0 // pred_check_branch
    %3 = sbr.rel (0) target = $region5
  $region4: #{tile.44} parent=0 // pred_region
    _
  $region5: #{tile.44} parent=0 // pred_fallthru
    _
  %v4 = vld [vmem:[%s0] ss:$0 sm:$0xff]
  %5 = vst [vmem:[%s1] sm:$0x3] %v4

// kernel: tile.40
$region0: #{tile.40}
  %s0 = inlined_call_operand.vmem [shape: f32[2,32], index: 0, kind: input, shape index: {}]
  %s1 = inlined_call_operand.vmem [shape: f32[64], index: 1, kind: output, shape index: {}]
  $region1: #{tile.40} parent=0
    #allocation0 [shape = 'u8[4096]{0}', space=vmem, size = 0x1000, scoped, tag = 'scoped mem for output reshape']
    #allocation1 [shape = 'u8[4096]{0}', space=vmem, size = 0x1000, scoped, tag = 'scoped mem for input reshape']
    %s3 = sshll.u32 1, 2
    %s4 = ssub.s32 %s3, 1
    %v5 = vld [vmem:[%s0] sm:%s4]
    %6 = vst [vmem:[#allocation1] sm:%s4] %v5
    %v7 = vld [vmem:[#allocation1] sm:$0x1]
    %vm8 = vcmask 261120
    %9 = vst.msk [vmem:[#allocation0] sm:$0x1] %vm8, %v7
    %s10 = scalar_lea.vmem [#allocation1], 1
    %v11 = vld [vmem:[%s10] sm:$0x1]
    %12 = vrot.lane.b32.xlu0 %v11, 32
    %v13 = vpop.permute.xlu0 %12
    %vm14 = vcmask 523520
    %15 = vst.msk [vmem:[#allocation0] sm:$0x1] %vm14, %v13
    %s17 = sshll.u32 1, 1
    %s18 = ssub.s32 %s17, 1
    %v20 = vld [vmem:[#allocation0] sm:%s18]
    %s21 = sshll.u32 1, 1
    %s22 = ssub.s32 %s21, 1
    %23 = vst [vmem:[%s1] sm:%s22] %v20

// kernel: tile.30
$region0: #{tile.30}
  %s0 = inlined_call_operand.vmem [shape: f32[16,2,32], index: 0, kind: input, shape index: {}]
  %s1 = inlined_call_operand.vmem [shape: f32[16,64], index: 1, kind: output, shape index: {}]
  $region1: #{tile.30} parent=0
    #allocation0 [shape = 'u8[65536]{0}', space=vmem, size = 0x10000, scoped, tag = 'scoped mem for input reshape']
    %s3 = sshll.u32 1, 2
    %s4 = ssub.s32 %s3, 1
    %s5 = smul.addr 2, 15
    %s6 = scalar_lea.vmem %s0, %s5
    %v7 = vld [vmem:[%s6] sm:%s4]
    %s8 = scalar_lea.vmem [#allocation0], 120
    %9 = vst [vmem:[%s8] sm:%s4] %v7
    %s10 = smul.addr 2, 14
    %s11 = scalar_lea.vmem %s0, %s10
    %v12 = vld [vmem:[%s11] sm:%s4]
    %s13 = scalar_lea.vmem [#allocation0], 112
    %14 = vst [vmem:[%s13] sm:%s4] %v12
    %s15 = smul.addr 2, 13
    %s16 = scalar_lea.vmem %s0, %s15
    %v17 = vld [vmem:[%s16] sm:%s4]
    %s18 = scalar_lea.vmem [#allocation0], 104
    %19 = vst [vmem:[%s18] sm:%s4] %v17
    %s20 = smul.addr 2, 12
    %s21 = scalar_lea.vmem %s0, %s20
    %v22 = vld [vmem:[%s21] sm:%s4]
    %s23 = scalar_lea.vmem [#allocation0], 96
    %24 = vst [vmem:[%s23] sm:%s4] %v22
    %s25 = smul.addr 2, 11
    %s26 = scalar_lea.vmem %s0, %s25
    %v27 = vld [vmem:[%s26] sm:%s4]
    %s28 = scalar_lea.vmem [#allocation0], 88
    %29 = vst [vmem:[%s28] sm:%s4] %v27
    %s30 = smul.addr 2, 10
    %s31 = scalar_lea.vmem %s0, %s30
    %v32 = vld [vmem:[%s31] sm:%s4]
    %s33 = scalar_lea.vmem [#allocation0], 80
    %34 = vst [vmem:[%s33] sm:%s4] %v32
    %s35 = smul.addr 2, 9
    %s36 = scalar_lea.vmem %s0, %s35
    %v37 = vld [vmem:[%s36] sm:%s4]
    %s38 = scalar_lea.vmem [#allocation0], 72
    %39 = vst [vmem:[%s38] sm:%s4] %v37
    %s40 = smul.addr 2, 8
    %s41 = scalar_lea.vmem %s0, %s40
    %v42 = vld [vmem:[%s41] sm:%s4]
    %s43 = scalar_lea.vmem [#allocation0], 64
    %44 = vst [vmem:[%s43] sm:%s4] %v42
    %s45 = smul.addr 2, 7
    %s46 = scalar_lea.vmem %s0, %s45
    %v47 = vld [vmem:[%s46] sm:%s4]
    %s48 = scalar_lea.vmem [#allocation0], 56
    %49 = vst [vmem:[%s48] sm:%s4] %v47
    %s50 = smul.addr 2, 6
    %s51 = scalar_lea.vmem %s0, %s50
    %v52 = vld [vmem:[%s51] sm:%s4]
    %s53 = scalar_lea.vmem [#allocation0], 48
    %54 = vst [vmem:[%s53] sm:%s4] %v52
    %s55 = smul.addr 2, 5
    %s56 = scalar_lea.vmem %s0, %s55
    %v57 = vld [vmem:[%s56] sm:%s4]
    %s58 = scalar_lea.vmem [#allocation0], 40
    %59 = vst [vmem:[%s58] sm:%s4] %v57
    %s60 = smul.addr 2, 4
    %s61 = scalar_lea.vmem %s0, %s60
    %v62 = vld [vmem:[%s61] sm:%s4]
    %s63 = scalar_lea.vmem [#allocation0], 32
    %64 = vst [vmem:[%s63] sm:%s4] %v62
    %s65 = smul.addr 2, 3
    %s66 = scalar_lea.vmem %s0, %s65
    %v67 = vld [vmem:[%s66] sm:%s4]
    %s68 = scalar_lea.vmem [#allocation0], 24
    %69 = vst [vmem:[%s68] sm:%s4] %v67
    %s70 = smul.addr 2, 2
    %s71 = scalar_lea.vmem %s0, %s70
    %v72 = vld [vmem:[%s71] sm:%s4]
    %s73 = scalar_lea.vmem [#allocation0], 16
    %74 = vst [vmem:[%s73] sm:%s4] %v72
    %s75 = scalar_lea.vmem %s0, 2
    %v76 = vld [vmem:[%s75] sm:%s4]
    %s77 = scalar_lea.vmem [#allocation0], 8
    %78 = vst [vmem:[%s77] sm:%s4] %v76
    %v79 = vld [vmem:[%s0] sm:%s4]
    %80 = vst [vmem:[#allocation0] sm:%s4] %v79
    %v81 = vld [vmem:[#allocation0] ss:$8 sm:$0xf]
    %v82 = vld [vmem:[#allocation0] ss:$8 sm:$0xf0]
    %vm83 = vcmask 1047556
    %v84 = vsel %vm83, %v82, %v81
    %vm85 = vcmask 261120
    %86 = vst.msk [vmem:[%s1] sm:$0xff] %vm85, %v84
    %s87 = scalar_lea.vmem [#allocation0], 64
    %v88 = vld [vmem:[%s87] ss:$8 sm:$0xf]
    %s89 = scalar_lea.vmem [#allocation0], 64
    %v90 = vld [vmem:[%s89] ss:$8 sm:$0xf0]
    %vm91 = vcmask 1047556
    %v92 = vsel %vm91, %v90, %v88
    %vm93 = vcmask 261120
    %s94 = scalar_lea.vmem %s1, 8
    %95 = vst.msk [vmem:[%s94] sm:$0xff] %vm93, %v92
    %s96 = scalar_lea.vmem [#allocation0], 1
    %v97 = vld [vmem:[%s96] ss:$8 sm:$0xf]
    %s98 = scalar_lea.vmem [#allocation0], 1
    %v99 = vld [vmem:[%s98] ss:$8 sm:$0xf0]
    %vm100 = vcmask 1047556
    %v101 = vsel %vm100, %v99, %v97
    %102 = vrot.lane.b32.xlu0 %v101, 32
    %v103 = vpop.permute.xlu0 %102
    %vm104 = vcmask 523520
    %105 = vst.msk [vmem:[%s1] sm:$0xff] %vm104, %v103
    %s106 = scalar_lea.vmem [#allocation0], 65
    %v107 = vld [vmem:[%s106] ss:$8 sm:$0xf]
    %s108 = scalar_lea.vmem [#allocation0], 65
    %v109 = vld [vmem:[%s108] ss:$8 sm:$0xf0]
    %vm110 = vcmask 1047556
    %v111 = vsel %vm110, %v109, %v107
    %112 = vrot.lane.b32.xlu0 %v111, 32
    %v113 = vpop.permute.xlu0 %112
    %vm114 = vcmask 523520
    %s115 = scalar_lea.vmem %s1, 8
    %116 = vst.msk [vmem:[%s115] sm:$0xff] %vm114, %v113

// kernel: tile.0
$region0: #{tile.0}
  %s0 = inlined_call_operand.vmem [shape: f32[2,32], index: 0, kind: input, shape index: {}]
  %s1 = inlined_call_operand.vmem [shape: f32[64,1], index: 1, kind: output, shape index: {}]
  $region1: #{tile.0} parent=0
    #allocation0 [shape = 'u8[4096]{0}', space=vmem, size = 0x1000, scoped, tag = 'scoped mem for input reshape']
    %s3 = sshll.u32 1, 2
    %s4 = ssub.s32 %s3, 1
    %v5 = vld [vmem:[%s0] sm:%s4]
    %6 = vst [vmem:[#allocation0] sm:%s4] %v5
    %v7 = vld [vmem:[#allocation0] sm:$0x3]
    %vm8 = vcmask 7168
    %9 = vst.msk [vmem:[%s1] sm:$0x1] %vm8, %v7
    %s10 = scalar_lea.vmem %s1, 31
    %11 = vst.msk [vmem:[%s10] sm:$0x2] %vm8, %v7
    %v12 = vld [vmem:[#allocation0] sm:$0x3]
    %13 = vrot.lane.b32.xlu0 %v12, 127
    %v14 = vpop.permute.xlu0 %13
    %vm15 = vcmask 7168
    %s16 = scalar_lea.vmem %s1, 1
    %17 = vst.msk [vmem:[%s16] sm:$0x1] %vm15, %v14
    %s18 = scalar_lea.vmem %s1, 32
    %19 = vst.msk [vmem:[%s18] sm:$0x2] %vm15, %v14
    %v20 = vld [vmem:[#allocation0] sm:$0x3]
    %21 = vrot.lane.b32.xlu0 %v20, 126
    %v22 = vpop.permute.xlu0 %21
    %vm23 = vcmask 7168
    %s24 = scalar_lea.vmem %s1, 2
    %25 = vst.msk [vmem:[%s24] sm:$0x1] %vm23, %v22
    %s26 = scalar_lea.vmem %s1, 33
    %27 = vst.msk [vmem:[%s26] sm:$0x2] %vm23, %v22
    %v28 = vld [vmem:[#allocation0] sm:$0x3]
    %29 = vrot.lane.b32.xlu0 %v28, 125
    %v30 = vpop.permute.xlu0 %29
    %vm31 = vcmask 7168
    %s32 = scalar_lea.vmem %s1, 3
    %33 = vst.msk [vmem:[%s32] sm:$0x1] %vm31, %v30
    %s34 = scalar_lea.vmem %s1, 34
    %35 = vst.msk [vmem:[%s34] sm:$0x2] %vm31, %v30
    %v36 = vld [vmem:[#allocation0] sm:$0x3]
    %37 = vrot.lane.b32.xlu0 %v36, 124
    %v38 = vpop.permute.xlu0 %37
    %vm39 = vcmask 7168
    %s40 = scalar_lea.vmem %s1, 4
    %41 = vst.msk [vmem:[%s40] sm:$0x1] %vm39, %v38
    %s42 = scalar_lea.vmem %s1, 35
    %43 = vst.msk [vmem:[%s42] sm:$0x2] %vm39, %v38
    %v44 = vld [vmem:[#allocation0] sm:$0x3]
    %45 = vrot.lane.b32.xlu0 %v44, 123
    %v46 = vpop.permute.xlu0 %45
    %vm47 = vcmask 7168
    %s48 = scalar_lea.vmem %s1, 5
    %49 = vst.msk [vmem:[%s48] sm:$0x1] %vm47, %v46
    %s50 = scalar_lea.vmem %s1, 36
    %51 = vst.msk [vmem:[%s50] sm:$0x2] %vm47, %v46
    %v52 = vld [vmem:[#allocation0] sm:$0x3]
    %53 = vrot.lane.b32.xlu0 %v52, 122
    %v54 = vpop.permute.xlu0 %53
    %vm55 = vcmask 7168
    %s56 = scalar_lea.vmem %s1, 6
    %57 = vst.msk [vmem:[%s56] sm:$0x1] %vm55, %v54
    %s58 = scalar_lea.vmem %s1, 37
    %59 = vst.msk [vmem:[%s58] sm:$0x2] %vm55, %v54
    %v60 = vld [vmem:[#allocation0] sm:$0x3]
    %61 = vrot.lane.b32.xlu0 %v60, 121
    %v62 = vpop.permute.xlu0 %61
    %vm63 = vcmask 7168
    %s64 = scalar_lea.vmem %s1, 7
    %65 = vst.msk [vmem:[%s64] sm:$0x1] %vm63, %v62
    %s66 = scalar_lea.vmem %s1, 38
    %67 = vst.msk [vmem:[%s66] sm:$0x2] %vm63, %v62
    %v68 = vld [vmem:[#allocation0] sm:$0x3]
    %69 = vrot.lane.b32.xlu0 %v68, 120
    %v70 = vpop.permute.xlu0 %69
    %vm71 = vcmask 7168
    %s72 = scalar_lea.vmem %s1, 8
    %73 = vst.msk [vmem:[%s72] sm:$0x1] %vm71, %v70
    %s74 = scalar_lea.vmem %s1, 39
    %75 = vst.msk [vmem:[%s74] sm:$0x2] %vm71, %v70
    %v76 = vld [vmem:[#allocation0] sm:$0x3]
    %77 = vrot.lane.b32.xlu0 %v76, 119
    %v78 = vpop.permute.xlu0 %77
    %vm79 = vcmask 7168
    %s80 = scalar_lea.vmem %s1, 9
    %81 = vst.msk [vmem:[%s80] sm:$0x1] %vm79, %v78
    %s82 = scalar_lea.vmem %s1, 40
    %83 = vst.msk [vmem:[%s82] sm:$0x2] %vm79, %v78
    %v84 = vld [vmem:[#allocation0] sm:$0x3]
    %85 = vrot.lane.b32.xlu0 %v84, 118
    %v86 = vpop.permute.xlu0 %85
    %vm87 = vcmask 7168
    %s88 = scalar_lea.vmem %s1, 10
    %89 = vst.msk [vmem:[%s88] sm:$0x1] %vm87, %v86
    %s90 = scalar_lea.vmem %s1, 41
    %91 = vst.msk [vmem:[%s90] sm:$0x2] %vm87, %v86
    %v92 = vld [vmem:[#allocation0] sm:$0x3]
    %93 = vrot.lane.b32.xlu0 %v92, 117
    %v94 = vpop.permute.xlu0 %93
    %vm95 = vcmask 7168
    %s96 = scalar_lea.vmem %s1, 11
    %97 = vst.msk [vmem:[%s96] sm:$0x1] %vm95, %v94
    %s98 = scalar_lea.vmem %s1, 42
    %99 = vst.msk [vmem:[%s98] sm:$0x2] %vm95, %v94
    %v100 = vld [vmem:[#allocation0] sm:$0x3]
    %101 = vrot.lane.b32.xlu0 %v100, 116
    %v102 = vpop.permute.xlu0 %101
    %vm103 = vcmask 7168
    %s104 = scalar_lea.vmem %s1, 12
    %105 = vst.msk [vmem:[%s104] sm:$0x1] %vm103, %v102
    %s106 = scalar_lea.vmem %s1, 43
    %107 = vst.msk [vmem:[%s106] sm:$0x2] %vm103, %v102
    %v108 = vld [vmem:[#allocation0] sm:$0x3]
    %109 = vrot.lane.b32.xlu0 %v108, 115
    %v110 = vpop.permute.xlu0 %109
    %vm111 = vcmask 7168
    %s112 = scalar_lea.vmem %s1, 13
    %113 = vst.msk [vmem:[%s112] sm:$0x1] %vm111, %v110
    %s114 = scalar_lea.vmem %s1, 44
    %115 = vst.msk [vmem:[%s114] sm:$0x2] %vm111, %v110
    %v116 = vld [vmem:[#allocation0] sm:$0x3]
    %117 = vrot.lane.b32.xlu0 %v116, 114
    %v118 = vpop.permute.xlu0 %117
    %vm119 = vcmask 7168
    %s120 = scalar_lea.vmem %s1, 14
    %121 = vst.msk [vmem:[%s120] sm:$0x1] %vm119, %v118
    %s122 = scalar_lea.vmem %s1, 45
    %123 = vst.msk [vmem:[%s122] sm:$0x2] %vm119, %v118
    %v124 = vld [vmem:[#allocation0] sm:$0x3]
    %125 = vrot.lane.b32.xlu0 %v124, 113
    %v126 = vpop.permute.xlu0 %125
    %vm127 = vcmask 7168
    %s128 = scalar_lea.vmem %s1, 15
    %129 = vst.msk [vmem:[%s128] sm:$0x1] %vm127, %v126
    %s130 = scalar_lea.vmem %s1, 46
    %131 = vst.msk [vmem:[%s130] sm:$0x2] %vm127, %v126
    %v132 = vld [vmem:[#allocation0] sm:$0x3]
    %133 = vrot.lane.b32.xlu0 %v132, 112
    %v134 = vpop.permute.xlu0 %133
    %vm135 = vcmask 7168
    %s136 = scalar_lea.vmem %s1, 16
    %137 = vst.msk [vmem:[%s136] sm:$0x1] %vm135, %v134
    %s138 = scalar_lea.vmem %s1, 47
    %139 = vst.msk [vmem:[%s138] sm:$0x2] %vm135, %v134
    %v140 = vld [vmem:[#allocation0] sm:$0x3]
    %141 = vrot.lane.b32.xlu0 %v140, 111
    %v142 = vpop.permute.xlu0 %141
    %vm143 = vcmask 7168
    %s144 = scalar_lea.vmem %s1, 17
    %145 = vst.msk [vmem:[%s144] sm:$0x1] %vm143, %v142
    %s146 = scalar_lea.vmem %s1, 48
    %147 = vst.msk [vmem:[%s146] sm:$0x2] %vm143, %v142
    %v148 = vld [vmem:[#allocation0] sm:$0x3]
    %149 = vrot.lane.b32.xlu0 %v148, 110
    %v150 = vpop.permute.xlu0 %149
    %vm151 = vcmask 7168
    %s152 = scalar_lea.vmem %s1, 18
    %153 = vst.msk [vmem:[%s152] sm:$0x1] %vm151, %v150
    %s154 = scalar_lea.vmem %s1, 49
    %155 = vst.msk [vmem:[%s154] sm:$0x2] %vm151, %v150
    %v156 = vld [vmem:[#allocation0] sm:$0x3]
    %157 = vrot.lane.b32.xlu0 %v156, 109
    %v158 = vpop.permute.xlu0 %157
    %vm159 = vcmask 7168
    %s160 = scalar_lea.vmem %s1, 19
    %161 = vst.msk [vmem:[%s160] sm:$0x1] %vm159, %v158
    %s162 = scalar_lea.vmem %s1, 50
    %163 = vst.msk [vmem:[%s162] sm:$0x2] %vm159, %v158
    %v164 = vld [vmem:[#allocation0] sm:$0x3]
    %165 = vrot.lane.b32.xlu0 %v164, 108
    %v166 = vpop.permute.xlu0 %165
    %vm167 = vcmask 7168
    %s168 = scalar_lea.vmem %s1, 20
    %169 = vst.msk [vmem:[%s168] sm:$0x1] %vm167, %v166
    %s170 = scalar_lea.vmem %s1, 51
    %171 = vst.msk [vmem:[%s170] sm:$0x2] %vm167, %v166
    %v172 = vld [vmem:[#allocation0] sm:$0x3]
    %173 = vrot.lane.b32.xlu0 %v172, 107
    %v174 = vpop.permute.xlu0 %173
    %vm175 = vcmask 7168
    %s176 = scalar_lea.vmem %s1, 21
    %177 = vst.msk [vmem:[%s176] sm:$0x1] %vm175, %v174
    %s178 = scalar_lea.vmem %s1, 52
    %179 = vst.msk [vmem:[%s178] sm:$0x2] %vm175, %v174
    %v180 = vld [vmem:[#allocation0] sm:$0x3]
    %181 = vrot.lane.b32.xlu0 %v180, 106
    %v182 = vpop.permute.xlu0 %181
    %vm183 = vcmask 7168
    %s184 = scalar_lea.vmem %s1, 22
    %185 = vst.msk [vmem:[%s184] sm:$0x1] %vm183, %v182
    %s186 = scalar_lea.vmem %s1, 53
    %187 = vst.msk [vmem:[%s186] sm:$0x2] %vm183, %v182
    %v188 = vld [vmem:[#allocation0] sm:$0x3]
    %189 = vrot.lane.b32.xlu0 %v188, 105
    %v190 = vpop.permute.xlu0 %189
    %vm191 = vcmask 7168
    %s192 = scalar_lea.vmem %s1, 23
    %193 = vst.msk [vmem:[%s192] sm:$0x1] %vm191, %v190
    %s194 = scalar_lea.vmem %s1, 54
    %195 = vst.msk [vmem:[%s194] sm:$0x2] %vm191, %v190
    %v196 = vld [vmem:[#allocation0] sm:$0x3]
    %197 = vrot.lane.b32.xlu0 %v196, 104
    %v198 = vpop.permute.xlu0 %197
    %vm199 = vcmask 7168
    %s200 = scalar_lea.vmem %s1, 24
    %201 = vst.msk [vmem:[%s200] sm:$0x1] %vm199, %v198
    %s202 = scalar_lea.vmem %s1, 55
    %203 = vst.msk [vmem:[%s202] sm:$0x2] %vm199, %v198
    %v204 = vld [vmem:[#allocation0] sm:$0x3]
    %205 = vrot.lane.b32.xlu0 %v204, 103
    %v206 = vpop.permute.xlu0 %205
    %vm207 = vcmask 7168
    %s208 = scalar_lea.vmem %s1, 25
    %209 = vst.msk [vmem:[%s208] sm:$0x1] %vm207, %v206
    %s210 = scalar_lea.vmem %s1, 56
    %211 = vst.msk [vmem:[%s210] sm:$0x2] %vm207, %v206
    %v212 = vld [vmem:[#allocation0] sm:$0x3]
    %213 = vrot.lane.b32.xlu0 %v212, 102
    %v214 = vpop.permute.xlu0 %213
    %vm215 = vcmask 7168
    %s216 = scalar_lea.vmem %s1, 26
    %217 = vst.msk [vmem:[%s216] sm:$0x1] %vm215, %v214
    %s218 = scalar_lea.vmem %s1, 57
    %219 = vst.msk [vmem:[%s218] sm:$0x2] %vm215, %v214
    %v220 = vld [vmem:[#allocation0] sm:$0x3]
    %221 = vrot.lane.b32.xlu0 %v220, 101
    %v222 = vpop.permute.xlu0 %221
    %vm223 = vcmask 7168
    %s224 = scalar_lea.vmem %s1, 27
    %225 = vst.msk [vmem:[%s224] sm:$0x1] %vm223, %v222
    %s226 = scalar_lea.vmem %s1, 58
    %227 = vst.msk [vmem:[%s226] sm:$0x2] %vm223, %v222
    %v228 = vld [vmem:[#allocation0] sm:$0x3]
    %229 = vrot.lane.b32.xlu0 %v228, 100
    %v230 = vpop.permute.xlu0 %229
    %vm231 = vcmask 7168
    %s232 = scalar_lea.vmem %s1, 28
    %233 = vst.msk [vmem:[%s232] sm:$0x1] %vm231, %v230
    %s234 = scalar_lea.vmem %s1, 59
    %235 = vst.msk [vmem:[%s234] sm:$0x2] %vm231, %v230
    %v236 = vld [vmem:[#allocation0] sm:$0x3]
    %237 = vrot.lane.b32.xlu0 %v236, 99
    %v238 = vpop.permute.xlu0 %237
    %vm239 = vcmask 7168
    %s240 = scalar_lea.vmem %s1, 29
    %241 = vst.msk [vmem:[%s240] sm:$0x1] %vm239, %v238
    %s242 = scalar_lea.vmem %s1, 60
    %243 = vst.msk [vmem:[%s242] sm:$0x2] %vm239, %v238
    %v244 = vld [vmem:[#allocation0] sm:$0x3]
    %245 = vrot.lane.b32.xlu0 %v244, 98
    %v246 = vpop.permute.xlu0 %245
    %vm247 = vcmask 7168
    %s248 = scalar_lea.vmem %s1, 30
    %249 = vst.msk [vmem:[%s248] sm:$0x1] %vm247, %v246
    %s250 = scalar_lea.vmem %s1, 61
    %251 = vst.msk [vmem:[%s250] sm:$0x2] %vm247, %v246
    %v252 = vld [vmem:[#allocation0] sm:$0x3]
    %253 = vrot.lane.b32.xlu0 %v252, 97
    %v254 = vpop.permute.xlu0 %253
    %vm255 = vcmask 7168
    %s256 = scalar_lea.vmem %s1, 31
    %257 = vst.msk [vmem:[%s256] sm:$0x1] %vm255, %v254
    %s258 = scalar_lea.vmem %s1, 62
    %259 = vst.msk [vmem:[%s258] sm:$0x2] %vm255, %v254

// kernel: forward_pallas.1
$region0: #{forward_pallas.1}
  #allocation0 [shape = 'u32[]', space=smem, size = 0x4, offset = 0x4, fixed_abs, tag = 'smem constant byte address 0x4 - core index']
  #allocation1 [shape = 'u32[144,128]{1,0:T(1,128)}', space=vmem, size = 0x12000, scoped, tag = 'internal scratch']
  %s0 = inlined_call_operand.vmem [shape: f32[16,16,128], index: 0, kind: input, shape index: {}]
  %s1 = inlined_call_operand.vmem [shape: f32[64,256], index: 1, kind: input, shape index: {}]
  %s2 = inlined_call_operand.vmem [shape: f32[16,128], index: 2, kind: input, shape index: {}]
  %s3 = inlined_call_operand.vmem [shape: f32[1,128], index: 3, kind: input, shape index: {}]
  %s4 = inlined_call_operand.vmem [shape: f32[128,128], index: 4, kind: input, shape index: {}]
  %s5 = inlined_call_operand.vmem [shape: f32[1,128], index: 5, kind: input, shape index: {}]
  %s6 = inlined_call_operand.vmem [shape: f32[2], index: 6, kind: input, shape index: {}]
  %s7 = inlined_call_operand.vmem [shape: f32[9,64,64], index: 7, kind: input, shape index: {}]
  %s8 = inlined_call_operand.vmem [shape: f32[64,1], index: 8, kind: input, shape index: {}]
  %s9 = inlined_call_operand.vmem [shape: f32[144,256], index: 9, kind: input, shape index: {}]
  %s10 = inlined_call_operand.vmem [shape: f32[64,256], index: 10, kind: output, shape index: {}]
  %s11 = sld [smem:[#allocation0]]
  $region54: #{forward_pallas.1} parent=0
    _
  %s13 = ssub.s32 1, %s11
  %s14 = scalar_select 0, %s13, %s11
  $region1: #{forward_pallas.1} parent=0
    #allocation2 [shape = 'u8[512]{0}', space=smem, size = 0x200, scoped, tag = 'input window, operand 6, single buffered']
    #allocation3 [shape = 's32[1]{0}', space=sflag, size = 0x4, scoped, tag = 'scoped memory for forward_pallas.1']
    %15 = vsyncpa [#allocation3], 0
    // Predicated region
    $region2: #{forward_pallas.1} parent=1 // pred_check
      _
    $region3: #{forward_pallas.1} parent=1 // pred_check_branch
      %17 = sbr.rel (0) target = $region5
    $region4: #{forward_pallas.1} parent=1 // pred_region
      _
    $region5: #{forward_pallas.1} parent=1 // pred_fallthru
      _
    // Predicated region
    $region6: #{forward_pallas.1} parent=1 // pred_check
      _
    $region7: #{forward_pallas.1} parent=1 // pred_check_branch
      %19 = sbr.rel (0) target = $region9
    $region8: #{forward_pallas.1} parent=1 // pred_region
      _
    $region9: #{forward_pallas.1} parent=1 // pred_fallthru
      _
    // Predicated region
    $region10: #{forward_pallas.1} parent=1 // pred_check
      _
    $region11: #{forward_pallas.1} parent=1 // pred_check_branch
      %21 = sbr.rel (0) target = $region13
    $region12: #{forward_pallas.1} parent=1 // pred_region
      _
    $region13: #{forward_pallas.1} parent=1 // pred_fallthru
      _
    // Predicated region
    $region14: #{forward_pallas.1} parent=1 // pred_check
      _
    $region15: #{forward_pallas.1} parent=1 // pred_check_branch
      %23 = sbr.rel (0) target = $region17
    $region16: #{forward_pallas.1} parent=1 // pred_region
      _
    $region17: #{forward_pallas.1} parent=1 // pred_fallthru
      _
    // Predicated region
    $region18: #{forward_pallas.1} parent=1 // pred_check
      _
    $region19: #{forward_pallas.1} parent=1 // pred_check_branch
      %25 = sbr.rel (0) target = $region21
    $region20: #{forward_pallas.1} parent=1 // pred_region
      _
    $region21: #{forward_pallas.1} parent=1 // pred_fallthru
      _
    // Predicated region
    $region22: #{forward_pallas.1} parent=1 // pred_check
      _
    $region23: #{forward_pallas.1} parent=1 // pred_check_branch
      %27 = sbr.rel (0) target = $region25
    $region24: #{forward_pallas.1} parent=1 // pred_region
      _
    $region25: #{forward_pallas.1} parent=1 // pred_fallthru
      _
    // Predicated region
    $region26: #{forward_pallas.1} parent=1 // pred_check
      _
    $region27: #{forward_pallas.1} parent=1 // pred_check_branch
      %29 = sbr.rel (0) target = $region29
    $region28: #{forward_pallas.1} parent=1 // pred_region
      %s31 = ssub.s32 16, 16
      %32 = vsyncadd [#allocation3], %s31
      %s34 = sshll.u32 %s6, 4
      %s35 = int_to_ptr.vmem [resolvable:$true] %s34
      %37 = dma.vmem_to_smem %s35, 16, [#allocation2], [#allocation3]
    $region29: #{forward_pallas.1} parent=1 // pred_fallthru
      _
    // Predicated region
    $region30: #{forward_pallas.1} parent=1 // pred_check
      _
    $region31: #{forward_pallas.1} parent=1 // pred_check_branch
      %39 = sbr.rel (0) target = $region33
    $region32: #{forward_pallas.1} parent=1 // pred_region
      _
    $region33: #{forward_pallas.1} parent=1 // pred_fallthru
      _
    // Predicated region
    $region34: #{forward_pallas.1} parent=1 // pred_check
      _
    $region35: #{forward_pallas.1} parent=1 // pred_check_branch
      %41 = sbr.rel (0) target = $region37
    $region36: #{forward_pallas.1} parent=1 // pred_region
      _
    $region37: #{forward_pallas.1} parent=1 // pred_fallthru
      _
    // Predicated region
    $region38: #{forward_pallas.1} parent=1 // pred_check
      _
    $region39: #{forward_pallas.1} parent=1 // pred_check_branch
      %43 = sbr.rel (0) target = $region41
    $region40: #{forward_pallas.1} parent=1 // pred_region
      _
    $region41: #{forward_pallas.1} parent=1 // pred_fallthru
      _
    // Predicated region
    $region42: #{forward_pallas.1} parent=1 // pred_check
      _
    $region43: #{forward_pallas.1} parent=1 // pred_check_branch
      %45 = sbr.rel (0) target = $region45
    $region44: #{forward_pallas.1} parent=1 // pred_region
      %46 = dma.done [#allocation3], 16
    $region45: #{forward_pallas.1} parent=1 // pred_fallthru
      _
    %47 = sfence
    %v48 = vld [vmem:[%s0] sm:$0xff]
    %v49 = vld [vmem:[%s0 + $0x8] sm:$0xff]
    %v50 = vld [vmem:[%s2] sm:$0x1]
    %v51 = vlaneseq
    %v52 = vshrl.u32 %v51, 7
    %v53 = vsub.s32 0, %v52
    %v54 = vrot.slane %v50, %v53
    %v55 = vmul.f32 %v48, %v54
    %v56 = vmul.f32 %v49, %v54
    %v57 = vadd.f32 %v55, 0.0
    %v58 = vadd.f32 %v56, 0.0
    %s59 = scalar_lea.vmem %s0, 16
    %v60 = vld [vmem:[%s59] sm:$0xff]
    %v61 = vld [vmem:[%s59 + $0x8] sm:$0xff]
    %v62 = vld [vmem:[%s2 + $0x1] sm:$0x1]
    %v63 = vlaneseq
    %v64 = vshrl.u32 %v63, 7
    %v65 = vsub.s32 0, %v64
    %v66 = vrot.slane %v62, %v65
    %v67 = vmul.f32 %v60, %v66
    %v68 = vmul.f32 %v61, %v66
    %v69 = vadd.f32 %v57, %v67
    %v70 = vadd.f32 %v58, %v68
    %s71 = scalar_lea.vmem %s0, 32
    %v72 = vld [vmem:[%s71] sm:$0xff]
    %v73 = vld [vmem:[%s71 + $0x8] sm:$0xff]
    %v74 = vld [vmem:[%s2 + $0x2] sm:$0x1]
    %v75 = vlaneseq
    %v76 = vshrl.u32 %v75, 7
    %v77 = vsub.s32 0, %v76
    %v78 = vrot.slane %v74, %v77
    %v79 = vmul.f32 %v72, %v78
    %v80 = vmul.f32 %v73, %v78
    %v81 = vadd.f32 %v69, %v79
    %v82 = vadd.f32 %v70, %v80
    %s83 = scalar_lea.vmem %s0, 48
    %v84 = vld [vmem:[%s83] sm:$0xff]
    %v85 = vld [vmem:[%s83 + $0x8] sm:$0xff]
    %v86 = vld [vmem:[%s2 + $0x3] sm:$0x1]
    %v87 = vlaneseq
    %v88 = vshrl.u32 %v87, 7
    %v89 = vsub.s32 0, %v88
    %v90 = vrot.slane %v86, %v89
    %v91 = vmul.f32 %v84, %v90
    %v92 = vmul.f32 %v85, %v90
    %v93 = vadd.f32 %v81, %v91
    %v94 = vadd.f32 %v82, %v92
    %s95 = scalar_lea.vmem %s0, 64
    %v96 = vld [vmem:[%s95] sm:$0xff]
    %v97 = vld [vmem:[%s95 + $0x8] sm:$0xff]
    %v98 = vld [vmem:[%s2 + $0x4] sm:$0x1]
    %v99 = vlaneseq
    %v100 = vshrl.u32 %v99, 7
    %v101 = vsub.s32 0, %v100
    %v102 = vrot.slane %v98, %v101
    %v103 = vmul.f32 %v96, %v102
    %v104 = vmul.f32 %v97, %v102
    %v105 = vadd.f32 %v93, %v103
    %v106 = vadd.f32 %v94, %v104
    %s107 = scalar_lea.vmem %s0, 80
    %v108 = vld [vmem:[%s107] sm:$0xff]
    %v109 = vld [vmem:[%s107 + $0x8] sm:$0xff]
    %v110 = vld [vmem:[%s2 + $0x5] sm:$0x1]
    %v111 = vlaneseq
    %v112 = vshrl.u32 %v111, 7
    %v113 = vsub.s32 0, %v112
    %v114 = vrot.slane %v110, %v113
    %v115 = vmul.f32 %v108, %v114
    %v116 = vmul.f32 %v109, %v114
    %v117 = vadd.f32 %v105, %v115
    %v118 = vadd.f32 %v106, %v116
    %s119 = scalar_lea.vmem %s0, 96
    %v120 = vld [vmem:[%s119] sm:$0xff]
    %v121 = vld [vmem:[%s119 + $0x8] sm:$0xff]
    %v122 = vld [vmem:[%s2 + $0x6] sm:$0x1]
    %v123 = vlaneseq
    %v124 = vshrl.u32 %v123, 7
    %v125 = vsub.s32 0, %v124
    %v126 = vrot.slane %v122, %v125
    %v127 = vmul.f32 %v120, %v126
    %v128 = vmul.f32 %v121, %v126
    %v129 = vadd.f32 %v117, %v127
    %v130 = vadd.f32 %v118, %v128
    %s131 = scalar_lea.vmem %s0, 112
    %v132 = vld [vmem:[%s131] sm:$0xff]
    %v133 = vld [vmem:[%s131 + $0x8] sm:$0xff]
    %v134 = vld [vmem:[%s2 + $0x7] sm:$0x1]
    %v135 = vlaneseq
    %v136 = vshrl.u32 %v135, 7
    %v137 = vsub.s32 0, %v136
    %v138 = vrot.slane %v134, %v137
    %v139 = vmul.f32 %v132, %v138
    %v140 = vmul.f32 %v133, %v138
    %v141 = vadd.f32 %v129, %v139
    %v142 = vadd.f32 %v130, %v140
    %s143 = scalar_lea.vmem %s0, 128
    %v144 = vld [vmem:[%s143] sm:$0xff]
    %v145 = vld [vmem:[%s143 + $0x8] sm:$0xff]
    %v146 = vld [vmem:[%s2 + $0x8] sm:$0x1]
    %v147 = vlaneseq
    %v148 = vshrl.u32 %v147, 7
    %v149 = vsub.s32 0, %v148
    %v150 = vrot.slane %v146, %v149
    %v151 = vmul.f32 %v144, %v150
    %v152 = vmul.f32 %v145, %v150
    %v153 = vadd.f32 %v141, %v151
    %v154 = vadd.f32 %v142, %v152
    %s155 = scalar_lea.vmem %s0, 144
    %v156 = vld [vmem:[%s155] sm:$0xff]
    %v157 = vld [vmem:[%s155 + $0x8] sm:$0xff]
    %v158 = vld [vmem:[%s2 + $0x9] sm:$0x1]
    %v159 = vlaneseq
    %v160 = vshrl.u32 %v159, 7
    %v161 = vsub.s32 0, %v160
    %v162 = vrot.slane %v158, %v161
    %v163 = vmul.f32 %v156, %v162
    %v164 = vmul.f32 %v157, %v162
    %v165 = vadd.f32 %v153, %v163
    %v166 = vadd.f32 %v154, %v164
    %s167 = scalar_lea.vmem %s0, 160
    %v168 = vld [vmem:[%s167] sm:$0xff]
    %v169 = vld [vmem:[%s167 + $0x8] sm:$0xff]
    %v170 = vld [vmem:[%s2 + $0xa] sm:$0x1]
    %v171 = vlaneseq
    %v172 = vshrl.u32 %v171, 7
    %v173 = vsub.s32 0, %v172
    %v174 = vrot.slane %v170, %v173
    %v175 = vmul.f32 %v168, %v174
    %v176 = vmul.f32 %v169, %v174
    %v177 = vadd.f32 %v165, %v175
    %v178 = vadd.f32 %v166, %v176
    %s179 = scalar_lea.vmem %s0, 176
    %v180 = vld [vmem:[%s179] sm:$0xff]
    %v181 = vld [vmem:[%s179 + $0x8] sm:$0xff]
    %v182 = vld [vmem:[%s2 + $0xb] sm:$0x1]
    %v183 = vlaneseq
    %v184 = vshrl.u32 %v183, 7
    %v185 = vsub.s32 0, %v184
    %v186 = vrot.slane %v182, %v185
    %v187 = vmul.f32 %v180, %v186
    %v188 = vmul.f32 %v181, %v186
    %v189 = vadd.f32 %v177, %v187
    %v190 = vadd.f32 %v178, %v188
    %s191 = scalar_lea.vmem %s0, 192
    %v192 = vld [vmem:[%s191] sm:$0xff]
    %v193 = vld [vmem:[%s191 + $0x8] sm:$0xff]
    %v194 = vld [vmem:[%s2 + $0xc] sm:$0x1]
    %v195 = vlaneseq
    %v196 = vshrl.u32 %v195, 7
    %v197 = vsub.s32 0, %v196
    %v198 = vrot.slane %v194, %v197
    %v199 = vmul.f32 %v192, %v198
    %v200 = vmul.f32 %v193, %v198
    %v201 = vadd.f32 %v189, %v199
    %v202 = vadd.f32 %v190, %v200
    %s203 = scalar_lea.vmem %s0, 208
    %v204 = vld [vmem:[%s203] sm:$0xff]
    %v205 = vld [vmem:[%s203 + $0x8] sm:$0xff]
    %v206 = vld [vmem:[%s2 + $0xd] sm:$0x1]
    %v207 = vlaneseq
    %v208 = vshrl.u32 %v207, 7
    %v209 = vsub.s32 0, %v208
    %v210 = vrot.slane %v206, %v209
    %v211 = vmul.f32 %v204, %v210
    %v212 = vmul.f32 %v205, %v210
    %v213 = vadd.f32 %v201, %v211
    %v214 = vadd.f32 %v202, %v212
    %s215 = scalar_lea.vmem %s0, 224
    %v216 = vld [vmem:[%s215] sm:$0xff]
    %v217 = vld [vmem:[%s215 + $0x8] sm:$0xff]
    %v218 = vld [vmem:[%s2 + $0xe] sm:$0x1]
    %v219 = vlaneseq
    %v220 = vshrl.u32 %v219, 7
    %v221 = vsub.s32 0, %v220
    %v222 = vrot.slane %v218, %v221
    %v223 = vmul.f32 %v216, %v222
    %v224 = vmul.f32 %v217, %v222
    %v225 = vadd.f32 %v213, %v223
    %v226 = vadd.f32 %v214, %v224
    %s227 = scalar_lea.vmem %s0, 240
    %v228 = vld [vmem:[%s227] sm:$0xff]
    %v229 = vld [vmem:[%s227 + $0x8] sm:$0xff]
    %v230 = vld [vmem:[%s2 + $0xf] sm:$0x1]
    %v231 = vlaneseq
    %v232 = vshrl.u32 %v231, 7
    %v233 = vsub.s32 0, %v232
    %v234 = vrot.slane %v230, %v233
    %v235 = vmul.f32 %v228, %v234
    %v236 = vmul.f32 %v229, %v234
    %v237 = vadd.f32 %v225, %v235
    %v238 = vadd.f32 %v226, %v236
    %v239 = vld [vmem:[%s3] sm:$0x1]
    %v241 = vlaneseq
    %v242 = vshrl.u32 %v241, 7
    %v243 = vsub.s32 0, %v242
    %v244 = vrot.slane %v239, %v243
    %v246 = vadd.f32 %v237, %v244
    %v247 = vadd.f32 %v238, %v244
    %v248 = vld [vmem:[%s4] sm:$0xff]
    %v249 = vld [vmem:[%s4 + $0x8] sm:$0xff]
    %v250 = vld [vmem:[%s4 + $0x10] sm:$0xff]
    %v251 = vld [vmem:[%s4 + $0x18] sm:$0xff]
    %v252 = vld [vmem:[%s4 + $0x20] sm:$0xff]
    %v253 = vld [vmem:[%s4 + $0x28] sm:$0xff]
    %v254 = vld [vmem:[%s4 + $0x30] sm:$0xff]
    %v255 = vld [vmem:[%s4 + $0x38] sm:$0xff]
    %v256 = vld [vmem:[%s4 + $0x40] sm:$0xff]
    %v257 = vld [vmem:[%s4 + $0x48] sm:$0xff]
    %v258 = vld [vmem:[%s4 + $0x50] sm:$0xff]
    %v259 = vld [vmem:[%s4 + $0x58] sm:$0xff]
    %v260 = vld [vmem:[%s4 + $0x60] sm:$0xff]
    %v261 = vld [vmem:[%s4 + $0x68] sm:$0xff]
    %v262 = vld [vmem:[%s4 + $0x70] sm:$0xff]
    %v263 = vld [vmem:[%s4 + $0x78] sm:$0xff]
    %v264 = vld [vmem:[%s5] sm:$0x1]
    %v266 = vlaneseq
    %v267 = vshrl.u32 %v266, 7
    %v268 = vsub.s32 0, %v267
    %v269 = vrot.slane %v264, %v268
    %271 = vmatprep.subr.mxu0 0.0
    %272 = vmatpush1.msra.mxu0 %v263
    %273 = vmatprep.subr.mxu0 0.0
    %274 = vmatpush1.msra.mxu0 %v262
    %275 = vmatprep.subr.mxu0 0.0
    %276 = vmatpush1.msra.mxu0 %v261
    %277 = vmatprep.subr.mxu0 0.0
    %278 = vmatpush1.msra.mxu0 %v260
    %279 = vmatprep.subr.mxu0 0.0
    %280 = vmatpush1.msra.mxu0 %v259
    %281 = vmatprep.subr.mxu0 0.0
    %282 = vmatpush1.msra.mxu0 %v258
    %283 = vmatprep.subr.mxu0 0.0
    %284 = vmatpush1.msra.mxu0 %v257
    %285 = vmatprep.subr.mxu0 0.0
    %286 = vmatpush1.msra.mxu0 %v256
    %287 = vmatprep.subr.mxu0 0.0
    %288 = vmatpush1.msra.mxu0 %v255
    %289 = vmatprep.subr.mxu0 0.0
    %290 = vmatpush1.msra.mxu0 %v254
    %291 = vmatprep.subr.mxu0 0.0
    %292 = vmatpush1.msra.mxu0 %v253
    %293 = vmatprep.subr.mxu0 0.0
    %294 = vmatpush1.msra.mxu0 %v252
    %295 = vmatprep.subr.mxu0 0.0
    %296 = vmatpush1.msra.mxu0 %v251
    %297 = vmatprep.subr.mxu0 0.0
    %298 = vmatpush1.msra.mxu0 %v250
    %299 = vmatprep.subr.mxu0 0.0
    %300 = vmatpush1.msra.mxu0 %v249
    %301 = vmatprep.subr.mxu0 0.0
    %302 = vmatpush1.msra.mxu0 %v248
    %303 = vmatprep.subr.mxu0 0.0
    %304 = vmatpush2.msra.mxu0 0.0
    %305 = vmatprep.subr.mxu0 0.0
    %306 = vmatpush2.msra.mxu0 0.0
    %307 = vmatprep.subr.mxu0 0.0
    %308 = vmatpush2.msra.mxu0 0.0
    %309 = vmatprep.subr.mxu0 0.0
    %310 = vmatpush2.msra.mxu0 0.0
    %311 = vmatprep.subr.mxu0 0.0
    %312 = vmatpush2.msra.mxu0 0.0
    %313 = vmatprep.subr.mxu0 0.0
    %314 = vmatpush2.msra.mxu0 0.0
    %315 = vmatprep.subr.mxu0 0.0
    %316 = vmatpush2.msra.mxu0 0.0
    %317 = vmatprep.subr.mxu0 0.0
    %318 = vmatpush2.msra.mxu0 0.0
    %319 = vmatprep.subr.mxu0 0.0
    %320 = vmatpush2.msra.mxu0 0.0
    %321 = vmatprep.subr.mxu0 0.0
    %322 = vmatpush2.msra.mxu0 0.0
    %323 = vmatprep.subr.mxu0 0.0
    %324 = vmatpush2.msra.mxu0 0.0
    %325 = vmatprep.subr.mxu0 0.0
    %326 = vmatpush2.msra.mxu0 0.0
    %327 = vmatprep.subr.mxu0 0.0
    %328 = vmatpush2.msra.mxu0 0.0
    %329 = vmatprep.subr.mxu0 0.0
    %330 = vmatpush2.msra.mxu0 0.0
    %331 = vmatprep.subr.mxu0 0.0
    %332 = vmatpush2.msra.mxu0 0.0
    %333 = vmatprep.subr.mxu0 0.0
    %334 = vmatpush2.msra.mxu0 0.0
    %335 = vmatprep.mubr.f32.mxu0 0.0
    %336 = vmatmul.mubr.f32.gmra.mxu0 %v246
    %v337 = vpop.f32.mrf.mxu0
    %v338 = vadd.f32 %v269, %v337
    %v339 = vpop.f32.mrf.mxu0
    %340 = vmatprep.mubr.f32.mxu0 0.0
    %341 = vmatmul.mubr.f32.gmra.mxu0 %v247
    %v342 = vpop.f32.mrf.mxu0
    %v343 = vadd.f32 %v269, %v342
    %v344 = vpop.f32.mrf.mxu0
    %345 = vdwg.mxu0
    %s346 = sld [smem:[#allocation2]]
    %s347 = sld [smem:[#allocation2 + $0x1]]
    %vm348 = vcmask 261120
    %v350 = vsel %vm348, %v338, 0
    %v353 = vsel %vm348, %v343, 0
    %v356 = vsel %vm348, %v246, 0
    %v359 = vsel %vm348, %v247, 0
    %361 = vmatprep.subr.mxu0 0.0
    %362 = vmatpush1.xpose.msra.mxu0 0.0
    %363 = vmatprep.subr.mxu0 0.0
    %364 = vmatpush1.xpose.msra.mxu0 0.0
    %365 = vmatprep.subr.mxu0 0.0
    %366 = vmatpush1.xpose.msra.mxu0 0.0
    %367 = vmatprep.subr.mxu0 0.0
    %368 = vmatpush1.xpose.msra.mxu0 0.0
    %369 = vmatprep.subr.mxu0 0.0
    %370 = vmatpush1.xpose.msra.mxu0 0.0
    %371 = vmatprep.subr.mxu0 0.0
    %372 = vmatpush1.xpose.msra.mxu0 0.0
    %373 = vmatprep.subr.mxu0 0.0
    %374 = vmatpush1.xpose.msra.mxu0 0.0
    %375 = vmatprep.subr.mxu0 0.0
    %376 = vmatpush1.xpose.msra.mxu0 0.0
    %377 = vmatprep.subr.mxu0 0.0
    %378 = vmatpush1.xpose.msra.mxu0 0.0
    %379 = vmatprep.subr.mxu0 0.0
    %380 = vmatpush1.xpose.msra.mxu0 0.0
    %381 = vmatprep.subr.mxu0 0.0
    %382 = vmatpush1.xpose.msra.mxu0 0.0
    %383 = vmatprep.subr.mxu0 0.0
    %384 = vmatpush1.xpose.msra.mxu0 0.0
    %385 = vmatprep.subr.mxu0 0.0
    %386 = vmatpush1.xpose.msra.mxu0 0.0
    %387 = vmatprep.subr.mxu0 0.0
    %388 = vmatpush1.xpose.msra.mxu0 0.0
    %389 = vmatprep.subr.mxu0 0.0
    %390 = vmatpush1.xpose.msra.mxu0 %v359
    %391 = vmatprep.subr.mxu0 0.0
    %392 = vmatpush1.xpose.msra.mxu0 %v356
    %393 = vmatprep.subr.mxu0 0.0
    %394 = vmatpush2.xpose.msra.mxu0 0.0
    %395 = vmatprep.subr.mxu0 0.0
    %396 = vmatpush2.xpose.msra.mxu0 0.0
    %397 = vmatprep.subr.mxu0 0.0
    %398 = vmatpush2.xpose.msra.mxu0 0.0
    %399 = vmatprep.subr.mxu0 0.0
    %400 = vmatpush2.xpose.msra.mxu0 0.0
    %401 = vmatprep.subr.mxu0 0.0
    %402 = vmatpush2.xpose.msra.mxu0 0.0
    %403 = vmatprep.subr.mxu0 0.0
    %404 = vmatpush2.xpose.msra.mxu0 0.0
    %405 = vmatprep.subr.mxu0 0.0
    %406 = vmatpush2.xpose.msra.mxu0 0.0
    %407 = vmatprep.subr.mxu0 0.0
    %408 = vmatpush2.xpose.msra.mxu0 0.0
    %409 = vmatprep.subr.mxu0 0.0
    %410 = vmatpush2.xpose.msra.mxu0 0.0
    %411 = vmatprep.subr.mxu0 0.0
    %412 = vmatpush2.xpose.msra.mxu0 0.0
    %413 = vmatprep.subr.mxu0 0.0
    %414 = vmatpush2.xpose.msra.mxu0 0.0
    %415 = vmatprep.subr.mxu0 0.0
    %416 = vmatpush2.xpose.msra.mxu0 0.0
    %417 = vmatprep.subr.mxu0 0.0
    %418 = vmatpush2.xpose.msra.mxu0 0.0
    %419 = vmatprep.subr.mxu0 0.0
    %420 = vmatpush2.xpose.msra.mxu0 0.0
    %421 = vmatprep.subr.mxu0 0.0
    %422 = vmatpush2.xpose.msra.mxu0 0.0
    %423 = vmatprep.subr.mxu0 0.0
    %424 = vmatpush2.xpose.msra.mxu0 0.0
    %425 = vmatprep.mubr.f32.mxu0 0.0
    %426 = vmatmul.mubr.f32.gmra.mxu0 %v350
    %v427 = vpop.f32.mrf.mxu0
    %v428 = vadd.f32 0.0, %v427
    %v429 = vpop.f32.mrf.mxu0
    %430 = vmatprep.mubr.f32.mxu0 0.0
    %431 = vmatmul.mubr.f32.gmra.mxu0 %v353
    %v432 = vpop.f32.mrf.mxu0
    %v433 = vadd.f32 0.0, %v432
    %v434 = vpop.f32.mrf.mxu0
    %435 = vdwg.mxu0
    %vm436 = vcmask 130048
    %v437 = vsel %vm436, %v428, -inf
    %438 = vmax.xlane.f32.xlu0 %v437
    %v439 = vpop.xlane.xlu0 %438
    %v440 = vsel %vm436, %v433, -inf
    %441 = vmax.xlane.f32.xlu0 %v440
    %v442 = vpop.xlane.xlu0 %441
    %v443 = vsub.f32 %v428, %v439
    %v444 = vsub.f32 %v433, %v442
    %v445 = vmul.f32 %v443, 1.442695
    %v446 = vpow.pop %v445
    %v447 = vmul.f32 %v444, 1.442695
    %v448 = vpow.pop %v447
    %v449 = vsel %vm436, %v446, 0.0
    %450 = vadd.xlane.f32.xlu0 %v449
    %v451 = vpop.xlane.xlu0 %450
    %v452 = vsel %vm436, %v448, 0.0
    %453 = vadd.xlane.f32.xlu0 %v452
    %v454 = vpop.xlane.xlu0 %453
    %v455 = vrcp.pop %v451
    %v456 = vmul.f32 %v446, %v455
    %v457 = vrcp.pop %v454
    %v458 = vmul.f32 %v448, %v457
    %459 = vxpose.xlu0.b32.start [1/16] %v456, 128
    %460 = vxpose.xlu0.b32.cont [2/16] %v458, 128
    %461 = vxpose.xlu0.b32.cont [3/16] 0.0, 128
    %462 = vxpose.xlu0.b32.cont [4/16] 0.0, 128
    %463 = vxpose.xlu0.b32.cont [5/16] 0.0, 128
    %464 = vxpose.xlu0.b32.cont [6/16] 0.0, 128
    %465 = vxpose.xlu0.b32.cont [7/16] 0.0, 128
    %466 = vxpose.xlu0.b32.cont [8/16] 0.0, 128
    %467 = vxpose.xlu0.b32.cont [9/16] 0.0, 128
    %468 = vxpose.xlu0.b32.cont [10/16] 0.0, 128
    %469 = vxpose.xlu0.b32.cont [11/16] 0.0, 128
    %470 = vxpose.xlu0.b32.cont [12/16] 0.0, 128
    %471 = vxpose.xlu0.b32.cont [13/16] 0.0, 128
    %472 = vxpose.xlu0.b32.cont [14/16] 0.0, 128
    %473 = vxpose.xlu0.b32.cont [15/16] 0.0, 128
    %474 = vxpose.xlu0.b32.end [16/16] 0.0, 128
    %v475 = vpop.trf.xlu0
    %v476 = vpop.trf.xlu0
    %v477 = vpop.trf.xlu0
    %v478 = vpop.trf.xlu0
    %v479 = vpop.trf.xlu0
    %v480 = vpop.trf.xlu0
    %v481 = vpop.trf.xlu0
    %v482 = vpop.trf.xlu0
    %v483 = vpop.trf.xlu0
    %v484 = vpop.trf.xlu0
    %v485 = vpop.trf.xlu0
    %v486 = vpop.trf.xlu0
    %v487 = vpop.trf.xlu0
    %v488 = vpop.trf.xlu0
    %v489 = vpop.trf.xlu0
    %v490 = vpop.trf.xlu0
    %v492 = vsel %vm436, %v475, 0
    %v495 = vsel %vm436, %v476, 0
    %497 = vmatprep.subr.mxu0 0.0
    %498 = vmatpush1.msra.mxu0 0.0
    %499 = vmatprep.subr.mxu0 0.0
    %500 = vmatpush1.msra.mxu0 0.0
    %501 = vmatprep.subr.mxu0 0.0
    %502 = vmatpush1.msra.mxu0 0.0
    %503 = vmatprep.subr.mxu0 0.0
    %504 = vmatpush1.msra.mxu0 0.0
    %505 = vmatprep.subr.mxu0 0.0
    %506 = vmatpush1.msra.mxu0 0.0
    %507 = vmatprep.subr.mxu0 0.0
    %508 = vmatpush1.msra.mxu0 0.0
    %509 = vmatprep.subr.mxu0 0.0
    %510 = vmatpush1.msra.mxu0 0.0
    %511 = vmatprep.subr.mxu0 0.0
    %512 = vmatpush1.msra.mxu0 0.0
    %513 = vmatprep.subr.mxu0 0.0
    %514 = vmatpush1.msra.mxu0 0.0
    %515 = vmatprep.subr.mxu0 0.0
    %516 = vmatpush1.msra.mxu0 0.0
    %517 = vmatprep.subr.mxu0 0.0
    %518 = vmatpush1.msra.mxu0 0.0
    %519 = vmatprep.subr.mxu0 0.0
    %520 = vmatpush1.msra.mxu0 0.0
    %521 = vmatprep.subr.mxu0 0.0
    %522 = vmatpush1.msra.mxu0 0.0
    %523 = vmatprep.subr.mxu0 0.0
    %524 = vmatpush1.msra.mxu0 0.0
    %525 = vmatprep.subr.mxu0 0.0
    %526 = vmatpush1.msra.mxu0 %v247
    %527 = vmatprep.subr.mxu0 0.0
    %528 = vmatpush1.msra.mxu0 %v246
    %529 = vmatprep.subr.mxu0 0.0
    %530 = vmatpush2.msra.mxu0 0.0
    %531 = vmatprep.subr.mxu0 0.0
    %532 = vmatpush2.msra.mxu0 0.0
    %533 = vmatprep.subr.mxu0 0.0
    %534 = vmatpush2.msra.mxu0 0.0
    %535 = vmatprep.subr.mxu0 0.0
    %536 = vmatpush2.msra.mxu0 0.0
    %537 = vmatprep.subr.mxu0 0.0
    %538 = vmatpush2.msra.mxu0 0.0
    %539 = vmatprep.subr.mxu0 0.0
    %540 = vmatpush2.msra.mxu0 0.0
    %541 = vmatprep.subr.mxu0 0.0
    %542 = vmatpush2.msra.mxu0 0.0
    %543 = vmatprep.subr.mxu0 0.0
    %544 = vmatpush2.msra.mxu0 0.0
    %545 = vmatprep.subr.mxu0 0.0
    %546 = vmatpush2.msra.mxu0 0.0
    %547 = vmatprep.subr.mxu0 0.0
    %548 = vmatpush2.msra.mxu0 0.0
    %549 = vmatprep.subr.mxu0 0.0
    %550 = vmatpush2.msra.mxu0 0.0
    %551 = vmatprep.subr.mxu0 0.0
    %552 = vmatpush2.msra.mxu0 0.0
    %553 = vmatprep.subr.mxu0 0.0
    %554 = vmatpush2.msra.mxu0 0.0
    %555 = vmatprep.subr.mxu0 0.0
    %556 = vmatpush2.msra.mxu0 0.0
    %557 = vmatprep.subr.mxu0 0.0
    %558 = vmatpush2.msra.mxu0 0.0
    %559 = vmatprep.subr.mxu0 0.0
    %560 = vmatpush2.msra.mxu0 0.0
    %561 = vmatprep.mubr.f32.mxu0 0.0
    %562 = vmatmul.mubr.f32.gmra.mxu0 %v492
    %v563 = vpop.f32.mrf.mxu0
    %v564 = vadd.f32 0.0, %v563
    %v565 = vpop.f32.mrf.mxu0
    %566 = vmatprep.mubr.f32.mxu0 0.0
    %567 = vmatmul.mubr.f32.gmra.mxu0 %v495
    %v568 = vpop.f32.mrf.mxu0
    %v569 = vadd.f32 0.0, %v568
    %v570 = vpop.f32.mrf.mxu0
    %571 = vdwg.mxu0
    %572 = vrot.lane.b32.xlu0 %v338, 64
    %v573 = vpop.permute.xlu0 %572
    %574 = vrot.lane.b32.xlu0 %v343, 64
    %v575 = vpop.permute.xlu0 %574
    %576 = vrot.lane.b32.xlu0 %v246, 64
    %v577 = vpop.permute.xlu0 %576
    %578 = vrot.lane.b32.xlu0 %v247, 64
    %v579 = vpop.permute.xlu0 %578
    %v580 = vsel %vm348, %v573, 0
    %v582 = vsel %vm348, %v575, 0
    %v584 = vsel %vm348, %v577, 0
    %v586 = vsel %vm348, %v579, 0
    %588 = vmatprep.subr.mxu0 0.0
    %589 = vmatpush1.xpose.msra.mxu0 0.0
    %590 = vmatprep.subr.mxu0 0.0
    %591 = vmatpush1.xpose.msra.mxu0 0.0
    %592 = vmatprep.subr.mxu0 0.0
    %593 = vmatpush1.xpose.msra.mxu0 0.0
    %594 = vmatprep.subr.mxu0 0.0
    %595 = vmatpush1.xpose.msra.mxu0 0.0
    %596 = vmatprep.subr.mxu0 0.0
    %597 = vmatpush1.xpose.msra.mxu0 0.0
    %598 = vmatprep.subr.mxu0 0.0
    %599 = vmatpush1.xpose.msra.mxu0 0.0
    %600 = vmatprep.subr.mxu0 0.0
    %601 = vmatpush1.xpose.msra.mxu0 0.0
    %602 = vmatprep.subr.mxu0 0.0
    %603 = vmatpush1.xpose.msra.mxu0 0.0
    %604 = vmatprep.subr.mxu0 0.0
    %605 = vmatpush1.xpose.msra.mxu0 0.0
    %606 = vmatprep.subr.mxu0 0.0
    %607 = vmatpush1.xpose.msra.mxu0 0.0
    %608 = vmatprep.subr.mxu0 0.0
    %609 = vmatpush1.xpose.msra.mxu0 0.0
    %610 = vmatprep.subr.mxu0 0.0
    %611 = vmatpush1.xpose.msra.mxu0 0.0
    %612 = vmatprep.subr.mxu0 0.0
    %613 = vmatpush1.xpose.msra.mxu0 0.0
    %614 = vmatprep.subr.mxu0 0.0
    %615 = vmatpush1.xpose.msra.mxu0 0.0
    %616 = vmatprep.subr.mxu0 0.0
    %617 = vmatpush1.xpose.msra.mxu0 %v586
    %618 = vmatprep.subr.mxu0 0.0
    %619 = vmatpush1.xpose.msra.mxu0 %v584
    %620 = vmatprep.subr.mxu0 0.0
    %621 = vmatpush2.xpose.msra.mxu0 0.0
    %622 = vmatprep.subr.mxu0 0.0
    %623 = vmatpush2.xpose.msra.mxu0 0.0
    %624 = vmatprep.subr.mxu0 0.0
    %625 = vmatpush2.xpose.msra.mxu0 0.0
    %626 = vmatprep.subr.mxu0 0.0
    %627 = vmatpush2.xpose.msra.mxu0 0.0
    %628 = vmatprep.subr.mxu0 0.0
    %629 = vmatpush2.xpose.msra.mxu0 0.0
    %630 = vmatprep.subr.mxu0 0.0
    %631 = vmatpush2.xpose.msra.mxu0 0.0
    %632 = vmatprep.subr.mxu0 0.0
    %633 = vmatpush2.xpose.msra.mxu0 0.0
    %634 = vmatprep.subr.mxu0 0.0
    %635 = vmatpush2.xpose.msra.mxu0 0.0
    %636 = vmatprep.subr.mxu0 0.0
    %637 = vmatpush2.xpose.msra.mxu0 0.0
    %638 = vmatprep.subr.mxu0 0.0
    %639 = vmatpush2.xpose.msra.mxu0 0.0
    %640 = vmatprep.subr.mxu0 0.0
    %641 = vmatpush2.xpose.msra.mxu0 0.0
    %642 = vmatprep.subr.mxu0 0.0
    %643 = vmatpush2.xpose.msra.mxu0 0.0
    %644 = vmatprep.subr.mxu0 0.0
    %645 = vmatpush2.xpose.msra.mxu0 0.0
    %646 = vmatprep.subr.mxu0 0.0
    %647 = vmatpush2.xpose.msra.mxu0 0.0
    %648 = vmatprep.subr.mxu0 0.0
    %649 = vmatpush2.xpose.msra.mxu0 0.0
    %650 = vmatprep.subr.mxu0 0.0
    %651 = vmatpush2.xpose.msra.mxu0 0.0
    %652 = vmatprep.mubr.f32.mxu0 0.0
    %653 = vmatmul.mubr.f32.gmra.mxu0 %v580
    %v654 = vpop.f32.mrf.mxu0
    %v655 = vadd.f32 0.0, %v654
    %v656 = vpop.f32.mrf.mxu0
    %657 = vmatprep.mubr.f32.mxu0 0.0
    %658 = vmatmul.mubr.f32.gmra.mxu0 %v582
    %v659 = vpop.f32.mrf.mxu0
    %v660 = vadd.f32 0.0, %v659
    %v661 = vpop.f32.mrf.mxu0
    %662 = vdwg.mxu0
    %v663 = vsel %vm436, %v655, -inf
    %664 = vmax.xlane.f32.xlu0 %v663
    %v665 = vpop.xlane.xlu0 %664
    %v666 = vsel %vm436, %v660, -inf
    %667 = vmax.xlane.f32.xlu0 %v666
    %v668 = vpop.xlane.xlu0 %667
    %v669 = vsub.f32 %v655, %v665
    %v670 = vsub.f32 %v660, %v668
    %v671 = vmul.f32 %v669, 1.442695
    %v672 = vpow.pop %v671
    %v673 = vmul.f32 %v670, 1.442695
    %v674 = vpow.pop %v673
    %v675 = vsel %vm436, %v672, 0.0
    %676 = vadd.xlane.f32.xlu0 %v675
    %v677 = vpop.xlane.xlu0 %676
    %v678 = vsel %vm436, %v674, 0.0
    %679 = vadd.xlane.f32.xlu0 %v678
    %v680 = vpop.xlane.xlu0 %679
    %v681 = vrcp.pop %v677
    %v682 = vmul.f32 %v672, %v681
    %v683 = vrcp.pop %v680
    %v684 = vmul.f32 %v674, %v683
    %v688 = vsel %vm436, %v682, 0
    %v691 = vsel %vm436, %v684, 0
    %693 = vmatprep.subr.mxu0 0.0
    %694 = vmatpush1.msra.mxu0 0.0
    %695 = vmatprep.subr.mxu0 0.0
    %696 = vmatpush1.msra.mxu0 0.0
    %697 = vmatprep.subr.mxu0 0.0
    %698 = vmatpush1.msra.mxu0 0.0
    %699 = vmatprep.subr.mxu0 0.0
    %700 = vmatpush1.msra.mxu0 0.0
    %701 = vmatprep.subr.mxu0 0.0
    %702 = vmatpush1.msra.mxu0 0.0
    %703 = vmatprep.subr.mxu0 0.0
    %704 = vmatpush1.msra.mxu0 0.0
    %705 = vmatprep.subr.mxu0 0.0
    %706 = vmatpush1.msra.mxu0 0.0
    %707 = vmatprep.subr.mxu0 0.0
    %708 = vmatpush1.msra.mxu0 0.0
    %709 = vmatprep.subr.mxu0 0.0
    %710 = vmatpush1.msra.mxu0 0.0
    %711 = vmatprep.subr.mxu0 0.0
    %712 = vmatpush1.msra.mxu0 0.0
    %713 = vmatprep.subr.mxu0 0.0
    %714 = vmatpush1.msra.mxu0 0.0
    %715 = vmatprep.subr.mxu0 0.0
    %716 = vmatpush1.msra.mxu0 0.0
    %717 = vmatprep.subr.mxu0 0.0
    %718 = vmatpush1.msra.mxu0 0.0
    %719 = vmatprep.subr.mxu0 0.0
    %720 = vmatpush1.msra.mxu0 0.0
    %721 = vmatprep.subr.mxu0 0.0
    %722 = vmatpush1.msra.mxu0 %v579
    %723 = vmatprep.subr.mxu0 0.0
    %724 = vmatpush1.msra.mxu0 %v577
    %725 = vmatprep.subr.mxu0 0.0
    %726 = vmatpush2.msra.mxu0 0.0
    %727 = vmatprep.subr.mxu0 0.0
    %728 = vmatpush2.msra.mxu0 0.0
    %729 = vmatprep.subr.mxu0 0.0
    %730 = vmatpush2.msra.mxu0 0.0
    %731 = vmatprep.subr.mxu0 0.0
    %732 = vmatpush2.msra.mxu0 0.0
    %733 = vmatprep.subr.mxu0 0.0
    %734 = vmatpush2.msra.mxu0 0.0
    %735 = vmatprep.subr.mxu0 0.0
    %736 = vmatpush2.msra.mxu0 0.0
    %737 = vmatprep.subr.mxu0 0.0
    %738 = vmatpush2.msra.mxu0 0.0
    %739 = vmatprep.subr.mxu0 0.0
    %740 = vmatpush2.msra.mxu0 0.0
    %741 = vmatprep.subr.mxu0 0.0
    %742 = vmatpush2.msra.mxu0 0.0
    %743 = vmatprep.subr.mxu0 0.0
    %744 = vmatpush2.msra.mxu0 0.0
    %745 = vmatprep.subr.mxu0 0.0
    %746 = vmatpush2.msra.mxu0 0.0
    %747 = vmatprep.subr.mxu0 0.0
    %748 = vmatpush2.msra.mxu0 0.0
    %749 = vmatprep.subr.mxu0 0.0
    %750 = vmatpush2.msra.mxu0 0.0
    %751 = vmatprep.subr.mxu0 0.0
    %752 = vmatpush2.msra.mxu0 0.0
    %753 = vmatprep.subr.mxu0 0.0
    %754 = vmatpush2.msra.mxu0 0.0
    %755 = vmatprep.subr.mxu0 0.0
    %756 = vmatpush2.msra.mxu0 0.0
    %757 = vmatprep.mubr.f32.mxu0 0.0
    %758 = vmatmul.mubr.f32.gmra.mxu0 %v688
    %v759 = vpop.f32.mrf.mxu0
    %v760 = vadd.f32 0.0, %v759
    %v761 = vpop.f32.mrf.mxu0
    %762 = vmatprep.mubr.f32.mxu0 0.0
    %763 = vmatmul.mubr.f32.gmra.mxu0 %v691
    %v764 = vpop.f32.mrf.mxu0
    %v765 = vadd.f32 0.0, %v764
    %v766 = vpop.f32.mrf.mxu0
    %767 = vdwg.mxu0
    %v768 = vstv %s346
    %v769 = vmul.f32 %v768, %v564
    %v770 = vmul.f32 %v768, %v569
    %v771 = vstv %s347
    %v772 = vmul.f32 %v771, %v760
    %v773 = vmul.f32 %v771, %v765
    %v774 = vadd.f32 %v769, %v772
    %v775 = vadd.f32 %v770, %v773
    %776 = vrot.lane.b32.xlu0 %v338, 96
    %v777 = vpop.permute.xlu0 %776
    %778 = vrot.lane.b32.xlu0 %v343, 96
    %v779 = vpop.permute.xlu0 %778
    %780 = vrot.lane.b32.xlu0 %v246, 96
    %v781 = vpop.permute.xlu0 %780
    %782 = vrot.lane.b32.xlu0 %v247, 96
    %v783 = vpop.permute.xlu0 %782
    %v784 = vsel %vm348, %v777, 0
    %v786 = vsel %vm348, %v779, 0
    %v788 = vsel %vm348, %v781, 0
    %v790 = vsel %vm348, %v783, 0
    %792 = vmatprep.subr.mxu0 0.0
    %793 = vmatpush1.xpose.msra.mxu0 0.0
    %794 = vmatprep.subr.mxu0 0.0
    %795 = vmatpush1.xpose.msra.mxu0 0.0
    %796 = vmatprep.subr.mxu0 0.0
    %797 = vmatpush1.xpose.msra.mxu0 0.0
    %798 = vmatprep.subr.mxu0 0.0
    %799 = vmatpush1.xpose.msra.mxu0 0.0
    %800 = vmatprep.subr.mxu0 0.0
    %801 = vmatpush1.xpose.msra.mxu0 0.0
    %802 = vmatprep.subr.mxu0 0.0
    %803 = vmatpush1.xpose.msra.mxu0 0.0
    %804 = vmatprep.subr.mxu0 0.0
    %805 = vmatpush1.xpose.msra.mxu0 0.0
    %806 = vmatprep.subr.mxu0 0.0
    %807 = vmatpush1.xpose.msra.mxu0 0.0
    %808 = vmatprep.subr.mxu0 0.0
    %809 = vmatpush1.xpose.msra.mxu0 0.0
    %810 = vmatprep.subr.mxu0 0.0
    %811 = vmatpush1.xpose.msra.mxu0 0.0
    %812 = vmatprep.subr.mxu0 0.0
    %813 = vmatpush1.xpose.msra.mxu0 0.0
    %814 = vmatprep.subr.mxu0 0.0
    %815 = vmatpush1.xpose.msra.mxu0 0.0
    %816 = vmatprep.subr.mxu0 0.0
    %817 = vmatpush1.xpose.msra.mxu0 0.0
    %818 = vmatprep.subr.mxu0 0.0
    %819 = vmatpush1.xpose.msra.mxu0 0.0
    %820 = vmatprep.subr.mxu0 0.0
    %821 = vmatpush1.xpose.msra.mxu0 %v790
    %822 = vmatprep.subr.mxu0 0.0
    %823 = vmatpush1.xpose.msra.mxu0 %v788
    %824 = vmatprep.subr.mxu0 0.0
    %825 = vmatpush2.xpose.msra.mxu0 0.0
    %826 = vmatprep.subr.mxu0 0.0
    %827 = vmatpush2.xpose.msra.mxu0 0.0
    %828 = vmatprep.subr.mxu0 0.0
    %829 = vmatpush2.xpose.msra.mxu0 0.0
    %830 = vmatprep.subr.mxu0 0.0
    %831 = vmatpush2.xpose.msra.mxu0 0.0
    %832 = vmatprep.subr.mxu0 0.0
    %833 = vmatpush2.xpose.msra.mxu0 0.0
    %834 = vmatprep.subr.mxu0 0.0
    %835 = vmatpush2.xpose.msra.mxu0 0.0
    %836 = vmatprep.subr.mxu0 0.0
    %837 = vmatpush2.xpose.msra.mxu0 0.0
    %838 = vmatprep.subr.mxu0 0.0
    %839 = vmatpush2.xpose.msra.mxu0 0.0
    %840 = vmatprep.subr.mxu0 0.0
    %841 = vmatpush2.xpose.msra.mxu0 0.0
    %842 = vmatprep.subr.mxu0 0.0
    %843 = vmatpush2.xpose.msra.mxu0 0.0
    %844 = vmatprep.subr.mxu0 0.0
    %845 = vmatpush2.xpose.msra.mxu0 0.0
    %846 = vmatprep.subr.mxu0 0.0
    %847 = vmatpush2.xpose.msra.mxu0 0.0
    %848 = vmatprep.subr.mxu0 0.0
    %849 = vmatpush2.xpose.msra.mxu0 0.0
    %850 = vmatprep.subr.mxu0 0.0
    %851 = vmatpush2.xpose.msra.mxu0 0.0
    %852 = vmatprep.subr.mxu0 0.0
    %853 = vmatpush2.xpose.msra.mxu0 0.0
    %854 = vmatprep.subr.mxu0 0.0
    %855 = vmatpush2.xpose.msra.mxu0 0.0
    %856 = vmatprep.mubr.f32.mxu0 0.0
    %857 = vmatmul.mubr.f32.gmra.mxu0 %v784
    %v858 = vpop.f32.mrf.mxu0
    %v859 = vadd.f32 0.0, %v858
    %v860 = vpop.f32.mrf.mxu0
    %861 = vmatprep.mubr.f32.mxu0 0.0
    %862 = vmatmul.mubr.f32.gmra.mxu0 %v786
    %v863 = vpop.f32.mrf.mxu0
    %v864 = vadd.f32 0.0, %v863
    %v865 = vpop.f32.mrf.mxu0
    %866 = vdwg.mxu0
    %v867 = vsel %vm436, %v859, -inf
    %868 = vmax.xlane.f32.xlu0 %v867
    %v869 = vpop.xlane.xlu0 %868
    %v870 = vsel %vm436, %v864, -inf
    %871 = vmax.xlane.f32.xlu0 %v870
    %v872 = vpop.xlane.xlu0 %871
    %v873 = vsub.f32 %v859, %v869
    %v874 = vsub.f32 %v864, %v872
    %v875 = vmul.f32 %v873, 1.442695
    %v876 = vpow.pop %v875
    %v877 = vmul.f32 %v874, 1.442695
    %v878 = vpow.pop %v877
    %v879 = vsel %vm436, %v876, 0.0
    %880 = vadd.xlane.f32.xlu0 %v879
    %v881 = vpop.xlane.xlu0 %880
    %v882 = vsel %vm436, %v878, 0.0
    %883 = vadd.xlane.f32.xlu0 %v882
    %v884 = vpop.xlane.xlu0 %883
    %v885 = vrcp.pop %v881
    %v886 = vmul.f32 %v876, %v885
    %v887 = vrcp.pop %v884
    %v888 = vmul.f32 %v878, %v887
    %889 = vxpose.xlu0.b32.start [1/16] %v886, 128
    %890 = vxpose.xlu0.b32.cont [2/16] %v888, 128
    %891 = vxpose.xlu0.b32.cont [3/16] 0.0, 128
    %892 = vxpose.xlu0.b32.cont [4/16] 0.0, 128
    %893 = vxpose.xlu0.b32.cont [5/16] 0.0, 128
    %894 = vxpose.xlu0.b32.cont [6/16] 0.0, 128
    %895 = vxpose.xlu0.b32.cont [7/16] 0.0, 128
    %896 = vxpose.xlu0.b32.cont [8/16] 0.0, 128
    %897 = vxpose.xlu0.b32.cont [9/16] 0.0, 128
    %898 = vxpose.xlu0.b32.cont [10/16] 0.0, 128
    %899 = vxpose.xlu0.b32.cont [11/16] 0.0, 128
    %900 = vxpose.xlu0.b32.cont [12/16] 0.0, 128
    %901 = vxpose.xlu0.b32.cont [13/16] 0.0, 128
    %902 = vxpose.xlu0.b32.cont [14/16] 0.0, 128
    %903 = vxpose.xlu0.b32.cont [15/16] 0.0, 128
    %904 = vxpose.xlu0.b32.end [16/16] 0.0, 128
    %v905 = vpop.trf.xlu0
    %v906 = vpop.trf.xlu0
    %v907 = vpop.trf.xlu0
    %v908 = vpop.trf.xlu0
    %v909 = vpop.trf.xlu0
    %v910 = vpop.trf.xlu0
    %v911 = vpop.trf.xlu0
    %v912 = vpop.trf.xlu0
    %v913 = vpop.trf.xlu0
    %v914 = vpop.trf.xlu0
    %v915 = vpop.trf.xlu0
    %v916 = vpop.trf.xlu0
    %v917 = vpop.trf.xlu0
    %v918 = vpop.trf.xlu0
    %v919 = vpop.trf.xlu0
    %v920 = vpop.trf.xlu0
    %v924 = vsel %vm436, %v905, 0
    %v927 = vsel %vm436, %v906, 0
    %929 = vmatprep.subr.mxu0 0.0
    %930 = vmatpush1.msra.mxu0 0.0
    %931 = vmatprep.subr.mxu0 0.0
    %932 = vmatpush1.msra.mxu0 0.0
    %933 = vmatprep.subr.mxu0 0.0
    %934 = vmatpush1.msra.mxu0 0.0
    %935 = vmatprep.subr.mxu0 0.0
    %936 = vmatpush1.msra.mxu0 0.0
    %937 = vmatprep.subr.mxu0 0.0
    %938 = vmatpush1.msra.mxu0 0.0
    %939 = vmatprep.subr.mxu0 0.0
    %940 = vmatpush1.msra.mxu0 0.0
    %941 = vmatprep.subr.mxu0 0.0
    %942 = vmatpush1.msra.mxu0 0.0
    %943 = vmatprep.subr.mxu0 0.0
    %944 = vmatpush1.msra.mxu0 0.0
    %945 = vmatprep.subr.mxu0 0.0
    %946 = vmatpush1.msra.mxu0 0.0
    %947 = vmatprep.subr.mxu0 0.0
    %948 = vmatpush1.msra.mxu0 0.0
    %949 = vmatprep.subr.mxu0 0.0
    %950 = vmatpush1.msra.mxu0 0.0
    %951 = vmatprep.subr.mxu0 0.0
    %952 = vmatpush1.msra.mxu0 0.0
    %953 = vmatprep.subr.mxu0 0.0
    %954 = vmatpush1.msra.mxu0 0.0
    %955 = vmatprep.subr.mxu0 0.0
    %956 = vmatpush1.msra.mxu0 0.0
    %957 = vmatprep.subr.mxu0 0.0
    %958 = vmatpush1.msra.mxu0 %v783
    %959 = vmatprep.subr.mxu0 0.0
    %960 = vmatpush1.msra.mxu0 %v781
    %961 = vmatprep.subr.mxu0 0.0
    %962 = vmatpush2.msra.mxu0 0.0
    %963 = vmatprep.subr.mxu0 0.0
    %964 = vmatpush2.msra.mxu0 0.0
    %965 = vmatprep.subr.mxu0 0.0
    %966 = vmatpush2.msra.mxu0 0.0
    %967 = vmatprep.subr.mxu0 0.0
    %968 = vmatpush2.msra.mxu0 0.0
    %969 = vmatprep.subr.mxu0 0.0
    %970 = vmatpush2.msra.mxu0 0.0
    %971 = vmatprep.subr.mxu0 0.0
    %972 = vmatpush2.msra.mxu0 0.0
    %973 = vmatprep.subr.mxu0 0.0
    %974 = vmatpush2.msra.mxu0 0.0
    %975 = vmatprep.subr.mxu0 0.0
    %976 = vmatpush2.msra.mxu0 0.0
    %977 = vmatprep.subr.mxu0 0.0
    %978 = vmatpush2.msra.mxu0 0.0
    %979 = vmatprep.subr.mxu0 0.0
    %980 = vmatpush2.msra.mxu0 0.0
    %981 = vmatprep.subr.mxu0 0.0
    %982 = vmatpush2.msra.mxu0 0.0
    %983 = vmatprep.subr.mxu0 0.0
    %984 = vmatpush2.msra.mxu0 0.0
    %985 = vmatprep.subr.mxu0 0.0
    %986 = vmatpush2.msra.mxu0 0.0
    %987 = vmatprep.subr.mxu0 0.0
    %988 = vmatpush2.msra.mxu0 0.0
    %989 = vmatprep.subr.mxu0 0.0
    %990 = vmatpush2.msra.mxu0 0.0
    %991 = vmatprep.subr.mxu0 0.0
    %992 = vmatpush2.msra.mxu0 0.0
    %993 = vmatprep.mubr.f32.mxu0 0.0
    %994 = vmatmul.mubr.f32.gmra.mxu0 %v924
    %v995 = vpop.f32.mrf.mxu0
    %v996 = vadd.f32 0.0, %v995
    %v997 = vpop.f32.mrf.mxu0
    %998 = vmatprep.mubr.f32.mxu0 0.0
    %999 = vmatmul.mubr.f32.gmra.mxu0 %v927
    %v1000 = vpop.f32.mrf.mxu0
    %v1001 = vadd.f32 0.0, %v1000
    %v1002 = vpop.f32.mrf.mxu0
    %1003 = vdwg.mxu0
    %1004 = vrot.lane.b32.xlu0 %v338, 32
    %v1005 = vpop.permute.xlu0 %1004
    %1006 = vrot.lane.b32.xlu0 %v343, 32
    %v1007 = vpop.permute.xlu0 %1006
    %1008 = vrot.lane.b32.xlu0 %v246, 32
    %v1009 = vpop.permute.xlu0 %1008
    %1010 = vrot.lane.b32.xlu0 %v247, 32
    %v1011 = vpop.permute.xlu0 %1010
    %v1012 = vsel %vm348, %v1005, 0
    %v1014 = vsel %vm348, %v1007, 0
    %v1016 = vsel %vm348, %v1009, 0
    %v1018 = vsel %vm348, %v1011, 0
    %1020 = vmatprep.subr.mxu0 0.0
    %1021 = vmatpush1.xpose.msra.mxu0 0.0
    %1022 = vmatprep.subr.mxu0 0.0
    %1023 = vmatpush1.xpose.msra.mxu0 0.0
    %1024 = vmatprep.subr.mxu0 0.0
    %1025 = vmatpush1.xpose.msra.mxu0 0.0
    %1026 = vmatprep.subr.mxu0 0.0
    %1027 = vmatpush1.xpose.msra.mxu0 0.0
    %1028 = vmatprep.subr.mxu0 0.0
    %1029 = vmatpush1.xpose.msra.mxu0 0.0
    %1030 = vmatprep.subr.mxu0 0.0
    %1031 = vmatpush1.xpose.msra.mxu0 0.0
    %1032 = vmatprep.subr.mxu0 0.0
    %1033 = vmatpush1.xpose.msra.mxu0 0.0
    %1034 = vmatprep.subr.mxu0 0.0
    %1035 = vmatpush1.xpose.msra.mxu0 0.0
    %1036 = vmatprep.subr.mxu0 0.0
    %1037 = vmatpush1.xpose.msra.mxu0 0.0
    %1038 = vmatprep.subr.mxu0 0.0
    %1039 = vmatpush1.xpose.msra.mxu0 0.0
    %1040 = vmatprep.subr.mxu0 0.0
    %1041 = vmatpush1.xpose.msra.mxu0 0.0
    %1042 = vmatprep.subr.mxu0 0.0
    %1043 = vmatpush1.xpose.msra.mxu0 0.0
    %1044 = vmatprep.subr.mxu0 0.0
    %1045 = vmatpush1.xpose.msra.mxu0 0.0
    %1046 = vmatprep.subr.mxu0 0.0
    %1047 = vmatpush1.xpose.msra.mxu0 0.0
    %1048 = vmatprep.subr.mxu0 0.0
    %1049 = vmatpush1.xpose.msra.mxu0 %v1018
    %1050 = vmatprep.subr.mxu0 0.0
    %1051 = vmatpush1.xpose.msra.mxu0 %v1016
    %1052 = vmatprep.subr.mxu0 0.0
    %1053 = vmatpush2.xpose.msra.mxu0 0.0
    %1054 = vmatprep.subr.mxu0 0.0
    %1055 = vmatpush2.xpose.msra.mxu0 0.0
    %1056 = vmatprep.subr.mxu0 0.0
    %1057 = vmatpush2.xpose.msra.mxu0 0.0
    %1058 = vmatprep.subr.mxu0 0.0
    %1059 = vmatpush2.xpose.msra.mxu0 0.0
    %1060 = vmatprep.subr.mxu0 0.0
    %1061 = vmatpush2.xpose.msra.mxu0 0.0
    %1062 = vmatprep.subr.mxu0 0.0
    %1063 = vmatpush2.xpose.msra.mxu0 0.0
    %1064 = vmatprep.subr.mxu0 0.0
    %1065 = vmatpush2.xpose.msra.mxu0 0.0
    %1066 = vmatprep.subr.mxu0 0.0
    %1067 = vmatpush2.xpose.msra.mxu0 0.0
    %1068 = vmatprep.subr.mxu0 0.0
    %1069 = vmatpush2.xpose.msra.mxu0 0.0
    %1070 = vmatprep.subr.mxu0 0.0
    %1071 = vmatpush2.xpose.msra.mxu0 0.0
    %1072 = vmatprep.subr.mxu0 0.0
    %1073 = vmatpush2.xpose.msra.mxu0 0.0
    %1074 = vmatprep.subr.mxu0 0.0
    %1075 = vmatpush2.xpose.msra.mxu0 0.0
    %1076 = vmatprep.subr.mxu0 0.0
    %1077 = vmatpush2.xpose.msra.mxu0 0.0
    %1078 = vmatprep.subr.mxu0 0.0
    %1079 = vmatpush2.xpose.msra.mxu0 0.0
    %1080 = vmatprep.subr.mxu0 0.0
    %1081 = vmatpush2.xpose.msra.mxu0 0.0
    %1082 = vmatprep.subr.mxu0 0.0
    %1083 = vmatpush2.xpose.msra.mxu0 0.0
    %1084 = vmatprep.mubr.f32.mxu0 0.0
    %1085 = vmatmul.mubr.f32.gmra.mxu0 %v1012
    %v1086 = vpop.f32.mrf.mxu0
    %v1087 = vadd.f32 0.0, %v1086
    %v1088 = vpop.f32.mrf.mxu0
    %1089 = vmatprep.mubr.f32.mxu0 0.0
    %1090 = vmatmul.mubr.f32.gmra.mxu0 %v1014
    %v1091 = vpop.f32.mrf.mxu0
    %v1092 = vadd.f32 0.0, %v1091
    %v1093 = vpop.f32.mrf.mxu0
    %1094 = vdwg.mxu0
    %v1095 = vsel %vm436, %v1087, -inf
    %1096 = vmax.xlane.f32.xlu0 %v1095
    %v1097 = vpop.xlane.xlu0 %1096
    %v1098 = vsel %vm436, %v1092, -inf
    %1099 = vmax.xlane.f32.xlu0 %v1098
    %v1100 = vpop.xlane.xlu0 %1099
    %v1101 = vsub.f32 %v1087, %v1097
    %v1102 = vsub.f32 %v1092, %v1100
    %v1103 = vmul.f32 %v1101, 1.442695
    %v1104 = vpow.pop %v1103
    %v1105 = vmul.f32 %v1102, 1.442695
    %v1106 = vpow.pop %v1105
    %v1107 = vsel %vm436, %v1104, 0.0
    %1108 = vadd.xlane.f32.xlu0 %v1107
    %v1109 = vpop.xlane.xlu0 %1108
    %v1110 = vsel %vm436, %v1106, 0.0
    %1111 = vadd.xlane.f32.xlu0 %v1110
    %v1112 = vpop.xlane.xlu0 %1111
    %v1113 = vrcp.pop %v1109
    %v1114 = vmul.f32 %v1104, %v1113
    %v1115 = vrcp.pop %v1112
    %v1116 = vmul.f32 %v1106, %v1115
    %v1120 = vsel %vm436, %v1114, 0
    %v1123 = vsel %vm436, %v1116, 0
    %1125 = vmatprep.subr.mxu0 0.0
    %1126 = vmatpush1.msra.mxu0 0.0
    %1127 = vmatprep.subr.mxu0 0.0
    %1128 = vmatpush1.msra.mxu0 0.0
    %1129 = vmatprep.subr.mxu0 0.0
    %1130 = vmatpush1.msra.mxu0 0.0
    %1131 = vmatprep.subr.mxu0 0.0
    %1132 = vmatpush1.msra.mxu0 0.0
    %1133 = vmatprep.subr.mxu0 0.0
    %1134 = vmatpush1.msra.mxu0 0.0
    %1135 = vmatprep.subr.mxu0 0.0
    %1136 = vmatpush1.msra.mxu0 0.0
    %1137 = vmatprep.subr.mxu0 0.0
    %1138 = vmatpush1.msra.mxu0 0.0
    %1139 = vmatprep.subr.mxu0 0.0
    %1140 = vmatpush1.msra.mxu0 0.0
    %1141 = vmatprep.subr.mxu0 0.0
    %1142 = vmatpush1.msra.mxu0 0.0
    %1143 = vmatprep.subr.mxu0 0.0
    %1144 = vmatpush1.msra.mxu0 0.0
    %1145 = vmatprep.subr.mxu0 0.0
    %1146 = vmatpush1.msra.mxu0 0.0
    %1147 = vmatprep.subr.mxu0 0.0
    %1148 = vmatpush1.msra.mxu0 0.0
    %1149 = vmatprep.subr.mxu0 0.0
    %1150 = vmatpush1.msra.mxu0 0.0
    %1151 = vmatprep.subr.mxu0 0.0
    %1152 = vmatpush1.msra.mxu0 0.0
    %1153 = vmatprep.subr.mxu0 0.0
    %1154 = vmatpush1.msra.mxu0 %v1011
    %1155 = vmatprep.subr.mxu0 0.0
    %1156 = vmatpush1.msra.mxu0 %v1009
    %1157 = vmatprep.subr.mxu0 0.0
    %1158 = vmatpush2.msra.mxu0 0.0
    %1159 = vmatprep.subr.mxu0 0.0
    %1160 = vmatpush2.msra.mxu0 0.0
    %1161 = vmatprep.subr.mxu0 0.0
    %1162 = vmatpush2.msra.mxu0 0.0
    %1163 = vmatprep.subr.mxu0 0.0
    %1164 = vmatpush2.msra.mxu0 0.0
    %1165 = vmatprep.subr.mxu0 0.0
    %1166 = vmatpush2.msra.mxu0 0.0
    %1167 = vmatprep.subr.mxu0 0.0
    %1168 = vmatpush2.msra.mxu0 0.0
    %1169 = vmatprep.subr.mxu0 0.0
    %1170 = vmatpush2.msra.mxu0 0.0
    %1171 = vmatprep.subr.mxu0 0.0
    %1172 = vmatpush2.msra.mxu0 0.0
    %1173 = vmatprep.subr.mxu0 0.0
    %1174 = vmatpush2.msra.mxu0 0.0
    %1175 = vmatprep.subr.mxu0 0.0
    %1176 = vmatpush2.msra.mxu0 0.0
    %1177 = vmatprep.subr.mxu0 0.0
    %1178 = vmatpush2.msra.mxu0 0.0
    %1179 = vmatprep.subr.mxu0 0.0
    %1180 = vmatpush2.msra.mxu0 0.0
    %1181 = vmatprep.subr.mxu0 0.0
    %1182 = vmatpush2.msra.mxu0 0.0
    %1183 = vmatprep.subr.mxu0 0.0
    %1184 = vmatpush2.msra.mxu0 0.0
    %1185 = vmatprep.subr.mxu0 0.0
    %1186 = vmatpush2.msra.mxu0 0.0
    %1187 = vmatprep.subr.mxu0 0.0
    %1188 = vmatpush2.msra.mxu0 0.0
    %1189 = vmatprep.mubr.f32.mxu0 0.0
    %1190 = vmatmul.mubr.f32.gmra.mxu0 %v1120
    %v1191 = vpop.f32.mrf.mxu0
    %v1192 = vadd.f32 0.0, %v1191
    %v1193 = vpop.f32.mrf.mxu0
    %1194 = vmatprep.mubr.f32.mxu0 0.0
    %1195 = vmatmul.mubr.f32.gmra.mxu0 %v1123
    %v1196 = vpop.f32.mrf.mxu0
    %v1197 = vadd.f32 0.0, %v1196
    %v1198 = vpop.f32.mrf.mxu0
    %1199 = vdwg.mxu0
    %v1200 = vmul.f32 %v768, %v996
    %v1201 = vmul.f32 %v768, %v1001
    %v1202 = vmul.f32 %v771, %v1192
    %v1203 = vmul.f32 %v771, %v1197
    %v1204 = vadd.f32 %v1200, %v1202
    %v1205 = vadd.f32 %v1201, %v1203
    %1208 = vrot.lane.b32.xlu0 %v1204, 32
    %v1209 = vpop.permute.xlu0 %1208
    %1210 = vrot.lane.b32.xlu0 %v1205, 32
    %v1211 = vpop.permute.xlu0 %1210
    %v1214 = vsel %vm348, %v774, %v1209
    %v1215 = vsel %vm348, %v775, %v1211
    %v1216 = vld [vmem:[%s7] sm:$0xff]
    %v1217 = vld [vmem:[%s7 + $0x8] sm:$0xff]
    %v1218 = vld [vmem:[%s7 + $0x10] sm:$0xff]
    %v1219 = vld [vmem:[%s7 + $0x18] sm:$0xff]
    %v1220 = vld [vmem:[%s7 + $0x20] sm:$0xff]
    %v1221 = vld [vmem:[%s7 + $0x28] sm:$0xff]
    %v1222 = vld [vmem:[%s7 + $0x30] sm:$0xff]
    %v1223 = vld [vmem:[%s7 + $0x38] sm:$0xff]
    %vm1224 = vcmask 523264
    %v1226 = vsel %vm1224, %v1216, 0
    %v1229 = vsel %vm1224, %v1217, 0
    %v1232 = vsel %vm1224, %v1218, 0
    %v1235 = vsel %vm1224, %v1219, 0
    %v1238 = vsel %vm1224, %v1220, 0
    %v1241 = vsel %vm1224, %v1221, 0
    %v1244 = vsel %vm1224, %v1222, 0
    %v1247 = vsel %vm1224, %v1223, 0
    %v1250 = vsel %vm1224, %v1214, 0
    %v1253 = vsel %vm1224, %v1215, 0
    %1255 = vmatprep.subr.mxu0 0.0
    %1256 = vmatpush1.xpose.msra.mxu0 0.0
    %1257 = vmatprep.subr.mxu0 0.0
    %1258 = vmatpush1.xpose.msra.mxu0 0.0
    %1259 = vmatprep.subr.mxu0 0.0
    %1260 = vmatpush1.xpose.msra.mxu0 0.0
    %1261 = vmatprep.subr.mxu0 0.0
    %1262 = vmatpush1.xpose.msra.mxu0 0.0
    %1263 = vmatprep.subr.mxu0 0.0
    %1264 = vmatpush1.xpose.msra.mxu0 0.0
    %1265 = vmatprep.subr.mxu0 0.0
    %1266 = vmatpush1.xpose.msra.mxu0 0.0
    %1267 = vmatprep.subr.mxu0 0.0
    %1268 = vmatpush1.xpose.msra.mxu0 0.0
    %1269 = vmatprep.subr.mxu0 0.0
    %1270 = vmatpush1.xpose.msra.mxu0 0.0
    %1271 = vmatprep.subr.mxu0 0.0
    %1272 = vmatpush1.xpose.msra.mxu0 0.0
    %1273 = vmatprep.subr.mxu0 0.0
    %1274 = vmatpush1.xpose.msra.mxu0 0.0
    %1275 = vmatprep.subr.mxu0 0.0
    %1276 = vmatpush1.xpose.msra.mxu0 0.0
    %1277 = vmatprep.subr.mxu0 0.0
    %1278 = vmatpush1.xpose.msra.mxu0 0.0
    %1279 = vmatprep.subr.mxu0 0.0
    %1280 = vmatpush1.xpose.msra.mxu0 0.0
    %1281 = vmatprep.subr.mxu0 0.0
    %1282 = vmatpush1.xpose.msra.mxu0 0.0
    %1283 = vmatprep.subr.mxu0 0.0
    %1284 = vmatpush1.xpose.msra.mxu0 %v1253
    %1285 = vmatprep.subr.mxu0 0.0
    %1286 = vmatpush1.xpose.msra.mxu0 %v1250
    %1287 = vmatprep.subr.mxu0 0.0
    %1288 = vmatpush2.xpose.msra.mxu0 0.0
    %1289 = vmatprep.subr.mxu0 0.0
    %1290 = vmatpush2.xpose.msra.mxu0 0.0
    %1291 = vmatprep.subr.mxu0 0.0
    %1292 = vmatpush2.xpose.msra.mxu0 0.0
    %1293 = vmatprep.subr.mxu0 0.0
    %1294 = vmatpush2.xpose.msra.mxu0 0.0
    %1295 = vmatprep.subr.mxu0 0.0
    %1296 = vmatpush2.xpose.msra.mxu0 0.0
    %1297 = vmatprep.subr.mxu0 0.0
    %1298 = vmatpush2.xpose.msra.mxu0 0.0
    %1299 = vmatprep.subr.mxu0 0.0
    %1300 = vmatpush2.xpose.msra.mxu0 0.0
    %1301 = vmatprep.subr.mxu0 0.0
    %1302 = vmatpush2.xpose.msra.mxu0 0.0
    %1303 = vmatprep.subr.mxu0 0.0
    %1304 = vmatpush2.xpose.msra.mxu0 0.0
    %1305 = vmatprep.subr.mxu0 0.0
    %1306 = vmatpush2.xpose.msra.mxu0 0.0
    %1307 = vmatprep.subr.mxu0 0.0
    %1308 = vmatpush2.xpose.msra.mxu0 0.0
    %1309 = vmatprep.subr.mxu0 0.0
    %1310 = vmatpush2.xpose.msra.mxu0 0.0
    %1311 = vmatprep.subr.mxu0 0.0
    %1312 = vmatpush2.xpose.msra.mxu0 0.0
    %1313 = vmatprep.subr.mxu0 0.0
    %1314 = vmatpush2.xpose.msra.mxu0 0.0
    %1315 = vmatprep.subr.mxu0 0.0
    %1316 = vmatpush2.xpose.msra.mxu0 0.0
    %1317 = vmatprep.subr.mxu0 0.0
    %1318 = vmatpush2.xpose.msra.mxu0 0.0
    %1319 = vmatprep.mubr.f32.mxu0 0.0
    %1320 = vmatmul.mubr.f32.gmra.mxu0 %v1226
    %v1321 = vpop.f32.mrf.mxu0
    %v1322 = vadd.f32 0.0, %v1321
    %v1323 = vpop.f32.mrf.mxu0
    %1324 = vmatprep.mubr.f32.mxu0 0.0
    %1325 = vmatmul.mubr.f32.gmra.mxu0 %v1229
    %v1326 = vpop.f32.mrf.mxu0
    %v1327 = vadd.f32 0.0, %v1326
    %v1328 = vpop.f32.mrf.mxu0
    %1329 = vmatprep.mubr.f32.mxu0 0.0
    %1330 = vmatmul.mubr.f32.gmra.mxu0 %v1232
    %v1331 = vpop.f32.mrf.mxu0
    %v1332 = vadd.f32 0.0, %v1331
    %v1333 = vpop.f32.mrf.mxu0
    %1334 = vmatprep.mubr.f32.mxu0 0.0
    %1335 = vmatmul.mubr.f32.gmra.mxu0 %v1235
    %v1336 = vpop.f32.mrf.mxu0
    %v1337 = vadd.f32 0.0, %v1336
    %v1338 = vpop.f32.mrf.mxu0
    %1339 = vmatprep.mubr.f32.mxu0 0.0
    %1340 = vmatmul.mubr.f32.gmra.mxu0 %v1238
    %v1341 = vpop.f32.mrf.mxu0
    %v1342 = vadd.f32 0.0, %v1341
    %v1343 = vpop.f32.mrf.mxu0
    %1344 = vmatprep.mubr.f32.mxu0 0.0
    %1345 = vmatmul.mubr.f32.gmra.mxu0 %v1241
    %v1346 = vpop.f32.mrf.mxu0
    %v1347 = vadd.f32 0.0, %v1346
    %v1348 = vpop.f32.mrf.mxu0
    %1349 = vmatprep.mubr.f32.mxu0 0.0
    %1350 = vmatmul.mubr.f32.gmra.mxu0 %v1244
    %v1351 = vpop.f32.mrf.mxu0
    %v1352 = vadd.f32 0.0, %v1351
    %v1353 = vpop.f32.mrf.mxu0
    %1354 = vmatprep.mubr.f32.mxu0 0.0
    %1355 = vmatmul.mubr.f32.gmra.mxu0 %v1247
    %v1356 = vpop.f32.mrf.mxu0
    %v1357 = vadd.f32 0.0, %v1356
    %v1358 = vpop.f32.mrf.mxu0
    %1359 = vdwg.mxu0
    %s1360 = scalar_lea.vmem %s7, 64
    %v1361 = vld [vmem:[%s1360] sm:$0xff]
    %v1362 = vld [vmem:[%s1360 + $0x8] sm:$0xff]
    %v1363 = vld [vmem:[%s1360 + $0x10] sm:$0xff]
    %v1364 = vld [vmem:[%s1360 + $0x18] sm:$0xff]
    %v1365 = vld [vmem:[%s1360 + $0x20] sm:$0xff]
    %v1366 = vld [vmem:[%s1360 + $0x28] sm:$0xff]
    %v1367 = vld [vmem:[%s1360 + $0x30] sm:$0xff]
    %v1368 = vld [vmem:[%s1360 + $0x38] sm:$0xff]
    %v1370 = vsel %vm1224, %v1361, 0
    %v1373 = vsel %vm1224, %v1362, 0
    %v1376 = vsel %vm1224, %v1363, 0
    %v1379 = vsel %vm1224, %v1364, 0
    %v1382 = vsel %vm1224, %v1365, 0
    %v1385 = vsel %vm1224, %v1366, 0
    %v1388 = vsel %vm1224, %v1367, 0
    %v1391 = vsel %vm1224, %v1368, 0
    %1393 = vmatprep.subr.mxu0 0.0
    %1394 = vmatpush1.xpose.msra.mxu0 0.0
    %1395 = vmatprep.subr.mxu0 0.0
    %1396 = vmatpush1.xpose.msra.mxu0 0.0
    %1397 = vmatprep.subr.mxu0 0.0
    %1398 = vmatpush1.xpose.msra.mxu0 0.0
    %1399 = vmatprep.subr.mxu0 0.0
    %1400 = vmatpush1.xpose.msra.mxu0 0.0
    %1401 = vmatprep.subr.mxu0 0.0
    %1402 = vmatpush1.xpose.msra.mxu0 0.0
    %1403 = vmatprep.subr.mxu0 0.0
    %1404 = vmatpush1.xpose.msra.mxu0 0.0
    %1405 = vmatprep.subr.mxu0 0.0
    %1406 = vmatpush1.xpose.msra.mxu0 0.0
    %1407 = vmatprep.subr.mxu0 0.0
    %1408 = vmatpush1.xpose.msra.mxu0 0.0
    %1409 = vmatprep.subr.mxu0 0.0
    %1410 = vmatpush1.xpose.msra.mxu0 0.0
    %1411 = vmatprep.subr.mxu0 0.0
    %1412 = vmatpush1.xpose.msra.mxu0 0.0
    %1413 = vmatprep.subr.mxu0 0.0
    %1414 = vmatpush1.xpose.msra.mxu0 0.0
    %1415 = vmatprep.subr.mxu0 0.0
    %1416 = vmatpush1.xpose.msra.mxu0 0.0
    %1417 = vmatprep.subr.mxu0 0.0
    %1418 = vmatpush1.xpose.msra.mxu0 0.0
    %1419 = vmatprep.subr.mxu0 0.0
    %1420 = vmatpush1.xpose.msra.mxu0 0.0
    %1421 = vmatprep.subr.mxu0 0.0
    %1422 = vmatpush1.xpose.msra.mxu0 %v1253
    %1423 = vmatprep.subr.mxu0 0.0
    %1424 = vmatpush1.xpose.msra.mxu0 %v1250
    %1425 = vmatprep.subr.mxu0 0.0
    %1426 = vmatpush2.xpose.msra.mxu0 0.0
    %1427 = vmatprep.subr.mxu0 0.0
    %1428 = vmatpush2.xpose.msra.mxu0 0.0
    %1429 = vmatprep.subr.mxu0 0.0
    %1430 = vmatpush2.xpose.msra.mxu0 0.0
    %1431 = vmatprep.subr.mxu0 0.0
    %1432 = vmatpush2.xpose.msra.mxu0 0.0
    %1433 = vmatprep.subr.mxu0 0.0
    %1434 = vmatpush2.xpose.msra.mxu0 0.0
    %1435 = vmatprep.subr.mxu0 0.0
    %1436 = vmatpush2.xpose.msra.mxu0 0.0
    %1437 = vmatprep.subr.mxu0 0.0
    %1438 = vmatpush2.xpose.msra.mxu0 0.0
    %1439 = vmatprep.subr.mxu0 0.0
    %1440 = vmatpush2.xpose.msra.mxu0 0.0
    %1441 = vmatprep.subr.mxu0 0.0
    %1442 = vmatpush2.xpose.msra.mxu0 0.0
    %1443 = vmatprep.subr.mxu0 0.0
    %1444 = vmatpush2.xpose.msra.mxu0 0.0
    %1445 = vmatprep.subr.mxu0 0.0
    %1446 = vmatpush2.xpose.msra.mxu0 0.0
    %1447 = vmatprep.subr.mxu0 0.0
    %1448 = vmatpush2.xpose.msra.mxu0 0.0
    %1449 = vmatprep.subr.mxu0 0.0
    %1450 = vmatpush2.xpose.msra.mxu0 0.0
    %1451 = vmatprep.subr.mxu0 0.0
    %1452 = vmatpush2.xpose.msra.mxu0 0.0
    %1453 = vmatprep.subr.mxu0 0.0
    %1454 = vmatpush2.xpose.msra.mxu0 0.0
    %1455 = vmatprep.subr.mxu0 0.0
    %1456 = vmatpush2.xpose.msra.mxu0 0.0
    %1457 = vmatprep.mubr.f32.mxu0 0.0
    %1458 = vmatmul.mubr.f32.gmra.mxu0 %v1370
    %v1459 = vpop.f32.mrf.mxu0
    %v1460 = vadd.f32 0.0, %v1459
    %v1461 = vpop.f32.mrf.mxu0
    %1462 = vmatprep.mubr.f32.mxu0 0.0
    %1463 = vmatmul.mubr.f32.gmra.mxu0 %v1373
    %v1464 = vpop.f32.mrf.mxu0
    %v1465 = vadd.f32 0.0, %v1464
    %v1466 = vpop.f32.mrf.mxu0
    %1467 = vmatprep.mubr.f32.mxu0 0.0
    %1468 = vmatmul.mubr.f32.gmra.mxu0 %v1376
    %v1469 = vpop.f32.mrf.mxu0
    %v1470 = vadd.f32 0.0, %v1469
    %v1471 = vpop.f32.mrf.mxu0
    %1472 = vmatprep.mubr.f32.mxu0 0.0
    %1473 = vmatmul.mubr.f32.gmra.mxu0 %v1379
    %v1474 = vpop.f32.mrf.mxu0
    %v1475 = vadd.f32 0.0, %v1474
    %v1476 = vpop.f32.mrf.mxu0
    %1477 = vmatprep.mubr.f32.mxu0 0.0
    %1478 = vmatmul.mubr.f32.gmra.mxu0 %v1382
    %v1479 = vpop.f32.mrf.mxu0
    %v1480 = vadd.f32 0.0, %v1479
    %v1481 = vpop.f32.mrf.mxu0
    %1482 = vmatprep.mubr.f32.mxu0 0.0
    %1483 = vmatmul.mubr.f32.gmra.mxu0 %v1385
    %v1484 = vpop.f32.mrf.mxu0
    %v1485 = vadd.f32 0.0, %v1484
    %v1486 = vpop.f32.mrf.mxu0
    %1487 = vmatprep.mubr.f32.mxu0 0.0
    %1488 = vmatmul.mubr.f32.gmra.mxu0 %v1388
    %v1489 = vpop.f32.mrf.mxu0
    %v1490 = vadd.f32 0.0, %v1489
    %v1491 = vpop.f32.mrf.mxu0
    %1492 = vmatprep.mubr.f32.mxu0 0.0
    %1493 = vmatmul.mubr.f32.gmra.mxu0 %v1391
    %v1494 = vpop.f32.mrf.mxu0
    %v1495 = vadd.f32 0.0, %v1494
    %v1496 = vpop.f32.mrf.mxu0
    %1497 = vdwg.mxu0
    %s1498 = scalar_lea.vmem %s7, 128
    %v1499 = vld [vmem:[%s1498] sm:$0xff]
    %v1500 = vld [vmem:[%s1498 + $0x8] sm:$0xff]
    %v1501 = vld [vmem:[%s1498 + $0x10] sm:$0xff]
    %v1502 = vld [vmem:[%s1498 + $0x18] sm:$0xff]
    %v1503 = vld [vmem:[%s1498 + $0x20] sm:$0xff]
    %v1504 = vld [vmem:[%s1498 + $0x28] sm:$0xff]
    %v1505 = vld [vmem:[%s1498 + $0x30] sm:$0xff]
    %v1506 = vld [vmem:[%s1498 + $0x38] sm:$0xff]
    %v1508 = vsel %vm1224, %v1499, 0
    %v1511 = vsel %vm1224, %v1500, 0
    %v1514 = vsel %vm1224, %v1501, 0
    %v1517 = vsel %vm1224, %v1502, 0
    %v1520 = vsel %vm1224, %v1503, 0
    %v1523 = vsel %vm1224, %v1504, 0
    %v1526 = vsel %vm1224, %v1505, 0
    %v1529 = vsel %vm1224, %v1506, 0
    %1531 = vmatprep.subr.mxu0 0.0
    %1532 = vmatpush1.xpose.msra.mxu0 0.0
    %1533 = vmatprep.subr.mxu0 0.0
    %1534 = vmatpush1.xpose.msra.mxu0 0.0
    %1535 = vmatprep.subr.mxu0 0.0
    %1536 = vmatpush1.xpose.msra.mxu0 0.0
    %1537 = vmatprep.subr.mxu0 0.0
    %1538 = vmatpush1.xpose.msra.mxu0 0.0
    %1539 = vmatprep.subr.mxu0 0.0
    %1540 = vmatpush1.xpose.msra.mxu0 0.0
    %1541 = vmatprep.subr.mxu0 0.0
    %1542 = vmatpush1.xpose.msra.mxu0 0.0
    %1543 = vmatprep.subr.mxu0 0.0
    %1544 = vmatpush1.xpose.msra.mxu0 0.0
    %1545 = vmatprep.subr.mxu0 0.0
    %1546 = vmatpush1.xpose.msra.mxu0 0.0
    %1547 = vmatprep.subr.mxu0 0.0
    %1548 = vmatpush1.xpose.msra.mxu0 0.0
    %1549 = vmatprep.subr.mxu0 0.0
    %1550 = vmatpush1.xpose.msra.mxu0 0.0
    %1551 = vmatprep.subr.mxu0 0.0
    %1552 = vmatpush1.xpose.msra.mxu0 0.0
    %1553 = vmatprep.subr.mxu0 0.0
    %1554 = vmatpush1.xpose.msra.mxu0 0.0
    %1555 = vmatprep.subr.mxu0 0.0
    %1556 = vmatpush1.xpose.msra.mxu0 0.0
    %1557 = vmatprep.subr.mxu0 0.0
    %1558 = vmatpush1.xpose.msra.mxu0 0.0
    %1559 = vmatprep.subr.mxu0 0.0
    %1560 = vmatpush1.xpose.msra.mxu0 %v1253
    %1561 = vmatprep.subr.mxu0 0.0
    %1562 = vmatpush1.xpose.msra.mxu0 %v1250
    %1563 = vmatprep.subr.mxu0 0.0
    %1564 = vmatpush2.xpose.msra.mxu0 0.0
    %1565 = vmatprep.subr.mxu0 0.0
    %1566 = vmatpush2.xpose.msra.mxu0 0.0
    %1567 = vmatprep.subr.mxu0 0.0
    %1568 = vmatpush2.xpose.msra.mxu0 0.0
    %1569 = vmatprep.subr.mxu0 0.0
    %1570 = vmatpush2.xpose.msra.mxu0 0.0
    %1571 = vmatprep.subr.mxu0 0.0
    %1572 = vmatpush2.xpose.msra.mxu0 0.0
    %1573 = vmatprep.subr.mxu0 0.0
    %1574 = vmatpush2.xpose.msra.mxu0 0.0
    %1575 = vmatprep.subr.mxu0 0.0
    %1576 = vmatpush2.xpose.msra.mxu0 0.0
    %1577 = vmatprep.subr.mxu0 0.0
    %1578 = vmatpush2.xpose.msra.mxu0 0.0
    %1579 = vmatprep.subr.mxu0 0.0
    %1580 = vmatpush2.xpose.msra.mxu0 0.0
    %1581 = vmatprep.subr.mxu0 0.0
    %1582 = vmatpush2.xpose.msra.mxu0 0.0
    %1583 = vmatprep.subr.mxu0 0.0
    %1584 = vmatpush2.xpose.msra.mxu0 0.0
    %1585 = vmatprep.subr.mxu0 0.0
    %1586 = vmatpush2.xpose.msra.mxu0 0.0
    %1587 = vmatprep.subr.mxu0 0.0
    %1588 = vmatpush2.xpose.msra.mxu0 0.0
    %1589 = vmatprep.subr.mxu0 0.0
    %1590 = vmatpush2.xpose.msra.mxu0 0.0
    %1591 = vmatprep.subr.mxu0 0.0
    %1592 = vmatpush2.xpose.msra.mxu0 0.0
    %1593 = vmatprep.subr.mxu0 0.0
    %1594 = vmatpush2.xpose.msra.mxu0 0.0
    %1595 = vmatprep.mubr.f32.mxu0 0.0
    %1596 = vmatmul.mubr.f32.gmra.mxu0 %v1508
    %v1597 = vpop.f32.mrf.mxu0
    %v1598 = vadd.f32 0.0, %v1597
    %v1599 = vpop.f32.mrf.mxu0
    %1600 = vmatprep.mubr.f32.mxu0 0.0
    %1601 = vmatmul.mubr.f32.gmra.mxu0 %v1511
    %v1602 = vpop.f32.mrf.mxu0
    %v1603 = vadd.f32 0.0, %v1602
    %v1604 = vpop.f32.mrf.mxu0
    %1605 = vmatprep.mubr.f32.mxu0 0.0
    %1606 = vmatmul.mubr.f32.gmra.mxu0 %v1514
    %v1607 = vpop.f32.mrf.mxu0
    %v1608 = vadd.f32 0.0, %v1607
    %v1609 = vpop.f32.mrf.mxu0
    %1610 = vmatprep.mubr.f32.mxu0 0.0
    %1611 = vmatmul.mubr.f32.gmra.mxu0 %v1517
    %v1612 = vpop.f32.mrf.mxu0
    %v1613 = vadd.f32 0.0, %v1612
    %v1614 = vpop.f32.mrf.mxu0
    %1615 = vmatprep.mubr.f32.mxu0 0.0
    %1616 = vmatmul.mubr.f32.gmra.mxu0 %v1520
    %v1617 = vpop.f32.mrf.mxu0
    %v1618 = vadd.f32 0.0, %v1617
    %v1619 = vpop.f32.mrf.mxu0
    %1620 = vmatprep.mubr.f32.mxu0 0.0
    %1621 = vmatmul.mubr.f32.gmra.mxu0 %v1523
    %v1622 = vpop.f32.mrf.mxu0
    %v1623 = vadd.f32 0.0, %v1622
    %v1624 = vpop.f32.mrf.mxu0
    %1625 = vmatprep.mubr.f32.mxu0 0.0
    %1626 = vmatmul.mubr.f32.gmra.mxu0 %v1526
    %v1627 = vpop.f32.mrf.mxu0
    %v1628 = vadd.f32 0.0, %v1627
    %v1629 = vpop.f32.mrf.mxu0
    %1630 = vmatprep.mubr.f32.mxu0 0.0
    %1631 = vmatmul.mubr.f32.gmra.mxu0 %v1529
    %v1632 = vpop.f32.mrf.mxu0
    %v1633 = vadd.f32 0.0, %v1632
    %v1634 = vpop.f32.mrf.mxu0
    %1635 = vdwg.mxu0
    %s1636 = scalar_lea.vmem %s7, 192
    %v1637 = vld [vmem:[%s1636] sm:$0xff]
    %v1638 = vld [vmem:[%s1636 + $0x8] sm:$0xff]
    %v1639 = vld [vmem:[%s1636 + $0x10] sm:$0xff]
    %v1640 = vld [vmem:[%s1636 + $0x18] sm:$0xff]
    %v1641 = vld [vmem:[%s1636 + $0x20] sm:$0xff]
    %v1642 = vld [vmem:[%s1636 + $0x28] sm:$0xff]
    %v1643 = vld [vmem:[%s1636 + $0x30] sm:$0xff]
    %v1644 = vld [vmem:[%s1636 + $0x38] sm:$0xff]
    %v1646 = vsel %vm1224, %v1637, 0
    %v1649 = vsel %vm1224, %v1638, 0
    %v1652 = vsel %vm1224, %v1639, 0
    %v1655 = vsel %vm1224, %v1640, 0
    %v1658 = vsel %vm1224, %v1641, 0
    %v1661 = vsel %vm1224, %v1642, 0
    %v1664 = vsel %vm1224, %v1643, 0
    %v1667 = vsel %vm1224, %v1644, 0
    %1669 = vmatprep.subr.mxu0 0.0
    %1670 = vmatpush1.xpose.msra.mxu0 0.0
    %1671 = vmatprep.subr.mxu0 0.0
    %1672 = vmatpush1.xpose.msra.mxu0 0.0
    %1673 = vmatprep.subr.mxu0 0.0
    %1674 = vmatpush1.xpose.msra.mxu0 0.0
    %1675 = vmatprep.subr.mxu0 0.0
    %1676 = vmatpush1.xpose.msra.mxu0 0.0
    %1677 = vmatprep.subr.mxu0 0.0
    %1678 = vmatpush1.xpose.msra.mxu0 0.0
    %1679 = vmatprep.subr.mxu0 0.0
    %1680 = vmatpush1.xpose.msra.mxu0 0.0
    %1681 = vmatprep.subr.mxu0 0.0
    %1682 = vmatpush1.xpose.msra.mxu0 0.0
    %1683 = vmatprep.subr.mxu0 0.0
    %1684 = vmatpush1.xpose.msra.mxu0 0.0
    %1685 = vmatprep.subr.mxu0 0.0
    %1686 = vmatpush1.xpose.msra.mxu0 0.0
    %1687 = vmatprep.subr.mxu0 0.0
    %1688 = vmatpush1.xpose.msra.mxu0 0.0
    %1689 = vmatprep.subr.mxu0 0.0
    %1690 = vmatpush1.xpose.msra.mxu0 0.0
    %1691 = vmatprep.subr.mxu0 0.0
    %1692 = vmatpush1.xpose.msra.mxu0 0.0
    %1693 = vmatprep.subr.mxu0 0.0
    %1694 = vmatpush1.xpose.msra.mxu0 0.0
    %1695 = vmatprep.subr.mxu0 0.0
    %1696 = vmatpush1.xpose.msra.mxu0 0.0
    %1697 = vmatprep.subr.mxu0 0.0
    %1698 = vmatpush1.xpose.msra.mxu0 %v1253
    %1699 = vmatprep.subr.mxu0 0.0
    %1700 = vmatpush1.xpose.msra.mxu0 %v1250
    %1701 = vmatprep.subr.mxu0 0.0
    %1702 = vmatpush2.xpose.msra.mxu0 0.0
    %1703 = vmatprep.subr.mxu0 0.0
    %1704 = vmatpush2.xpose.msra.mxu0 0.0
    %1705 = vmatprep.subr.mxu0 0.0
    %1706 = vmatpush2.xpose.msra.mxu0 0.0
    %1707 = vmatprep.subr.mxu0 0.0
    %1708 = vmatpush2.xpose.msra.mxu0 0.0
    %1709 = vmatprep.subr.mxu0 0.0
    %1710 = vmatpush2.xpose.msra.mxu0 0.0
    %1711 = vmatprep.subr.mxu0 0.0
    %1712 = vmatpush2.xpose.msra.mxu0 0.0
    %1713 = vmatprep.subr.mxu0 0.0
    %1714 = vmatpush2.xpose.msra.mxu0 0.0
    %1715 = vmatprep.subr.mxu0 0.0
    %1716 = vmatpush2.xpose.msra.mxu0 0.0
    %1717 = vmatprep.subr.mxu0 0.0
    %1718 = vmatpush2.xpose.msra.mxu0 0.0
    %1719 = vmatprep.subr.mxu0 0.0
    %1720 = vmatpush2.xpose.msra.mxu0 0.0
    %1721 = vmatprep.subr.mxu0 0.0
    %1722 = vmatpush2.xpose.msra.mxu0 0.0
    %1723 = vmatprep.subr.mxu0 0.0
    %1724 = vmatpush2.xpose.msra.mxu0 0.0
    %1725 = vmatprep.subr.mxu0 0.0
    %1726 = vmatpush2.xpose.msra.mxu0 0.0
    %1727 = vmatprep.subr.mxu0 0.0
    %1728 = vmatpush2.xpose.msra.mxu0 0.0
    %1729 = vmatprep.subr.mxu0 0.0
    %1730 = vmatpush2.xpose.msra.mxu0 0.0
    %1731 = vmatprep.subr.mxu0 0.0
    %1732 = vmatpush2.xpose.msra.mxu0 0.0
    %1733 = vmatprep.mubr.f32.mxu0 0.0
    %1734 = vmatmul.mubr.f32.gmra.mxu0 %v1646
    %v1735 = vpop.f32.mrf.mxu0
    %v1736 = vadd.f32 0.0, %v1735
    %v1737 = vpop.f32.mrf.mxu0
    %1738 = vmatprep.mubr.f32.mxu0 0.0
    %1739 = vmatmul.mubr.f32.gmra.mxu0 %v1649
    %v1740 = vpop.f32.mrf.mxu0
    %v1741 = vadd.f32 0.0, %v1740
    %v1742 = vpop.f32.mrf.mxu0
    %1743 = vmatprep.mubr.f32.mxu0 0.0
    %1744 = vmatmul.mubr.f32.gmra.mxu0 %v1652
    %v1745 = vpop.f32.mrf.mxu0
    %v1746 = vadd.f32 0.0, %v1745
    %v1747 = vpop.f32.mrf.mxu0
    %1748 = vmatprep.mubr.f32.mxu0 0.0
    %1749 = vmatmul.mubr.f32.gmra.mxu0 %v1655
    %v1750 = vpop.f32.mrf.mxu0
    %v1751 = vadd.f32 0.0, %v1750
    %v1752 = vpop.f32.mrf.mxu0
    %1753 = vmatprep.mubr.f32.mxu0 0.0
    %1754 = vmatmul.mubr.f32.gmra.mxu0 %v1658
    %v1755 = vpop.f32.mrf.mxu0
    %v1756 = vadd.f32 0.0, %v1755
    %v1757 = vpop.f32.mrf.mxu0
    %1758 = vmatprep.mubr.f32.mxu0 0.0
    %1759 = vmatmul.mubr.f32.gmra.mxu0 %v1661
    %v1760 = vpop.f32.mrf.mxu0
    %v1761 = vadd.f32 0.0, %v1760
    %v1762 = vpop.f32.mrf.mxu0
    %1763 = vmatprep.mubr.f32.mxu0 0.0
    %1764 = vmatmul.mubr.f32.gmra.mxu0 %v1664
    %v1765 = vpop.f32.mrf.mxu0
    %v1766 = vadd.f32 0.0, %v1765
    %v1767 = vpop.f32.mrf.mxu0
    %1768 = vmatprep.mubr.f32.mxu0 0.0
    %1769 = vmatmul.mubr.f32.gmra.mxu0 %v1667
    %v1770 = vpop.f32.mrf.mxu0
    %v1771 = vadd.f32 0.0, %v1770
    %v1772 = vpop.f32.mrf.mxu0
    %1773 = vdwg.mxu0
    %s1774 = scalar_lea.vmem %s7, 256
    %v1775 = vld [vmem:[%s1774] sm:$0xff]
    %v1776 = vld [vmem:[%s1774 + $0x8] sm:$0xff]
    %v1777 = vld [vmem:[%s1774 + $0x10] sm:$0xff]
    %v1778 = vld [vmem:[%s1774 + $0x18] sm:$0xff]
    %v1779 = vld [vmem:[%s1774 + $0x20] sm:$0xff]
    %v1780 = vld [vmem:[%s1774 + $0x28] sm:$0xff]
    %v1781 = vld [vmem:[%s1774 + $0x30] sm:$0xff]
    %v1782 = vld [vmem:[%s1774 + $0x38] sm:$0xff]
    %v1784 = vsel %vm1224, %v1775, 0
    %v1787 = vsel %vm1224, %v1776, 0
    %v1790 = vsel %vm1224, %v1777, 0
    %v1793 = vsel %vm1224, %v1778, 0
    %v1796 = vsel %vm1224, %v1779, 0
    %v1799 = vsel %vm1224, %v1780, 0
    %v1802 = vsel %vm1224, %v1781, 0
    %v1805 = vsel %vm1224, %v1782, 0
    %1807 = vmatprep.subr.mxu0 0.0
    %1808 = vmatpush1.xpose.msra.mxu0 0.0
    %1809 = vmatprep.subr.mxu0 0.0
    %1810 = vmatpush1.xpose.msra.mxu0 0.0
    %1811 = vmatprep.subr.mxu0 0.0
    %1812 = vmatpush1.xpose.msra.mxu0 0.0
    %1813 = vmatprep.subr.mxu0 0.0
    %1814 = vmatpush1.xpose.msra.mxu0 0.0
    %1815 = vmatprep.subr.mxu0 0.0
    %1816 = vmatpush1.xpose.msra.mxu0 0.0
    %1817 = vmatprep.subr.mxu0 0.0
    %1818 = vmatpush1.xpose.msra.mxu0 0.0
    %1819 = vmatprep.subr.mxu0 0.0
    %1820 = vmatpush1.xpose.msra.mxu0 0.0
    %1821 = vmatprep.subr.mxu0 0.0
    %1822 = vmatpush1.xpose.msra.mxu0 0.0
    %1823 = vmatprep.subr.mxu0 0.0
    %1824 = vmatpush1.xpose.msra.mxu0 0.0
    %1825 = vmatprep.subr.mxu0 0.0
    %1826 = vmatpush1.xpose.msra.mxu0 0.0
    %1827 = vmatprep.subr.mxu0 0.0
    %1828 = vmatpush1.xpose.msra.mxu0 0.0
    %1829 = vmatprep.subr.mxu0 0.0
    %1830 = vmatpush1.xpose.msra.mxu0 0.0
    %1831 = vmatprep.subr.mxu0 0.0
    %1832 = vmatpush1.xpose.msra.mxu0 0.0
    %1833 = vmatprep.subr.mxu0 0.0
    %1834 = vmatpush1.xpose.msra.mxu0 0.0
    %1835 = vmatprep.subr.mxu0 0.0
    %1836 = vmatpush1.xpose.msra.mxu0 %v1253
    %1837 = vmatprep.subr.mxu0 0.0
    %1838 = vmatpush1.xpose.msra.mxu0 %v1250
    %1839 = vmatprep.subr.mxu0 0.0
    %1840 = vmatpush2.xpose.msra.mxu0 0.0
    %1841 = vmatprep.subr.mxu0 0.0
    %1842 = vmatpush2.xpose.msra.mxu0 0.0
    %1843 = vmatprep.subr.mxu0 0.0
    %1844 = vmatpush2.xpose.msra.mxu0 0.0
    %1845 = vmatprep.subr.mxu0 0.0
    %1846 = vmatpush2.xpose.msra.mxu0 0.0
    %1847 = vmatprep.subr.mxu0 0.0
    %1848 = vmatpush2.xpose.msra.mxu0 0.0
    %1849 = vmatprep.subr.mxu0 0.0
    %1850 = vmatpush2.xpose.msra.mxu0 0.0
    %1851 = vmatprep.subr.mxu0 0.0
    %1852 = vmatpush2.xpose.msra.mxu0 0.0
    %1853 = vmatprep.subr.mxu0 0.0
    %1854 = vmatpush2.xpose.msra.mxu0 0.0
    %1855 = vmatprep.subr.mxu0 0.0
    %1856 = vmatpush2.xpose.msra.mxu0 0.0
    %1857 = vmatprep.subr.mxu0 0.0
    %1858 = vmatpush2.xpose.msra.mxu0 0.0
    %1859 = vmatprep.subr.mxu0 0.0
    %1860 = vmatpush2.xpose.msra.mxu0 0.0
    %1861 = vmatprep.subr.mxu0 0.0
    %1862 = vmatpush2.xpose.msra.mxu0 0.0
    %1863 = vmatprep.subr.mxu0 0.0
    %1864 = vmatpush2.xpose.msra.mxu0 0.0
    %1865 = vmatprep.subr.mxu0 0.0
    %1866 = vmatpush2.xpose.msra.mxu0 0.0
    %1867 = vmatprep.subr.mxu0 0.0
    %1868 = vmatpush2.xpose.msra.mxu0 0.0
    %1869 = vmatprep.subr.mxu0 0.0
    %1870 = vmatpush2.xpose.msra.mxu0 0.0
    %1871 = vmatprep.mubr.f32.mxu0 0.0
    %1872 = vmatmul.mubr.f32.gmra.mxu0 %v1784
    %v1873 = vpop.f32.mrf.mxu0
    %v1874 = vadd.f32 0.0, %v1873
    %v1875 = vpop.f32.mrf.mxu0
    %1876 = vmatprep.mubr.f32.mxu0 0.0
    %1877 = vmatmul.mubr.f32.gmra.mxu0 %v1787
    %v1878 = vpop.f32.mrf.mxu0
    %v1879 = vadd.f32 0.0, %v1878
    %v1880 = vpop.f32.mrf.mxu0
    %1881 = vmatprep.mubr.f32.mxu0 0.0
    %1882 = vmatmul.mubr.f32.gmra.mxu0 %v1790
    %v1883 = vpop.f32.mrf.mxu0
    %v1884 = vadd.f32 0.0, %v1883
    %v1885 = vpop.f32.mrf.mxu0
    %1886 = vmatprep.mubr.f32.mxu0 0.0
    %1887 = vmatmul.mubr.f32.gmra.mxu0 %v1793
    %v1888 = vpop.f32.mrf.mxu0
    %v1889 = vadd.f32 0.0, %v1888
    %v1890 = vpop.f32.mrf.mxu0
    %1891 = vmatprep.mubr.f32.mxu0 0.0
    %1892 = vmatmul.mubr.f32.gmra.mxu0 %v1796
    %v1893 = vpop.f32.mrf.mxu0
    %v1894 = vadd.f32 0.0, %v1893
    %v1895 = vpop.f32.mrf.mxu0
    %1896 = vmatprep.mubr.f32.mxu0 0.0
    %1897 = vmatmul.mubr.f32.gmra.mxu0 %v1799
    %v1898 = vpop.f32.mrf.mxu0
    %v1899 = vadd.f32 0.0, %v1898
    %v1900 = vpop.f32.mrf.mxu0
    %1901 = vmatprep.mubr.f32.mxu0 0.0
    %1902 = vmatmul.mubr.f32.gmra.mxu0 %v1802
    %v1903 = vpop.f32.mrf.mxu0
    %v1904 = vadd.f32 0.0, %v1903
    %v1905 = vpop.f32.mrf.mxu0
    %1906 = vmatprep.mubr.f32.mxu0 0.0
    %1907 = vmatmul.mubr.f32.gmra.mxu0 %v1805
    %v1908 = vpop.f32.mrf.mxu0
    %v1909 = vadd.f32 0.0, %v1908
    %v1910 = vpop.f32.mrf.mxu0
    %1911 = vdwg.mxu0
    %s1912 = scalar_lea.vmem %s7, 320
    %v1913 = vld [vmem:[%s1912] sm:$0xff]
    %v1914 = vld [vmem:[%s1912 + $0x8] sm:$0xff]
    %v1915 = vld [vmem:[%s1912 + $0x10] sm:$0xff]
    %v1916 = vld [vmem:[%s1912 + $0x18] sm:$0xff]
    %v1917 = vld [vmem:[%s1912 + $0x20] sm:$0xff]
    %v1918 = vld [vmem:[%s1912 + $0x28] sm:$0xff]
    %v1919 = vld [vmem:[%s1912 + $0x30] sm:$0xff]
    %v1920 = vld [vmem:[%s1912 + $0x38] sm:$0xff]
    %v1922 = vsel %vm1224, %v1913, 0
    %v1925 = vsel %vm1224, %v1914, 0
    %v1928 = vsel %vm1224, %v1915, 0
    %v1931 = vsel %vm1224, %v1916, 0
    %v1934 = vsel %vm1224, %v1917, 0
    %v1937 = vsel %vm1224, %v1918, 0
    %v1940 = vsel %vm1224, %v1919, 0
    %v1943 = vsel %vm1224, %v1920, 0
    %1945 = vmatprep.subr.mxu0 0.0
    %1946 = vmatpush1.xpose.msra.mxu0 0.0
    %1947 = vmatprep.subr.mxu0 0.0
    %1948 = vmatpush1.xpose.msra.mxu0 0.0
    %1949 = vmatprep.subr.mxu0 0.0
    %1950 = vmatpush1.xpose.msra.mxu0 0.0
    %1951 = vmatprep.subr.mxu0 0.0
    %1952 = vmatpush1.xpose.msra.mxu0 0.0
    %1953 = vmatprep.subr.mxu0 0.0
    %1954 = vmatpush1.xpose.msra.mxu0 0.0
    %1955 = vmatprep.subr.mxu0 0.0
    %1956 = vmatpush1.xpose.msra.mxu0 0.0
    %1957 = vmatprep.subr.mxu0 0.0
    %1958 = vmatpush1.xpose.msra.mxu0 0.0
    %1959 = vmatprep.subr.mxu0 0.0
    %1960 = vmatpush1.xpose.msra.mxu0 0.0
    %1961 = vmatprep.subr.mxu0 0.0
    %1962 = vmatpush1.xpose.msra.mxu0 0.0
    %1963 = vmatprep.subr.mxu0 0.0
    %1964 = vmatpush1.xpose.msra.mxu0 0.0
    %1965 = vmatprep.subr.mxu0 0.0
    %1966 = vmatpush1.xpose.msra.mxu0 0.0
    %1967 = vmatprep.subr.mxu0 0.0
    %1968 = vmatpush1.xpose.msra.mxu0 0.0
    %1969 = vmatprep.subr.mxu0 0.0
    %1970 = vmatpush1.xpose.msra.mxu0 0.0
    %1971 = vmatprep.subr.mxu0 0.0
    %1972 = vmatpush1.xpose.msra.mxu0 0.0
    %1973 = vmatprep.subr.mxu0 0.0
    %1974 = vmatpush1.xpose.msra.mxu0 %v1253
    %1975 = vmatprep.subr.mxu0 0.0
    %1976 = vmatpush1.xpose.msra.mxu0 %v1250
    %1977 = vmatprep.subr.mxu0 0.0
    %1978 = vmatpush2.xpose.msra.mxu0 0.0
    %1979 = vmatprep.subr.mxu0 0.0
    %1980 = vmatpush2.xpose.msra.mxu0 0.0
    %1981 = vmatprep.subr.mxu0 0.0
    %1982 = vmatpush2.xpose.msra.mxu0 0.0
    %1983 = vmatprep.subr.mxu0 0.0
    %1984 = vmatpush2.xpose.msra.mxu0 0.0
    %1985 = vmatprep.subr.mxu0 0.0
    %1986 = vmatpush2.xpose.msra.mxu0 0.0
    %1987 = vmatprep.subr.mxu0 0.0
    %1988 = vmatpush2.xpose.msra.mxu0 0.0
    %1989 = vmatprep.subr.mxu0 0.0
    %1990 = vmatpush2.xpose.msra.mxu0 0.0
    %1991 = vmatprep.subr.mxu0 0.0
    %1992 = vmatpush2.xpose.msra.mxu0 0.0
    %1993 = vmatprep.subr.mxu0 0.0
    %1994 = vmatpush2.xpose.msra.mxu0 0.0
    %1995 = vmatprep.subr.mxu0 0.0
    %1996 = vmatpush2.xpose.msra.mxu0 0.0
    %1997 = vmatprep.subr.mxu0 0.0
    %1998 = vmatpush2.xpose.msra.mxu0 0.0
    %1999 = vmatprep.subr.mxu0 0.0
    %2000 = vmatpush2.xpose.msra.mxu0 0.0
    %2001 = vmatprep.subr.mxu0 0.0
    %2002 = vmatpush2.xpose.msra.mxu0 0.0
    %2003 = vmatprep.subr.mxu0 0.0
    %2004 = vmatpush2.xpose.msra.mxu0 0.0
    %2005 = vmatprep.subr.mxu0 0.0
    %2006 = vmatpush2.xpose.msra.mxu0 0.0
    %2007 = vmatprep.subr.mxu0 0.0
    %2008 = vmatpush2.xpose.msra.mxu0 0.0
    %2009 = vmatprep.mubr.f32.mxu0 0.0
    %2010 = vmatmul.mubr.f32.gmra.mxu0 %v1922
    %v2011 = vpop.f32.mrf.mxu0
    %v2012 = vadd.f32 0.0, %v2011
    %v2013 = vpop.f32.mrf.mxu0
    %2014 = vmatprep.mubr.f32.mxu0 0.0
    %2015 = vmatmul.mubr.f32.gmra.mxu0 %v1925
    %v2016 = vpop.f32.mrf.mxu0
    %v2017 = vadd.f32 0.0, %v2016
    %v2018 = vpop.f32.mrf.mxu0
    %2019 = vmatprep.mubr.f32.mxu0 0.0
    %2020 = vmatmul.mubr.f32.gmra.mxu0 %v1928
    %v2021 = vpop.f32.mrf.mxu0
    %v2022 = vadd.f32 0.0, %v2021
    %v2023 = vpop.f32.mrf.mxu0
    %2024 = vmatprep.mubr.f32.mxu0 0.0
    %2025 = vmatmul.mubr.f32.gmra.mxu0 %v1931
    %v2026 = vpop.f32.mrf.mxu0
    %v2027 = vadd.f32 0.0, %v2026
    %v2028 = vpop.f32.mrf.mxu0
    %2029 = vmatprep.mubr.f32.mxu0 0.0
    %2030 = vmatmul.mubr.f32.gmra.mxu0 %v1934
    %v2031 = vpop.f32.mrf.mxu0
    %v2032 = vadd.f32 0.0, %v2031
    %v2033 = vpop.f32.mrf.mxu0
    %2034 = vmatprep.mubr.f32.mxu0 0.0
    %2035 = vmatmul.mubr.f32.gmra.mxu0 %v1937
    %v2036 = vpop.f32.mrf.mxu0
    %v2037 = vadd.f32 0.0, %v2036
    %v2038 = vpop.f32.mrf.mxu0
    %2039 = vmatprep.mubr.f32.mxu0 0.0
    %2040 = vmatmul.mubr.f32.gmra.mxu0 %v1940
    %v2041 = vpop.f32.mrf.mxu0
    %v2042 = vadd.f32 0.0, %v2041
    %v2043 = vpop.f32.mrf.mxu0
    %2044 = vmatprep.mubr.f32.mxu0 0.0
    %2045 = vmatmul.mubr.f32.gmra.mxu0 %v1943
    %v2046 = vpop.f32.mrf.mxu0
    %v2047 = vadd.f32 0.0, %v2046
    %v2048 = vpop.f32.mrf.mxu0
    %2049 = vdwg.mxu0
    %s2050 = scalar_lea.vmem %s7, 384
    %v2051 = vld [vmem:[%s2050] sm:$0xff]
    %v2052 = vld [vmem:[%s2050 + $0x8] sm:$0xff]
    %v2053 = vld [vmem:[%s2050 + $0x10] sm:$0xff]
    %v2054 = vld [vmem:[%s2050 + $0x18] sm:$0xff]
    %v2055 = vld [vmem:[%s2050 + $0x20] sm:$0xff]
    %v2056 = vld [vmem:[%s2050 + $0x28] sm:$0xff]
    %v2057 = vld [vmem:[%s2050 + $0x30] sm:$0xff]
    %v2058 = vld [vmem:[%s2050 + $0x38] sm:$0xff]
    %v2060 = vsel %vm1224, %v2051, 0
    %v2063 = vsel %vm1224, %v2052, 0
    %v2066 = vsel %vm1224, %v2053, 0
    %v2069 = vsel %vm1224, %v2054, 0
    %v2072 = vsel %vm1224, %v2055, 0
    %v2075 = vsel %vm1224, %v2056, 0
    %v2078 = vsel %vm1224, %v2057, 0
    %v2081 = vsel %vm1224, %v2058, 0
    %2083 = vmatprep.subr.mxu0 0.0
    %2084 = vmatpush1.xpose.msra.mxu0 0.0
    %2085 = vmatprep.subr.mxu0 0.0
    %2086 = vmatpush1.xpose.msra.mxu0 0.0
    %2087 = vmatprep.subr.mxu0 0.0
    %2088 = vmatpush1.xpose.msra.mxu0 0.0
    %2089 = vmatprep.subr.mxu0 0.0
    %2090 = vmatpush1.xpose.msra.mxu0 0.0
    %2091 = vmatprep.subr.mxu0 0.0
    %2092 = vmatpush1.xpose.msra.mxu0 0.0
    %2093 = vmatprep.subr.mxu0 0.0
    %2094 = vmatpush1.xpose.msra.mxu0 0.0
    %2095 = vmatprep.subr.mxu0 0.0
    %2096 = vmatpush1.xpose.msra.mxu0 0.0
    %2097 = vmatprep.subr.mxu0 0.0
    %2098 = vmatpush1.xpose.msra.mxu0 0.0
    %2099 = vmatprep.subr.mxu0 0.0
    %2100 = vmatpush1.xpose.msra.mxu0 0.0
    %2101 = vmatprep.subr.mxu0 0.0
    %2102 = vmatpush1.xpose.msra.mxu0 0.0
    %2103 = vmatprep.subr.mxu0 0.0
    %2104 = vmatpush1.xpose.msra.mxu0 0.0
    %2105 = vmatprep.subr.mxu0 0.0
    %2106 = vmatpush1.xpose.msra.mxu0 0.0
    %2107 = vmatprep.subr.mxu0 0.0
    %2108 = vmatpush1.xpose.msra.mxu0 0.0
    %2109 = vmatprep.subr.mxu0 0.0
    %2110 = vmatpush1.xpose.msra.mxu0 0.0
    %2111 = vmatprep.subr.mxu0 0.0
    %2112 = vmatpush1.xpose.msra.mxu0 %v1253
    %2113 = vmatprep.subr.mxu0 0.0
    %2114 = vmatpush1.xpose.msra.mxu0 %v1250
    %2115 = vmatprep.subr.mxu0 0.0
    %2116 = vmatpush2.xpose.msra.mxu0 0.0
    %2117 = vmatprep.subr.mxu0 0.0
    %2118 = vmatpush2.xpose.msra.mxu0 0.0
    %2119 = vmatprep.subr.mxu0 0.0
    %2120 = vmatpush2.xpose.msra.mxu0 0.0
    %2121 = vmatprep.subr.mxu0 0.0
    %2122 = vmatpush2.xpose.msra.mxu0 0.0
    %2123 = vmatprep.subr.mxu0 0.0
    %2124 = vmatpush2.xpose.msra.mxu0 0.0
    %2125 = vmatprep.subr.mxu0 0.0
    %2126 = vmatpush2.xpose.msra.mxu0 0.0
    %2127 = vmatprep.subr.mxu0 0.0
    %2128 = vmatpush2.xpose.msra.mxu0 0.0
    %2129 = vmatprep.subr.mxu0 0.0
    %2130 = vmatpush2.xpose.msra.mxu0 0.0
    %2131 = vmatprep.subr.mxu0 0.0
    %2132 = vmatpush2.xpose.msra.mxu0 0.0
    %2133 = vmatprep.subr.mxu0 0.0
    %2134 = vmatpush2.xpose.msra.mxu0 0.0
    %2135 = vmatprep.subr.mxu0 0.0
    %2136 = vmatpush2.xpose.msra.mxu0 0.0
    %2137 = vmatprep.subr.mxu0 0.0
    %2138 = vmatpush2.xpose.msra.mxu0 0.0
    %2139 = vmatprep.subr.mxu0 0.0
    %2140 = vmatpush2.xpose.msra.mxu0 0.0
    %2141 = vmatprep.subr.mxu0 0.0
    %2142 = vmatpush2.xpose.msra.mxu0 0.0
    %2143 = vmatprep.subr.mxu0 0.0
    %2144 = vmatpush2.xpose.msra.mxu0 0.0
    %2145 = vmatprep.subr.mxu0 0.0
    %2146 = vmatpush2.xpose.msra.mxu0 0.0
    %2147 = vmatprep.mubr.f32.mxu0 0.0
    %2148 = vmatmul.mubr.f32.gmra.mxu0 %v2060
    %v2149 = vpop.f32.mrf.mxu0
    %v2150 = vadd.f32 0.0, %v2149
    %v2151 = vpop.f32.mrf.mxu0
    %2152 = vmatprep.mubr.f32.mxu0 0.0
    %2153 = vmatmul.mubr.f32.gmra.mxu0 %v2063
    %v2154 = vpop.f32.mrf.mxu0
    %v2155 = vadd.f32 0.0, %v2154
    %v2156 = vpop.f32.mrf.mxu0
    %2157 = vmatprep.mubr.f32.mxu0 0.0
    %2158 = vmatmul.mubr.f32.gmra.mxu0 %v2066
    %v2159 = vpop.f32.mrf.mxu0
    %v2160 = vadd.f32 0.0, %v2159
    %v2161 = vpop.f32.mrf.mxu0
    %2162 = vmatprep.mubr.f32.mxu0 0.0
    %2163 = vmatmul.mubr.f32.gmra.mxu0 %v2069
    %v2164 = vpop.f32.mrf.mxu0
    %v2165 = vadd.f32 0.0, %v2164
    %v2166 = vpop.f32.mrf.mxu0
    %2167 = vmatprep.mubr.f32.mxu0 0.0
    %2168 = vmatmul.mubr.f32.gmra.mxu0 %v2072
    %v2169 = vpop.f32.mrf.mxu0
    %v2170 = vadd.f32 0.0, %v2169
    %v2171 = vpop.f32.mrf.mxu0
    %2172 = vmatprep.mubr.f32.mxu0 0.0
    %2173 = vmatmul.mubr.f32.gmra.mxu0 %v2075
    %v2174 = vpop.f32.mrf.mxu0
    %v2175 = vadd.f32 0.0, %v2174
    %v2176 = vpop.f32.mrf.mxu0
    %2177 = vmatprep.mubr.f32.mxu0 0.0
    %2178 = vmatmul.mubr.f32.gmra.mxu0 %v2078
    %v2179 = vpop.f32.mrf.mxu0
    %v2180 = vadd.f32 0.0, %v2179
    %v2181 = vpop.f32.mrf.mxu0
    %2182 = vmatprep.mubr.f32.mxu0 0.0
    %2183 = vmatmul.mubr.f32.gmra.mxu0 %v2081
    %v2184 = vpop.f32.mrf.mxu0
    %v2185 = vadd.f32 0.0, %v2184
    %v2186 = vpop.f32.mrf.mxu0
    %2187 = vdwg.mxu0
    %s2188 = scalar_lea.vmem %s7, 448
    %v2189 = vld [vmem:[%s2188] sm:$0xff]
    %v2190 = vld [vmem:[%s2188 + $0x8] sm:$0xff]
    %v2191 = vld [vmem:[%s2188 + $0x10] sm:$0xff]
    %v2192 = vld [vmem:[%s2188 + $0x18] sm:$0xff]
    %v2193 = vld [vmem:[%s2188 + $0x20] sm:$0xff]
    %v2194 = vld [vmem:[%s2188 + $0x28] sm:$0xff]
    %v2195 = vld [vmem:[%s2188 + $0x30] sm:$0xff]
    %v2196 = vld [vmem:[%s2188 + $0x38] sm:$0xff]
    %v2198 = vsel %vm1224, %v2189, 0
    %v2201 = vsel %vm1224, %v2190, 0
    %v2204 = vsel %vm1224, %v2191, 0
    %v2207 = vsel %vm1224, %v2192, 0
    %v2210 = vsel %vm1224, %v2193, 0
    %v2213 = vsel %vm1224, %v2194, 0
    %v2216 = vsel %vm1224, %v2195, 0
    %v2219 = vsel %vm1224, %v2196, 0
    %2221 = vmatprep.subr.mxu0 0.0
    %2222 = vmatpush1.xpose.msra.mxu0 0.0
    %2223 = vmatprep.subr.mxu0 0.0
    %2224 = vmatpush1.xpose.msra.mxu0 0.0
    %2225 = vmatprep.subr.mxu0 0.0
    %2226 = vmatpush1.xpose.msra.mxu0 0.0
    %2227 = vmatprep.subr.mxu0 0.0
    %2228 = vmatpush1.xpose.msra.mxu0 0.0
    %2229 = vmatprep.subr.mxu0 0.0
    %2230 = vmatpush1.xpose.msra.mxu0 0.0
    %2231 = vmatprep.subr.mxu0 0.0
    %2232 = vmatpush1.xpose.msra.mxu0 0.0
    %2233 = vmatprep.subr.mxu0 0.0
    %2234 = vmatpush1.xpose.msra.mxu0 0.0
    %2235 = vmatprep.subr.mxu0 0.0
    %2236 = vmatpush1.xpose.msra.mxu0 0.0
    %2237 = vmatprep.subr.mxu0 0.0
    %2238 = vmatpush1.xpose.msra.mxu0 0.0
    %2239 = vmatprep.subr.mxu0 0.0
    %2240 = vmatpush1.xpose.msra.mxu0 0.0
    %2241 = vmatprep.subr.mxu0 0.0
    %2242 = vmatpush1.xpose.msra.mxu0 0.0
    %2243 = vmatprep.subr.mxu0 0.0
    %2244 = vmatpush1.xpose.msra.mxu0 0.0
    %2245 = vmatprep.subr.mxu0 0.0
    %2246 = vmatpush1.xpose.msra.mxu0 0.0
    %2247 = vmatprep.subr.mxu0 0.0
    %2248 = vmatpush1.xpose.msra.mxu0 0.0
    %2249 = vmatprep.subr.mxu0 0.0
    %2250 = vmatpush1.xpose.msra.mxu0 %v1253
    %2251 = vmatprep.subr.mxu0 0.0
    %2252 = vmatpush1.xpose.msra.mxu0 %v1250
    %2253 = vmatprep.subr.mxu0 0.0
    %2254 = vmatpush2.xpose.msra.mxu0 0.0
    %2255 = vmatprep.subr.mxu0 0.0
    %2256 = vmatpush2.xpose.msra.mxu0 0.0
    %2257 = vmatprep.subr.mxu0 0.0
    %2258 = vmatpush2.xpose.msra.mxu0 0.0
    %2259 = vmatprep.subr.mxu0 0.0
    %2260 = vmatpush2.xpose.msra.mxu0 0.0
    %2261 = vmatprep.subr.mxu0 0.0
    %2262 = vmatpush2.xpose.msra.mxu0 0.0
    %2263 = vmatprep.subr.mxu0 0.0
    %2264 = vmatpush2.xpose.msra.mxu0 0.0
    %2265 = vmatprep.subr.mxu0 0.0
    %2266 = vmatpush2.xpose.msra.mxu0 0.0
    %2267 = vmatprep.subr.mxu0 0.0
    %2268 = vmatpush2.xpose.msra.mxu0 0.0
    %2269 = vmatprep.subr.mxu0 0.0
    %2270 = vmatpush2.xpose.msra.mxu0 0.0
    %2271 = vmatprep.subr.mxu0 0.0
    %2272 = vmatpush2.xpose.msra.mxu0 0.0
    %2273 = vmatprep.subr.mxu0 0.0
    %2274 = vmatpush2.xpose.msra.mxu0 0.0
    %2275 = vmatprep.subr.mxu0 0.0
    %2276 = vmatpush2.xpose.msra.mxu0 0.0
    %2277 = vmatprep.subr.mxu0 0.0
    %2278 = vmatpush2.xpose.msra.mxu0 0.0
    %2279 = vmatprep.subr.mxu0 0.0
    %2280 = vmatpush2.xpose.msra.mxu0 0.0
    %2281 = vmatprep.subr.mxu0 0.0
    %2282 = vmatpush2.xpose.msra.mxu0 0.0
    %2283 = vmatprep.subr.mxu0 0.0
    %2284 = vmatpush2.xpose.msra.mxu0 0.0
    %2285 = vmatprep.mubr.f32.mxu0 0.0
    %2286 = vmatmul.mubr.f32.gmra.mxu0 %v2198
    %v2287 = vpop.f32.mrf.mxu0
    %v2288 = vadd.f32 0.0, %v2287
    %v2289 = vpop.f32.mrf.mxu0
    %2290 = vmatprep.mubr.f32.mxu0 0.0
    %2291 = vmatmul.mubr.f32.gmra.mxu0 %v2201
    %v2292 = vpop.f32.mrf.mxu0
    %v2293 = vadd.f32 0.0, %v2292
    %v2294 = vpop.f32.mrf.mxu0
    %2295 = vmatprep.mubr.f32.mxu0 0.0
    %2296 = vmatmul.mubr.f32.gmra.mxu0 %v2204
    %v2297 = vpop.f32.mrf.mxu0
    %v2298 = vadd.f32 0.0, %v2297
    %v2299 = vpop.f32.mrf.mxu0
    %2300 = vmatprep.mubr.f32.mxu0 0.0
    %2301 = vmatmul.mubr.f32.gmra.mxu0 %v2207
    %v2302 = vpop.f32.mrf.mxu0
    %v2303 = vadd.f32 0.0, %v2302
    %v2304 = vpop.f32.mrf.mxu0
    %2305 = vmatprep.mubr.f32.mxu0 0.0
    %2306 = vmatmul.mubr.f32.gmra.mxu0 %v2210
    %v2307 = vpop.f32.mrf.mxu0
    %v2308 = vadd.f32 0.0, %v2307
    %v2309 = vpop.f32.mrf.mxu0
    %2310 = vmatprep.mubr.f32.mxu0 0.0
    %2311 = vmatmul.mubr.f32.gmra.mxu0 %v2213
    %v2312 = vpop.f32.mrf.mxu0
    %v2313 = vadd.f32 0.0, %v2312
    %v2314 = vpop.f32.mrf.mxu0
    %2315 = vmatprep.mubr.f32.mxu0 0.0
    %2316 = vmatmul.mubr.f32.gmra.mxu0 %v2216
    %v2317 = vpop.f32.mrf.mxu0
    %v2318 = vadd.f32 0.0, %v2317
    %v2319 = vpop.f32.mrf.mxu0
    %2320 = vmatprep.mubr.f32.mxu0 0.0
    %2321 = vmatmul.mubr.f32.gmra.mxu0 %v2219
    %v2322 = vpop.f32.mrf.mxu0
    %v2323 = vadd.f32 0.0, %v2322
    %v2324 = vpop.f32.mrf.mxu0
    %2325 = vdwg.mxu0
    %s2326 = scalar_lea.vmem %s7, 512
    %v2327 = vld [vmem:[%s2326] sm:$0xff]
    %v2328 = vld [vmem:[%s2326 + $0x8] sm:$0xff]
    %v2329 = vld [vmem:[%s2326 + $0x10] sm:$0xff]
    %v2330 = vld [vmem:[%s2326 + $0x18] sm:$0xff]
    %v2331 = vld [vmem:[%s2326 + $0x20] sm:$0xff]
    %v2332 = vld [vmem:[%s2326 + $0x28] sm:$0xff]
    %v2333 = vld [vmem:[%s2326 + $0x30] sm:$0xff]
    %v2334 = vld [vmem:[%s2326 + $0x38] sm:$0xff]
    %v2336 = vsel %vm1224, %v2327, 0
    %v2339 = vsel %vm1224, %v2328, 0
    %v2342 = vsel %vm1224, %v2329, 0
    %v2345 = vsel %vm1224, %v2330, 0
    %v2348 = vsel %vm1224, %v2331, 0
    %v2351 = vsel %vm1224, %v2332, 0
    %v2354 = vsel %vm1224, %v2333, 0
    %v2357 = vsel %vm1224, %v2334, 0
    %2359 = vmatprep.subr.mxu0 0.0
    %2360 = vmatpush1.xpose.msra.mxu0 0.0
    %2361 = vmatprep.subr.mxu0 0.0
    %2362 = vmatpush1.xpose.msra.mxu0 0.0
    %2363 = vmatprep.subr.mxu0 0.0
    %2364 = vmatpush1.xpose.msra.mxu0 0.0
    %2365 = vmatprep.subr.mxu0 0.0
    %2366 = vmatpush1.xpose.msra.mxu0 0.0
    %2367 = vmatprep.subr.mxu0 0.0
    %2368 = vmatpush1.xpose.msra.mxu0 0.0
    %2369 = vmatprep.subr.mxu0 0.0
    %2370 = vmatpush1.xpose.msra.mxu0 0.0
    %2371 = vmatprep.subr.mxu0 0.0
    %2372 = vmatpush1.xpose.msra.mxu0 0.0
    %2373 = vmatprep.subr.mxu0 0.0
    %2374 = vmatpush1.xpose.msra.mxu0 0.0
    %2375 = vmatprep.subr.mxu0 0.0
    %2376 = vmatpush1.xpose.msra.mxu0 0.0
    %2377 = vmatprep.subr.mxu0 0.0
    %2378 = vmatpush1.xpose.msra.mxu0 0.0
    %2379 = vmatprep.subr.mxu0 0.0
    %2380 = vmatpush1.xpose.msra.mxu0 0.0
    %2381 = vmatprep.subr.mxu0 0.0
    %2382 = vmatpush1.xpose.msra.mxu0 0.0
    %2383 = vmatprep.subr.mxu0 0.0
    %2384 = vmatpush1.xpose.msra.mxu0 0.0
    %2385 = vmatprep.subr.mxu0 0.0
    %2386 = vmatpush1.xpose.msra.mxu0 0.0
    %2387 = vmatprep.subr.mxu0 0.0
    %2388 = vmatpush1.xpose.msra.mxu0 %v1253
    %2389 = vmatprep.subr.mxu0 0.0
    %2390 = vmatpush1.xpose.msra.mxu0 %v1250
    %2391 = vmatprep.subr.mxu0 0.0
    %2392 = vmatpush2.xpose.msra.mxu0 0.0
    %2393 = vmatprep.subr.mxu0 0.0
    %2394 = vmatpush2.xpose.msra.mxu0 0.0
    %2395 = vmatprep.subr.mxu0 0.0
    %2396 = vmatpush2.xpose.msra.mxu0 0.0
    %2397 = vmatprep.subr.mxu0 0.0
    %2398 = vmatpush2.xpose.msra.mxu0 0.0
    %2399 = vmatprep.subr.mxu0 0.0
    %2400 = vmatpush2.xpose.msra.mxu0 0.0
    %2401 = vmatprep.subr.mxu0 0.0
    %2402 = vmatpush2.xpose.msra.mxu0 0.0
    %2403 = vmatprep.subr.mxu0 0.0
    %2404 = vmatpush2.xpose.msra.mxu0 0.0
    %2405 = vmatprep.subr.mxu0 0.0
    %2406 = vmatpush2.xpose.msra.mxu0 0.0
    %2407 = vmatprep.subr.mxu0 0.0
    %2408 = vmatpush2.xpose.msra.mxu0 0.0
    %2409 = vmatprep.subr.mxu0 0.0
    %2410 = vmatpush2.xpose.msra.mxu0 0.0
    %2411 = vmatprep.subr.mxu0 0.0
    %2412 = vmatpush2.xpose.msra.mxu0 0.0
    %2413 = vmatprep.subr.mxu0 0.0
    %2414 = vmatpush2.xpose.msra.mxu0 0.0
    %2415 = vmatprep.subr.mxu0 0.0
    %2416 = vmatpush2.xpose.msra.mxu0 0.0
    %2417 = vmatprep.subr.mxu0 0.0
    %2418 = vmatpush2.xpose.msra.mxu0 0.0
    %2419 = vmatprep.subr.mxu0 0.0
    %2420 = vmatpush2.xpose.msra.mxu0 0.0
    %2421 = vmatprep.subr.mxu0 0.0
    %2422 = vmatpush2.xpose.msra.mxu0 0.0
    %2423 = vmatprep.mubr.f32.mxu0 0.0
    %2424 = vmatmul.mubr.f32.gmra.mxu0 %v2336
    %v2425 = vpop.f32.mrf.mxu0
    %v2426 = vadd.f32 0.0, %v2425
    %v2427 = vpop.f32.mrf.mxu0
    %2428 = vmatprep.mubr.f32.mxu0 0.0
    %2429 = vmatmul.mubr.f32.gmra.mxu0 %v2339
    %v2430 = vpop.f32.mrf.mxu0
    %v2431 = vadd.f32 0.0, %v2430
    %v2432 = vpop.f32.mrf.mxu0
    %2433 = vmatprep.mubr.f32.mxu0 0.0
    %2434 = vmatmul.mubr.f32.gmra.mxu0 %v2342
    %v2435 = vpop.f32.mrf.mxu0
    %v2436 = vadd.f32 0.0, %v2435
    %v2437 = vpop.f32.mrf.mxu0
    %2438 = vmatprep.mubr.f32.mxu0 0.0
    %2439 = vmatmul.mubr.f32.gmra.mxu0 %v2345
    %v2440 = vpop.f32.mrf.mxu0
    %v2441 = vadd.f32 0.0, %v2440
    %v2442 = vpop.f32.mrf.mxu0
    %2443 = vmatprep.mubr.f32.mxu0 0.0
    %2444 = vmatmul.mubr.f32.gmra.mxu0 %v2348
    %v2445 = vpop.f32.mrf.mxu0
    %v2446 = vadd.f32 0.0, %v2445
    %v2447 = vpop.f32.mrf.mxu0
    %2448 = vmatprep.mubr.f32.mxu0 0.0
    %2449 = vmatmul.mubr.f32.gmra.mxu0 %v2351
    %v2450 = vpop.f32.mrf.mxu0
    %v2451 = vadd.f32 0.0, %v2450
    %v2452 = vpop.f32.mrf.mxu0
    %2453 = vmatprep.mubr.f32.mxu0 0.0
    %2454 = vmatmul.mubr.f32.gmra.mxu0 %v2354
    %v2455 = vpop.f32.mrf.mxu0
    %v2456 = vadd.f32 0.0, %v2455
    %v2457 = vpop.f32.mrf.mxu0
    %2458 = vmatprep.mubr.f32.mxu0 0.0
    %2459 = vmatmul.mubr.f32.gmra.mxu0 %v2357
    %v2460 = vpop.f32.mrf.mxu0
    %v2461 = vadd.f32 0.0, %v2460
    %v2462 = vpop.f32.mrf.mxu0
    %2463 = vdwg.mxu0
    %2472 = vrot.lane.b32.xlu0 %v1460, 16
    %v2473 = vpop.permute.xlu0 %2472
    %2474 = vrot.lane.b32.xlu0 %v1465, 16
    %v2475 = vpop.permute.xlu0 %2474
    %2476 = vrot.lane.b32.xlu0 %v1470, 16
    %v2477 = vpop.permute.xlu0 %2476
    %2478 = vrot.lane.b32.xlu0 %v1475, 16
    %v2479 = vpop.permute.xlu0 %2478
    %2480 = vrot.lane.b32.xlu0 %v1480, 16
    %v2481 = vpop.permute.xlu0 %2480
    %2482 = vrot.lane.b32.xlu0 %v1485, 16
    %v2483 = vpop.permute.xlu0 %2482
    %2484 = vrot.lane.b32.xlu0 %v1490, 16
    %v2485 = vpop.permute.xlu0 %2484
    %2486 = vrot.lane.b32.xlu0 %v1495, 16
    %v2487 = vpop.permute.xlu0 %2486
    %2504 = vrot.lane.b32.xlu0 %v1598, 32
    %v2505 = vpop.permute.xlu0 %2504
    %2506 = vrot.lane.b32.xlu0 %v1603, 32
    %v2507 = vpop.permute.xlu0 %2506
    %2508 = vrot.lane.b32.xlu0 %v1608, 32
    %v2509 = vpop.permute.xlu0 %2508
    %2510 = vrot.lane.b32.xlu0 %v1613, 32
    %v2511 = vpop.permute.xlu0 %2510
    %2512 = vrot.lane.b32.xlu0 %v1618, 32
    %v2513 = vpop.permute.xlu0 %2512
    %2514 = vrot.lane.b32.xlu0 %v1623, 32
    %v2515 = vpop.permute.xlu0 %2514
    %2516 = vrot.lane.b32.xlu0 %v1628, 32
    %v2517 = vpop.permute.xlu0 %2516
    %2518 = vrot.lane.b32.xlu0 %v1633, 32
    %v2519 = vpop.permute.xlu0 %2518
    %2536 = vrot.lane.b32.xlu0 %v1736, 48
    %v2537 = vpop.permute.xlu0 %2536
    %2538 = vrot.lane.b32.xlu0 %v1741, 48
    %v2539 = vpop.permute.xlu0 %2538
    %2540 = vrot.lane.b32.xlu0 %v1746, 48
    %v2541 = vpop.permute.xlu0 %2540
    %2542 = vrot.lane.b32.xlu0 %v1751, 48
    %v2543 = vpop.permute.xlu0 %2542
    %2544 = vrot.lane.b32.xlu0 %v1756, 48
    %v2545 = vpop.permute.xlu0 %2544
    %2546 = vrot.lane.b32.xlu0 %v1761, 48
    %v2547 = vpop.permute.xlu0 %2546
    %2548 = vrot.lane.b32.xlu0 %v1766, 48
    %v2549 = vpop.permute.xlu0 %2548
    %2550 = vrot.lane.b32.xlu0 %v1771, 48
    %v2551 = vpop.permute.xlu0 %2550
    %2568 = vrot.lane.b32.xlu0 %v1874, 64
    %v2569 = vpop.permute.xlu0 %2568
    %2570 = vrot.lane.b32.xlu0 %v1879, 64
    %v2571 = vpop.permute.xlu0 %2570
    %2572 = vrot.lane.b32.xlu0 %v1884, 64
    %v2573 = vpop.permute.xlu0 %2572
    %2574 = vrot.lane.b32.xlu0 %v1889, 64
    %v2575 = vpop.permute.xlu0 %2574
    %2576 = vrot.lane.b32.xlu0 %v1894, 64
    %v2577 = vpop.permute.xlu0 %2576
    %2578 = vrot.lane.b32.xlu0 %v1899, 64
    %v2579 = vpop.permute.xlu0 %2578
    %2580 = vrot.lane.b32.xlu0 %v1904, 64
    %v2581 = vpop.permute.xlu0 %2580
    %2582 = vrot.lane.b32.xlu0 %v1909, 64
    %v2583 = vpop.permute.xlu0 %2582
    %2600 = vrot.lane.b32.xlu0 %v2012, 80
    %v2601 = vpop.permute.xlu0 %2600
    %2602 = vrot.lane.b32.xlu0 %v2017, 80
    %v2603 = vpop.permute.xlu0 %2602
    %2604 = vrot.lane.b32.xlu0 %v2022, 80
    %v2605 = vpop.permute.xlu0 %2604
    %2606 = vrot.lane.b32.xlu0 %v2027, 80
    %v2607 = vpop.permute.xlu0 %2606
    %2608 = vrot.lane.b32.xlu0 %v2032, 80
    %v2609 = vpop.permute.xlu0 %2608
    %2610 = vrot.lane.b32.xlu0 %v2037, 80
    %v2611 = vpop.permute.xlu0 %2610
    %2612 = vrot.lane.b32.xlu0 %v2042, 80
    %v2613 = vpop.permute.xlu0 %2612
    %2614 = vrot.lane.b32.xlu0 %v2047, 80
    %v2615 = vpop.permute.xlu0 %2614
    %2632 = vrot.lane.b32.xlu0 %v2150, 96
    %v2633 = vpop.permute.xlu0 %2632
    %2634 = vrot.lane.b32.xlu0 %v2155, 96
    %v2635 = vpop.permute.xlu0 %2634
    %2636 = vrot.lane.b32.xlu0 %v2160, 96
    %v2637 = vpop.permute.xlu0 %2636
    %2638 = vrot.lane.b32.xlu0 %v2165, 96
    %v2639 = vpop.permute.xlu0 %2638
    %2640 = vrot.lane.b32.xlu0 %v2170, 96
    %v2641 = vpop.permute.xlu0 %2640
    %2642 = vrot.lane.b32.xlu0 %v2175, 96
    %v2643 = vpop.permute.xlu0 %2642
    %2644 = vrot.lane.b32.xlu0 %v2180, 96
    %v2645 = vpop.permute.xlu0 %2644
    %2646 = vrot.lane.b32.xlu0 %v2185, 96
    %v2647 = vpop.permute.xlu0 %2646
    %2664 = vrot.lane.b32.xlu0 %v2288, 112
    %v2665 = vpop.permute.xlu0 %2664
    %2666 = vrot.lane.b32.xlu0 %v2293, 112
    %v2667 = vpop.permute.xlu0 %2666
    %2668 = vrot.lane.b32.xlu0 %v2298, 112
    %v2669 = vpop.permute.xlu0 %2668
    %2670 = vrot.lane.b32.xlu0 %v2303, 112
    %v2671 = vpop.permute.xlu0 %2670
    %2672 = vrot.lane.b32.xlu0 %v2308, 112
    %v2673 = vpop.permute.xlu0 %2672
    %2674 = vrot.lane.b32.xlu0 %v2313, 112
    %v2675 = vpop.permute.xlu0 %2674
    %2676 = vrot.lane.b32.xlu0 %v2318, 112
    %v2677 = vpop.permute.xlu0 %2676
    %2678 = vrot.lane.b32.xlu0 %v2323, 112
    %v2679 = vpop.permute.xlu0 %2678
    %v2688 = vsel %vm436, %v1322, %v2473
    %v2689 = vsel %vm436, %v1327, %v2475
    %v2690 = vsel %vm436, %v1332, %v2477
    %v2691 = vsel %vm436, %v1337, %v2479
    %v2692 = vsel %vm436, %v1342, %v2481
    %v2693 = vsel %vm436, %v1347, %v2483
    %v2694 = vsel %vm436, %v1352, %v2485
    %v2695 = vsel %vm436, %v1357, %v2487
    %v2696 = vsel %vm348, %v2688, %v2505
    %v2697 = vsel %vm348, %v2689, %v2507
    %v2698 = vsel %vm348, %v2690, %v2509
    %v2699 = vsel %vm348, %v2691, %v2511
    %v2700 = vsel %vm348, %v2692, %v2513
    %v2701 = vsel %vm348, %v2693, %v2515
    %v2702 = vsel %vm348, %v2694, %v2517
    %v2703 = vsel %vm348, %v2695, %v2519
    %vm2704 = vcmask 392192
    %v2705 = vsel %vm2704, %v2696, %v2537
    %v2706 = vsel %vm2704, %v2697, %v2539
    %v2707 = vsel %vm2704, %v2698, %v2541
    %v2708 = vsel %vm2704, %v2699, %v2543
    %v2709 = vsel %vm2704, %v2700, %v2545
    %v2710 = vsel %vm2704, %v2701, %v2547
    %v2711 = vsel %vm2704, %v2702, %v2549
    %v2712 = vsel %vm2704, %v2703, %v2551
    %v2713 = vsel %vm1224, %v2705, %v2569
    %v2714 = vsel %vm1224, %v2706, %v2571
    %v2715 = vsel %vm1224, %v2707, %v2573
    %v2716 = vsel %vm1224, %v2708, %v2575
    %v2717 = vsel %vm1224, %v2709, %v2577
    %v2718 = vsel %vm1224, %v2710, %v2579
    %v2719 = vsel %vm1224, %v2711, %v2581
    %v2720 = vsel %vm1224, %v2712, %v2583
    %vm2721 = vcmask 654336
    %v2722 = vsel %vm2721, %v2713, %v2601
    %v2723 = vsel %vm2721, %v2714, %v2603
    %v2724 = vsel %vm2721, %v2715, %v2605
    %v2725 = vsel %vm2721, %v2716, %v2607
    %v2726 = vsel %vm2721, %v2717, %v2609
    %v2727 = vsel %vm2721, %v2718, %v2611
    %v2728 = vsel %vm2721, %v2719, %v2613
    %v2729 = vsel %vm2721, %v2720, %v2615
    %vm2730 = vcmask 785408
    %v2731 = vsel %vm2730, %v2722, %v2633
    %v2732 = vsel %vm2730, %v2723, %v2635
    %v2733 = vsel %vm2730, %v2724, %v2637
    %v2734 = vsel %vm2730, %v2725, %v2639
    %v2735 = vsel %vm2730, %v2726, %v2641
    %v2736 = vsel %vm2730, %v2727, %v2643
    %v2737 = vsel %vm2730, %v2728, %v2645
    %v2738 = vsel %vm2730, %v2729, %v2647
    %vm2739 = vcmask 916480
    %v2740 = vsel %vm2739, %v2731, %v2665
    %v2741 = vsel %vm2739, %v2732, %v2667
    %v2742 = vsel %vm2739, %v2733, %v2669
    %v2743 = vsel %vm2739, %v2734, %v2671
    %v2744 = vsel %vm2739, %v2735, %v2673
    %v2745 = vsel %vm2739, %v2736, %v2675
    %v2746 = vsel %vm2739, %v2737, %v2677
    %v2747 = vsel %vm2739, %v2738, %v2679
    %v2748 = vld [vmem:[%s9] sm:$0xff]
    %v2749 = vld [vmem:[%s9 + $0x8] sm:$0xff]
    %v2750 = vld [vmem:[%s9 + $0x10] sm:$0xff]
    %v2751 = vld [vmem:[%s9 + $0x18] sm:$0xff]
    %v2752 = vld [vmem:[%s9 + $0x20] sm:$0xff]
    %v2753 = vld [vmem:[%s9 + $0x28] sm:$0xff]
    %v2754 = vld [vmem:[%s9 + $0x30] sm:$0xff]
    %v2755 = vld [vmem:[%s9 + $0x38] sm:$0xff]
    %v2756 = vld [vmem:[%s9 + $0x40] sm:$0xff]
    %v2757 = vld [vmem:[%s9 + $0x48] sm:$0xff]
    %v2758 = vld [vmem:[%s9 + $0x50] sm:$0xff]
    %v2759 = vld [vmem:[%s9 + $0x58] sm:$0xff]
    %v2760 = vld [vmem:[%s9 + $0x60] sm:$0xff]
    %v2761 = vld [vmem:[%s9 + $0x68] sm:$0xff]
    %v2762 = vld [vmem:[%s9 + $0x70] sm:$0xff]
    %v2763 = vld [vmem:[%s9 + $0x78] sm:$0xff]
    %v2764 = vld [vmem:[%s9 + $0x80] sm:$0xff]
    %v2765 = vld [vmem:[%s9 + $0x88] sm:$0xff]
    %v2766 = vld [vmem:[%s9 + $0x90] sm:$0xff]
    %v2767 = vld [vmem:[%s9 + $0x98] sm:$0xff]
    %v2768 = vld [vmem:[%s9 + $0xa0] sm:$0xff]
    %v2769 = vld [vmem:[%s9 + $0xa8] sm:$0xff]
    %v2770 = vld [vmem:[%s9 + $0xb0] sm:$0xff]
    %v2771 = vld [vmem:[%s9 + $0xb8] sm:$0xff]
    %v2772 = vld [vmem:[%s9 + $0xc0] sm:$0xff]
    %v2773 = vld [vmem:[%s9 + $0xc8] sm:$0xff]
    %v2774 = vld [vmem:[%s9 + $0xd0] sm:$0xff]
    %v2775 = vld [vmem:[%s9 + $0xd8] sm:$0xff]
    %v2776 = vld [vmem:[%s9 + $0xe0] sm:$0xff]
    %v2777 = vld [vmem:[%s9 + $0xe8] sm:$0xff]
    %v2778 = vld [vmem:[%s9 + $0xf0] sm:$0xff]
    %v2779 = vld [vmem:[%s9 + $0xf8] sm:$0xff]
    %v2780 = vld [vmem:[%s9 + $0x100] sm:$0xff]
    %v2781 = vld [vmem:[%s9 + $0x108] sm:$0xff]
    %v2782 = vld [vmem:[%s9 + $0x110] sm:$0xff]
    %v2783 = vld [vmem:[%s9 + $0x118] sm:$0xff]
    %v2784 = vld [vmem:[%s8] sm:$0xff]
    %v2785 = vld [vmem:[%s8 + $0x8] sm:$0xff]
    %v2786 = vld [vmem:[%s8 + $0x10] sm:$0xff]
    %v2787 = vld [vmem:[%s8 + $0x18] sm:$0xff]
    %v2788 = vld [vmem:[%s8 + $0x20] sm:$0xff]
    %v2789 = vld [vmem:[%s8 + $0x28] sm:$0xff]
    %v2790 = vld [vmem:[%s8 + $0x30] sm:$0xff]
    %v2791 = vld [vmem:[%s8 + $0x38] sm:$0xff]
    %2793 = vset.pattern.permute.xlu0 0
    %2794 = vperm.xlu0 %2793, %v2784
    %v2795 = vpop.permute.xlu0 %2794
    %2798 = vset.pattern.permute.xlu0 0
    %2799 = vperm.xlu0 %2798, %v2785
    %v2800 = vpop.permute.xlu0 %2799
    %2803 = vset.pattern.permute.xlu0 0
    %2804 = vperm.xlu0 %2803, %v2786
    %v2805 = vpop.permute.xlu0 %2804
    %2808 = vset.pattern.permute.xlu0 0
    %2809 = vperm.xlu0 %2808, %v2787
    %v2810 = vpop.permute.xlu0 %2809
    %2813 = vset.pattern.permute.xlu0 0
    %2814 = vperm.xlu0 %2813, %v2788
    %v2815 = vpop.permute.xlu0 %2814
    %2818 = vset.pattern.permute.xlu0 0
    %2819 = vperm.xlu0 %2818, %v2789
    %v2820 = vpop.permute.xlu0 %2819
    %2823 = vset.pattern.permute.xlu0 0
    %2824 = vperm.xlu0 %2823, %v2790
    %v2825 = vpop.permute.xlu0 %2824
    %2828 = vset.pattern.permute.xlu0 0
    %2829 = vperm.xlu0 %2828, %v2791
    %v2830 = vpop.permute.xlu0 %2829
    %v2833 = vsel %vm436, %v2426, 0
    %v2836 = vsel %vm436, %v2431, 0
    %v2839 = vsel %vm436, %v2436, 0
    %v2842 = vsel %vm436, %v2441, 0
    %v2845 = vsel %vm436, %v2446, 0
    %v2848 = vsel %vm436, %v2451, 0
    %v2851 = vsel %vm436, %v2456, 0
    %v2854 = vsel %vm436, %v2461, 0
    %2856 = vmatprep.subr.mxu0 %v2779
    %2857 = vmatpush1.msra.mxu0 %v2778
    %2858 = vmatprep.subr.mxu0 %v2777
    %2859 = vmatpush1.msra.mxu0 %v2776
    %2860 = vmatprep.subr.mxu0 %v2775
    %2861 = vmatpush1.msra.mxu0 %v2774
    %2862 = vmatprep.subr.mxu0 %v2773
    %2863 = vmatpush1.msra.mxu0 %v2772
    %2864 = vmatprep.subr.mxu0 %v2771
    %2865 = vmatpush1.msra.mxu0 %v2770
    %2866 = vmatprep.subr.mxu0 %v2769
    %2867 = vmatpush1.msra.mxu0 %v2768
    %2868 = vmatprep.subr.mxu0 %v2767
    %2869 = vmatpush1.msra.mxu0 %v2766
    %2870 = vmatprep.subr.mxu0 %v2765
    %2871 = vmatpush1.msra.mxu0 %v2764
    %2872 = vmatprep.subr.mxu0 %v2763
    %2873 = vmatpush1.msra.mxu0 %v2762
    %2874 = vmatprep.subr.mxu0 %v2761
    %2875 = vmatpush1.msra.mxu0 %v2760
    %2876 = vmatprep.subr.mxu0 %v2759
    %2877 = vmatpush1.msra.mxu0 %v2758
    %2878 = vmatprep.subr.mxu0 %v2757
    %2879 = vmatpush1.msra.mxu0 %v2756
    %2880 = vmatprep.subr.mxu0 %v2755
    %2881 = vmatpush1.msra.mxu0 %v2754
    %2882 = vmatprep.subr.mxu0 %v2753
    %2883 = vmatpush1.msra.mxu0 %v2752
    %2884 = vmatprep.subr.mxu0 %v2751
    %2885 = vmatpush1.msra.mxu0 %v2750
    %2886 = vmatprep.subr.mxu0 %v2749
    %2887 = vmatpush1.msra.mxu0 %v2748
    %2888 = vmatprep.subr.mxu0 0.0
    %2889 = vmatpush2.msra.mxu0 0.0
    %2890 = vmatprep.subr.mxu0 0.0
    %2891 = vmatpush2.msra.mxu0 0.0
    %2892 = vmatprep.subr.mxu0 0.0
    %2893 = vmatpush2.msra.mxu0 0.0
    %2894 = vmatprep.subr.mxu0 0.0
    %2895 = vmatpush2.msra.mxu0 0.0
    %2896 = vmatprep.subr.mxu0 0.0
    %2897 = vmatpush2.msra.mxu0 0.0
    %2898 = vmatprep.subr.mxu0 0.0
    %2899 = vmatpush2.msra.mxu0 0.0
    %2900 = vmatprep.subr.mxu0 0.0
    %2901 = vmatpush2.msra.mxu0 0.0
    %2902 = vmatprep.subr.mxu0 0.0
    %2903 = vmatpush2.msra.mxu0 0.0
    %2904 = vmatprep.subr.mxu0 0.0
    %2905 = vmatpush2.msra.mxu0 0.0
    %2906 = vmatprep.subr.mxu0 0.0
    %2907 = vmatpush2.msra.mxu0 0.0
    %2908 = vmatprep.subr.mxu0 0.0
    %2909 = vmatpush2.msra.mxu0 0.0
    %2910 = vmatprep.subr.mxu0 0.0
    %2911 = vmatpush2.msra.mxu0 0.0
    %2912 = vmatprep.subr.mxu0 0.0
    %2913 = vmatpush2.msra.mxu0 0.0
    %2914 = vmatprep.subr.mxu0 0.0
    %2915 = vmatpush2.msra.mxu0 0.0
    %2916 = vmatprep.subr.mxu0 %v2783
    %2917 = vmatpush2.msra.mxu0 %v2782
    %2918 = vmatprep.subr.mxu0 %v2781
    %2919 = vmatpush2.msra.mxu0 %v2780
    %2920 = vmatprep.mubr.f32.mxu0 %v2833
    %2921 = vmatmul.mubr.f32.gmra.mxu0 %v2740
    %v2922 = vpop.f32.mrf.mxu0
    %v2923 = vadd.f32 %v2795, %v2922
    %v2924 = vpop.f32.mrf.mxu0
    %v2925 = vadd.f32 %v2795, %v2924
    %2926 = vmatprep.mubr.f32.mxu0 %v2836
    %2927 = vmatmul.mubr.f32.gmra.mxu0 %v2741
    %v2928 = vpop.f32.mrf.mxu0
    %v2929 = vadd.f32 %v2800, %v2928
    %v2930 = vpop.f32.mrf.mxu0
    %v2931 = vadd.f32 %v2800, %v2930
    %2932 = vmatprep.mubr.f32.mxu0 %v2839
    %2933 = vmatmul.mubr.f32.gmra.mxu0 %v2742
    %v2934 = vpop.f32.mrf.mxu0
    %v2935 = vadd.f32 %v2805, %v2934
    %v2936 = vpop.f32.mrf.mxu0
    %v2937 = vadd.f32 %v2805, %v2936
    %2938 = vmatprep.mubr.f32.mxu0 %v2842
    %2939 = vmatmul.mubr.f32.gmra.mxu0 %v2743
    %v2940 = vpop.f32.mrf.mxu0
    %v2941 = vadd.f32 %v2810, %v2940
    %v2942 = vpop.f32.mrf.mxu0
    %v2943 = vadd.f32 %v2810, %v2942
    %2944 = vmatprep.mubr.f32.mxu0 %v2845
    %2945 = vmatmul.mubr.f32.gmra.mxu0 %v2744
    %v2946 = vpop.f32.mrf.mxu0
    %v2947 = vadd.f32 %v2815, %v2946
    %v2948 = vpop.f32.mrf.mxu0
    %v2949 = vadd.f32 %v2815, %v2948
    %2950 = vmatprep.mubr.f32.mxu0 %v2848
    %2951 = vmatmul.mubr.f32.gmra.mxu0 %v2745
    %v2952 = vpop.f32.mrf.mxu0
    %v2953 = vadd.f32 %v2820, %v2952
    %v2954 = vpop.f32.mrf.mxu0
    %v2955 = vadd.f32 %v2820, %v2954
    %2956 = vmatprep.mubr.f32.mxu0 %v2851
    %2957 = vmatmul.mubr.f32.gmra.mxu0 %v2746
    %v2958 = vpop.f32.mrf.mxu0
    %v2959 = vadd.f32 %v2825, %v2958
    %v2960 = vpop.f32.mrf.mxu0
    %v2961 = vadd.f32 %v2825, %v2960
    %2962 = vmatprep.mubr.f32.mxu0 %v2854
    %2963 = vmatmul.mubr.f32.gmra.mxu0 %v2747
    %v2964 = vpop.f32.mrf.mxu0
    %v2965 = vadd.f32 %v2830, %v2964
    %v2966 = vpop.f32.mrf.mxu0
    %v2967 = vadd.f32 %v2830, %v2966
    %2968 = vdwg.mxu0
    %v2969 = vmax.f32 %v2923, 0.0
    %v2970 = vmax.f32 %v2925, 0.0
    %v2971 = vmax.f32 %v2929, 0.0
    %v2972 = vmax.f32 %v2931, 0.0
    %v2973 = vmax.f32 %v2935, 0.0
    %v2974 = vmax.f32 %v2937, 0.0
    %v2975 = vmax.f32 %v2941, 0.0
    %v2976 = vmax.f32 %v2943, 0.0
    %v2977 = vmax.f32 %v2947, 0.0
    %v2978 = vmax.f32 %v2949, 0.0
    %v2979 = vmax.f32 %v2953, 0.0
    %v2980 = vmax.f32 %v2955, 0.0
    %v2981 = vmax.f32 %v2959, 0.0
    %v2982 = vmax.f32 %v2961, 0.0
    %v2983 = vmax.f32 %v2965, 0.0
    %v2984 = vmax.f32 %v2967, 0.0
    %v2985 = vld [vmem:[%s1] sm:$0xff]
    %v2986 = vld [vmem:[%s1 + $0x8] sm:$0xff]
    %v2987 = vld [vmem:[%s1 + $0x10] sm:$0xff]
    %v2988 = vld [vmem:[%s1 + $0x18] sm:$0xff]
    %v2989 = vld [vmem:[%s1 + $0x20] sm:$0xff]
    %v2990 = vld [vmem:[%s1 + $0x28] sm:$0xff]
    %v2991 = vld [vmem:[%s1 + $0x30] sm:$0xff]
    %v2992 = vld [vmem:[%s1 + $0x38] sm:$0xff]
    %v2993 = vld [vmem:[%s1 + $0x40] sm:$0xff]
    %v2994 = vld [vmem:[%s1 + $0x48] sm:$0xff]
    %v2995 = vld [vmem:[%s1 + $0x50] sm:$0xff]
    %v2996 = vld [vmem:[%s1 + $0x58] sm:$0xff]
    %v2997 = vld [vmem:[%s1 + $0x60] sm:$0xff]
    %v2998 = vld [vmem:[%s1 + $0x68] sm:$0xff]
    %v2999 = vld [vmem:[%s1 + $0x70] sm:$0xff]
    %v3000 = vld [vmem:[%s1 + $0x78] sm:$0xff]
    %v3001 = vadd.f32 %v2969, %v2985
    %v3002 = vadd.f32 %v2970, %v2986
    %v3003 = vadd.f32 %v2971, %v2987
    %v3004 = vadd.f32 %v2972, %v2988
    %v3005 = vadd.f32 %v2973, %v2989
    %v3006 = vadd.f32 %v2974, %v2990
    %v3007 = vadd.f32 %v2975, %v2991
    %v3008 = vadd.f32 %v2976, %v2992
    %v3009 = vadd.f32 %v2977, %v2993
    %v3010 = vadd.f32 %v2978, %v2994
    %v3011 = vadd.f32 %v2979, %v2995
    %v3012 = vadd.f32 %v2980, %v2996
    %v3013 = vadd.f32 %v2981, %v2997
    %v3014 = vadd.f32 %v2982, %v2998
    %v3015 = vadd.f32 %v2983, %v2999
    %v3016 = vadd.f32 %v2984, %v3000
    %3017 = vst [vmem:[%s10] sm:$0xff] %v3001
    %3018 = vst [vmem:[%s10 + $0x8] sm:$0xff] %v3002
    %3019 = vst [vmem:[%s10 + $0x10] sm:$0xff] %v3003
    %3020 = vst [vmem:[%s10 + $0x18] sm:$0xff] %v3004
    %3021 = vst [vmem:[%s10 + $0x20] sm:$0xff] %v3005
    %3022 = vst [vmem:[%s10 + $0x28] sm:$0xff] %v3006
    %3023 = vst [vmem:[%s10 + $0x30] sm:$0xff] %v3007
    %3024 = vst [vmem:[%s10 + $0x38] sm:$0xff] %v3008
    %3025 = vst [vmem:[%s10 + $0x40] sm:$0xff] %v3009
    %3026 = vst [vmem:[%s10 + $0x48] sm:$0xff] %v3010
    %3027 = vst [vmem:[%s10 + $0x50] sm:$0xff] %v3011
    %3028 = vst [vmem:[%s10 + $0x58] sm:$0xff] %v3012
    %3029 = vst [vmem:[%s10 + $0x60] sm:$0xff] %v3013
    %3030 = vst [vmem:[%s10 + $0x68] sm:$0xff] %v3014
    %3031 = vst [vmem:[%s10 + $0x70] sm:$0xff] %v3015
    %3032 = vst [vmem:[%s10 + $0x78] sm:$0xff] %v3016
    // Predicated region
    $region46: #{forward_pallas.1} parent=1 // pred_check
      _
    $region47: #{forward_pallas.1} parent=1 // pred_check_branch
      %3034 = sbr.rel (0) target = $region49
    $region48: #{forward_pallas.1} parent=1 // pred_region
      _
    $region49: #{forward_pallas.1} parent=1 // pred_fallthru
      _
    // Predicated region
    $region50: #{forward_pallas.1} parent=1 // pred_check
      _
    $region51: #{forward_pallas.1} parent=1 // pred_check_branch
      %3036 = sbr.rel (0) target = $region53
    $region52: #{forward_pallas.1} parent=1 // pred_region
      _
    $region53: #{forward_pallas.1} parent=1 // pred_fallthru
      _
    %3037 = vsyncpa [#allocation3], 1

</llo_original>
